<compile_context>
chip_gen: v5e
topology: v5e:2x2
jax: 0.10.0
libtpu: 0.0.40
codegen_flags: <defaults>
</compile_context>

<pallas_src>
import functools

import jax
import jax.numpy as jnp
from jax.experimental import pallas as pl
from jax.experimental.pallas import tpu as pltpu


# ----------------------------- Pallas kernels ------------------------------

def _lstm_scan(gx_ref, whh_ref, hseq_ref=None):
    """Recurrence for one direction of one LSTM layer (whole sequence).

    gx_ref  : (T, B, 4*GP) precomputed x @ W_ih + (b_ih + b_hh); gate k occupies
              lanes [k*GP, k*GP+H) so gate slices start on a 128-lane boundary.
    whh_ref : (H, 4*GP)    hidden->gates weights, same padded-gate layout.
    hseq_ref: (T, B, H)    optional per-timestep hidden output (original time order).

    Direction comes from the grid: program_id(0) == 0 -> forward, 1 -> backward
    (backward walks time in reverse; no wrapper-side reversal copies).
    Returns the final hidden state (B, H). Gate order matches PyTorch: i, f, g, o.
    """
    d = pl.program_id(0)
    T, B, _ = gx_ref.shape
    H = whh_ref.shape[0]
    GP = whh_ref.shape[1] // 4
    whh = whh_ref[...]                                  # (H, 4GP)

    h = jnp.zeros((B, H), jnp.float32)
    c = jnp.zeros((B, H), jnp.float32)
    # T is small -> fully unrolled straight-line loop; h/c stay in vregs.
    for s in range(T):
        t = jnp.where(d == 0, s, T - 1 - s)             # time index for this direction
        gates = gx_ref[t] + jnp.dot(h, whh, preferred_element_type=jnp.float32)
        i = jax.nn.sigmoid(gates[:, 0 * GP:0 * GP + H])
        f = jax.nn.sigmoid(gates[:, 1 * GP:1 * GP + H])
        g = jnp.tanh(gates[:, 2 * GP:2 * GP + H])
        o = jax.nn.sigmoid(gates[:, 3 * GP:3 * GP + H])
        c = f * c + i * g
        h = o * jnp.tanh(c)
        if hseq_ref is not None:
            hseq_ref[t] = h                             # original time order
    return h


def lstm_seq_kernel(gx_ref, whh_ref, hseq_ref):
    """Direction-d LSTM over the sequence; emits the full hidden sequence."""
    _lstm_scan(gx_ref, whh_ref, hseq_ref)


def lstm_final_kernel(gx_ref, whh_ref, hfin_ref):
    """Direction-d LSTM over the sequence; emits only the final hidden state."""
    hfin_ref[...] = _lstm_scan(gx_ref, whh_ref)


# ------------------------------- Wrappers ----------------------------------

def _bidir_lstm(gx, whh, *, seq_output):
    """Both directions of one LSTM layer in a single pallas_call.

    gx : (2, T, B, 4*GP) precomputed input projections (per direction, bias folded in).
    whh: (2, H, 4*GP)    hidden->gates weights (per direction).
    seq_output=True  -> (2, T, B, H) hidden sequence (original time order).
    seq_output=False -> (2, B, H)    final hidden states only.
    Direction grid axis is "parallel": v7x megacore runs fwd/bwd on separate
    TensorCores; no effect (and no cost) on v5e/v6e.
    """
    _, T, B, GP4 = gx.shape
    H = whh.shape[1]
    in_specs = [
        pl.BlockSpec((pl.Squeezed(), T, B, GP4), lambda d: (d, 0, 0, 0)),
        pl.BlockSpec((pl.Squeezed(), H, GP4), lambda d: (d, 0, 0)),
    ]
    if seq_output:
        kernel = lstm_seq_kernel
        out_shape = jax.ShapeDtypeStruct((2, T, B, H), jnp.float32)
        out_spec = pl.BlockSpec((pl.Squeezed(), T, B, H), lambda d: (d, 0, 0, 0))
    else:
        kernel = lstm_final_kernel
        out_shape = jax.ShapeDtypeStruct((2, B, H), jnp.float32)
        out_spec = pl.BlockSpec((pl.Squeezed(), B, H), lambda d: (d, 0, 0))
    return pl.pallas_call(
        kernel,
        out_shape=out_shape,
        grid=(2,),
        in_specs=in_specs,
        out_specs=out_spec,
        compiler_params=pltpu.CompilerParams(dimension_semantics=("parallel",)),
    )(gx, whh)


# --------------------------- Parameter preparation --------------------------

def _round_up(x, m):
    return ((x + m - 1) // m) * m


def _pad_gate_cols(w_t, H, GP):
    """w_t: (in_dim, 4H) with gates i,f,g,o in consecutive H-column blocks.
    Returns (in_dim, 4*GP) with gate k at columns [k*GP, k*GP + H) (rest zero)."""
    in_dim = w_t.shape[0]
    w4 = w_t.reshape(in_dim, 4, H)
    out = jnp.zeros((in_dim, 4, GP), w_t.dtype).at[:, :, :H].set(w4)
    return out.reshape(in_dim, 4 * GP)


def _pad_gate_vec(b, H, GP):
    b4 = b.reshape(4, H)
    return jnp.zeros((4, GP), b.dtype).at[:, :H].set(b4).reshape(4 * GP)


def _prep_direction(p, H, GP):
    """PyTorch-layout (W_ih (4H,in), W_hh (4H,H), b_ih, b_hh) -> padded-gate layout."""
    w_ih, w_hh, b_ih, b_hh = p
    wih_p = _pad_gate_cols(jnp.transpose(w_ih).astype(jnp.float32), H, GP)  # (in, 4GP)
    whh_p = _pad_gate_cols(jnp.transpose(w_hh).astype(jnp.float32), H, GP)  # (H, 4GP)
    b_p = _pad_gate_vec((b_ih + b_hh).astype(jnp.float32), H, GP)           # (4GP,)
    return wih_p, whh_p, b_p


# ------------------------------ Forward pass --------------------------------

def lstm_arch_forward(tokens, params):
    """tokens: (B, T) int32. Returns logits (B, label_size). Inference semantics."""
    H = params["l0_fwd"][1].shape[1]
    GP = _round_up(H, 128)  # pad each gate to a 128-lane multiple (no-op if H%128==0)

    # Embedding lookup (gather) stays in plain JAX glue; dropout is identity (eval).
    embed = params["embedding"][tokens].astype(jnp.float32)    # (B, T, E)
    x_tbe = jnp.transpose(embed, (1, 0, 2))                    # (T, B, E)

    # ---- layer 0 (bidirectional), full hidden sequence needed ----
    w0f, whh0f, b0f = _prep_direction(params["l0_fwd"], H, GP)
    w0b, whh0b, b0b = _prep_direction(params["l0_bwd"], H, GP)
    wih0 = jnp.stack([w0f, w0b])            # (2, E, 4GP)
    whh0 = jnp.stack([whh0f, whh0b])        # (2, H, 4GP)
    b0 = jnp.stack([b0f, b0b])              # (2, 4GP)
    # Hoisted, time-invariant input projection as one large matmul.
    gx0 = jnp.einsum("tbe,deg->dtbg", x_tbe, wih0) + b0[:, None, None, :]
    hseq0 = _bidir_lstm(gx0, whh0, seq_output=True)            # (2, T, B, H)

    # ---- layer 1 (bidirectional), only final hidden states needed ----
    w1f, whh1f, b1f = _prep_direction(params["l1_fwd"], H, GP)
    w1b, whh1b, b1b = _prep_direction(params["l1_bwd"], H, GP)
    wih1 = jnp.stack([w1f, w1b])            # (2, 2H, 4GP)
    whh1 = jnp.stack([whh1f, whh1b])        # (2, H, 4GP)
    b1 = jnp.stack([b1f, b1b])              # (2, 4GP)
    # Avoid materializing concat(h_fwd, h_bwd): split the input-projection weights.
    gx1 = (jnp.einsum("tbh,dhg->dtbg", hseq0[0], wih1[:, :H, :])
           + jnp.einsum("tbh,dhg->dtbg", hseq0[1], wih1[:, H:, :])
           + b1[:, None, None, :])
    hfin1 = _bidir_lstm(gx1, whh1, seq_output=False)           # (2, B, H)

    # ---- classifier head: tiny (B,2H)@(2H,L); left to XLA (per perf review) ----
    w_fc, b_fc = params["fc"]                                   # (L, 2H), (L,)
    logits = (hfin1[0] @ jnp.transpose(w_fc[:, :H])
              + hfin1[1] @ jnp.transpose(w_fc[:, H:])
              + b_fc[None, :])
    return logits


# ------------------------------ Param init ---------------------------------

def init_params(key, vocab_size, embedding_dim, hidden_dim, label_size):
    E, H, L = embedding_dim, hidden_dim, label_size
    k = 1.0 / jnp.sqrt(jnp.float32(H))
    keys = jax.random.split(key, 32)
    ki = iter(keys)

    def u(shape, scale):
        return jax.random.uniform(next(ki), shape, jnp.float32, -scale, scale)

    def lstm_dir_params(in_dim):
        return (u((4 * H, in_dim), k),   # weight_ih
                u((4 * H, H), k),        # weight_hh
                u((4 * H,), k),          # bias_ih
                u((4 * H,), k))          # bias_hh

    params = {
        "embedding": jax.random.normal(next(ki), (vocab_size, E), jnp.float32),
        "l0_fwd": lstm_dir_params(E),
        "l0_bwd": lstm_dir_params(E),
        "l1_fwd": lstm_dir_params(2 * H),
        "l1_bwd": lstm_dir_params(2 * H),
        "fc": (u((L, 2 * H), 1.0 / jnp.sqrt(jnp.float32(2 * H))),
               u((L,), 1.0 / jnp.sqrt(jnp.float32(2 * H)))),
    }
    return params


# --------------------------------- Main -------------------------------------

if __name__ == "__main__":
    VOCAB, E, H, L = 50, 32, 32, 2
    B, T = 2, 8

    key = jax.random.PRNGKey(0)
    pkey, dkey = jax.random.split(key)
    params = init_params(pkey, VOCAB, E, H, L)
    tokens = jax.random.randint(dkey, (B, T), 0, VOCAB, dtype=jnp.int32)

    logits = jax.jit(functools.partial(lstm_arch_forward, params=params))(tokens)
    logits = jax.block_until_ready(logits)
    assert logits.shape == (B, L)
    # TODO(synk): training-mode dropout (p=0.5) on embeddings / hidden is omitted (inference semantics).
    print("KERNEL_OK")
</pallas_src>

<mosaic_0001>
module attributes {stable_mosaic.version = 11 : i64} {
  func.func @lstm_seq_kernel(%arg0: i32, %arg1: memref<1x8x2x512xf32, #tpu.memory_space<vmem>>, %arg2: memref<1x32x512xf32, #tpu.memory_space<vmem>>, %arg3: memref<1x8x2x32xf32, #tpu.memory_space<vmem>>) attributes {dimension_semantics = [#tpu.dimension_semantics<parallel>], iteration_bounds = array<i64: 2>, scalar_prefetch = 0 : i64, scratch_operands = 0 : i64, tpu.core_type = #tpu.core_type<tc>, window_params = [{transform_indices = @transform_0, window_bounds = array<i64: 1, 8, 2, 512>}, {transform_indices = @transform_1, window_bounds = array<i64: 1, 32, 512>}, {transform_indices = @transform_2, window_bounds = array<i64: 1, 8, 2, 32>}]} {
    %c0 = arith.constant 0 : index
    %c0_0 = arith.constant 0 : index
    %c0_1 = arith.constant 0 : index
    %0 = vector.load %arg2[%c0, %c0_0, %c0_1] : memref<1x32x512xf32, #tpu.memory_space<vmem>>, vector<1x32x512xf32>
    %1 = vector.shape_cast %0 : vector<1x32x512xf32> to vector<32x512xf32>
    %cst = arith.constant 0.000000e+00 : f32
    %2 = vector.broadcast %cst : f32 to vector<2x32xf32>
    %cst_2 = arith.constant 0.000000e+00 : f32
    %3 = vector.broadcast %cst_2 : f32 to vector<2x32xf32>
    %c0_i32 = arith.constant 0 : i32
    %4 = arith.cmpi eq, %arg0, %c0_i32 : i32
    %c0_i32_3 = arith.constant 0 : i32
    %c7_i32 = arith.constant 7 : i32
    %5 = arith.select %4, %c0_i32_3, %c7_i32 : i32
    %c0_4 = arith.constant 0 : index
    %6 = arith.index_cast %5 : i32 to index
    %c0_5 = arith.constant 0 : index
    %c0_6 = arith.constant 0 : index
    %7 = vector.load %arg1[%c0_4, %6, %c0_5, %c0_6] : memref<1x8x2x512xf32, #tpu.memory_space<vmem>>, vector<1x1x2x512xf32>
    %8 = vector.shape_cast %7 : vector<1x1x2x512xf32> to vector<2x512xf32>
    %cst_7 = arith.constant dense<0.000000e+00> : vector<2x512xf32>
    %9 = tpu.matmul %2, %1, %cst_7 {dimension_numbers = #tpu.dot_dimension_numbers<[1], [0], [0], [1], [0, 0, 1, 1], [], []>} : vector<2x32xf32>, vector<32x512xf32>, vector<2x512xf32> -> vector<2x512xf32>
    %10 = arith.addf %8, %9 : vector<2x512xf32>
    %11 = vector.extract_strided_slice %10 {offsets = [0, 0], sizes = [2, 32], strides = [1, 1]} : vector<2x512xf32> to vector<2x32xf32>
    %12 = arith.negf %11 : vector<2x32xf32>
    %13 = math.exp %12 : vector<2x32xf32>
    %cst_8 = arith.constant 1.000000e+00 : f32
    %14 = vector.broadcast %cst_8 : f32 to vector<2x32xf32>
    %15 = arith.addf %14, %13 : vector<2x32xf32>
    %16 = arith.divf %14, %15 : vector<2x32xf32>
    %17 = vector.extract_strided_slice %10 {offsets = [0, 128], sizes = [2, 32], strides = [1, 1]} : vector<2x512xf32> to vector<2x32xf32>
    %18 = arith.negf %17 : vector<2x32xf32>
    %19 = math.exp %18 : vector<2x32xf32>
    %cst_9 = arith.constant 1.000000e+00 : f32
    %20 = vector.broadcast %cst_9 : f32 to vector<2x32xf32>
    %21 = arith.addf %20, %19 : vector<2x32xf32>
    %22 = arith.divf %20, %21 : vector<2x32xf32>
    %23 = vector.extract_strided_slice %10 {offsets = [0, 256], sizes = [2, 32], strides = [1, 1]} : vector<2x512xf32> to vector<2x32xf32>
    %24 = math.tanh %23 : vector<2x32xf32>
    %25 = vector.extract_strided_slice %10 {offsets = [0, 384], sizes = [2, 32], strides = [1, 1]} : vector<2x512xf32> to vector<2x32xf32>
    %26 = arith.negf %25 : vector<2x32xf32>
    %27 = math.exp %26 : vector<2x32xf32>
    %cst_10 = arith.constant 1.000000e+00 : f32
    %28 = vector.broadcast %cst_10 : f32 to vector<2x32xf32>
    %29 = arith.addf %28, %27 : vector<2x32xf32>
    %30 = arith.divf %28, %29 : vector<2x32xf32>
    %31 = arith.mulf %22, %3 : vector<2x32xf32>
    %32 = arith.mulf %16, %24 : vector<2x32xf32>
    %33 = arith.addf %31, %32 : vector<2x32xf32>
    %34 = math.tanh %33 : vector<2x32xf32>
    %35 = arith.mulf %30, %34 : vector<2x32xf32>
    %c0_11 = arith.constant 0 : index
    %36 = arith.index_cast %5 : i32 to index
    %c0_12 = arith.constant 0 : index
    %c0_13 = arith.constant 0 : index
    %37 = vector.load %arg3[%c0_11, %36, %c0_12, %c0_13] : memref<1x8x2x32xf32, #tpu.memory_space<vmem>>, vector<1x1x2x32xf32>
    %38 = vector.shape_cast %37 : vector<1x1x2x32xf32> to vector<2x32xf32>
    %39 = vector.shape_cast %35 : vector<2x32xf32> to vector<1x1x2x32xf32>
    tpu.vector_store %arg3[%c0_11, %36, %c0_12, %c0_13], %39 {strides = array<i32>} : memref<1x8x2x32xf32, #tpu.memory_space<vmem>>, vector<1x1x2x32xf32>,
    %c0_i32_14 = arith.constant 0 : i32
    %40 = arith.cmpi eq, %arg0, %c0_i32_14 : i32
    %c1_i32 = arith.constant 1 : i32
    %c6_i32 = arith.constant 6 : i32
    %41 = arith.select %40, %c1_i32, %c6_i32 : i32
    %c0_15 = arith.constant 0 : index
    %42 = arith.index_cast %41 : i32 to index
    %c0_16 = arith.constant 0 : index
    %c0_17 = arith.constant 0 : index
    %43 = vector.load %arg1[%c0_15, %42, %c0_16, %c0_17] : memref<1x8x2x512xf32, #tpu.memory_space<vmem>>, vector<1x1x2x512xf32>
    %44 = vector.shape_cast %43 : vector<1x1x2x512xf32> to vector<2x512xf32>
    %cst_18 = arith.constant dense<0.000000e+00> : vector<2x512xf32>
    %45 = tpu.matmul %35, %1, %cst_18 {dimension_numbers = #tpu.dot_dimension_numbers<[1], [0], [0], [1], [0, 0, 1, 1], [], []>} : vector<2x32xf32>, vector<32x512xf32>, vector<2x512xf32> -> vector<2x512xf32>
    %46 = arith.addf %44, %45 : vector<2x512xf32>
    %47 = vector.extract_strided_slice %46 {offsets = [0, 0], sizes = [2, 32], strides = [1, 1]} : vector<2x512xf32> to vector<2x32xf32>
    %48 = arith.negf %47 : vector<2x32xf32>
    %49 = math.exp %48 : vector<2x32xf32>
    %cst_19 = arith.constant 1.000000e+00 : f32
    %50 = vector.broadcast %cst_19 : f32 to vector<2x32xf32>
    %51 = arith.addf %50, %49 : vector<2x32xf32>
    %52 = arith.divf %50, %51 : vector<2x32xf32>
    %53 = vector.extract_strided_slice %46 {offsets = [0, 128], sizes = [2, 32], strides = [1, 1]} : vector<2x512xf32> to vector<2x32xf32>
    %54 = arith.negf %53 : vector<2x32xf32>
    %55 = math.exp %54 : vector<2x32xf32>
    %cst_20 = arith.constant 1.000000e+00 : f32
    %56 = vector.broadcast %cst_20 : f32 to vector<2x32xf32>
    %57 = arith.addf %56, %55 : vector<2x32xf32>
    %58 = arith.divf %56, %57 : vector<2x32xf32>
    %59 = vector.extract_strided_slice %46 {offsets = [0, 256], sizes = [2, 32], strides = [1, 1]} : vector<2x512xf32> to vector<2x32xf32>
    %60 = math.tanh %59 : vector<2x32xf32>
    %61 = vector.extract_strided_slice %46 {offsets = [0, 384], sizes = [2, 32], strides = [1, 1]} : vector<2x512xf32> to vector<2x32xf32>
    %62 = arith.negf %61 : vector<2x32xf32>
    %63 = math.exp %62 : vector<2x32xf32>
    %cst_21 = arith.constant 1.000000e+00 : f32
    %64 = vector.broadcast %cst_21 : f32 to vector<2x32xf32>
    %65 = arith.addf %64, %63 : vector<2x32xf32>
    %66 = arith.divf %64, %65 : vector<2x32xf32>
    %67 = arith.mulf %58, %33 : vector<2x32xf32>
    %68 = arith.mulf %52, %60 : vector<2x32xf32>
    %69 = arith.addf %67, %68 : vector<2x32xf32>
    %70 = math.tanh %69 : vector<2x32xf32>
    %71 = arith.mulf %66, %70 : vector<2x32xf32>
    %c0_22 = arith.constant 0 : index
    %72 = arith.index_cast %41 : i32 to index
    %c0_23 = arith.constant 0 : index
    %c0_24 = arith.constant 0 : index
    %73 = vector.load %arg3[%c0_22, %72, %c0_23, %c0_24] : memref<1x8x2x32xf32, #tpu.memory_space<vmem>>, vector<1x1x2x32xf32>
    %74 = vector.shape_cast %73 : vector<1x1x2x32xf32> to vector<2x32xf32>
    %75 = vector.shape_cast %71 : vector<2x32xf32> to vector<1x1x2x32xf32>
    tpu.vector_store %arg3[%c0_22, %72, %c0_23, %c0_24], %75 {strides = array<i32>} : memref<1x8x2x32xf32, #tpu.memory_space<vmem>>, vector<1x1x2x32xf32>,
    %c0_i32_25 = arith.constant 0 : i32
    %76 = arith.cmpi eq, %arg0, %c0_i32_25 : i32
    %c2_i32 = arith.constant 2 : i32
    %c5_i32 = arith.constant 5 : i32
    %77 = arith.select %76, %c2_i32, %c5_i32 : i32
    %c0_26 = arith.constant 0 : index
    %78 = arith.index_cast %77 : i32 to index
    %c0_27 = arith.constant 0 : index
    %c0_28 = arith.constant 0 : index
    %79 = vector.load %arg1[%c0_26, %78, %c0_27, %c0_28] : memref<1x8x2x512xf32, #tpu.memory_space<vmem>>, vector<1x1x2x512xf32>
    %80 = vector.shape_cast %79 : vector<1x1x2x512xf32> to vector<2x512xf32>
    %cst_29 = arith.constant dense<0.000000e+00> : vector<2x512xf32>
    %81 = tpu.matmul %71, %1, %cst_29 {dimension_numbers = #tpu.dot_dimension_numbers<[1], [0], [0], [1], [0, 0, 1, 1], [], []>} : vector<2x32xf32>, vector<32x512xf32>, vector<2x512xf32> -> vector<2x512xf32>
    %82 = arith.addf %80, %81 : vector<2x512xf32>
    %83 = vector.extract_strided_slice %82 {offsets = [0, 0], sizes = [2, 32], strides = [1, 1]} : vector<2x512xf32> to vector<2x32xf32>
    %84 = arith.negf %83 : vector<2x32xf32>
    %85 = math.exp %84 : vector<2x32xf32>
    %cst_30 = arith.constant 1.000000e+00 : f32
    %86 = vector.broadcast %cst_30 : f32 to vector<2x32xf32>
    %87 = arith.addf %86, %85 : vector<2x32xf32>
    %88 = arith.divf %86, %87 : vector<2x32xf32>
    %89 = vector.extract_strided_slice %82 {offsets = [0, 128], sizes = [2, 32], strides = [1, 1]} : vector<2x512xf32> to vector<2x32xf32>
    %90 = arith.negf %89 : vector<2x32xf32>
    %91 = math.exp %90 : vector<2x32xf32>
    %cst_31 = arith.constant 1.000000e+00 : f32
    %92 = vector.broadcast %cst_31 : f32 to vector<2x32xf32>
    %93 = arith.addf %92, %91 : vector<2x32xf32>
    %94 = arith.divf %92, %93 : vector<2x32xf32>
    %95 = vector.extract_strided_slice %82 {offsets = [0, 256], sizes = [2, 32], strides = [1, 1]} : vector<2x512xf32> to vector<2x32xf32>
    %96 = math.tanh %95 : vector<2x32xf32>
    %97 = vector.extract_strided_slice %82 {offsets = [0, 384], sizes = [2, 32], strides = [1, 1]} : vector<2x512xf32> to vector<2x32xf32>
    %98 = arith.negf %97 : vector<2x32xf32>
    %99 = math.exp %98 : vector<2x32xf32>
    %cst_32 = arith.constant 1.000000e+00 : f32
    %100 = vector.broadcast %cst_32 : f32 to vector<2x32xf32>
    %101 = arith.addf %100, %99 : vector<2x32xf32>
    %102 = arith.divf %100, %101 : vector<2x32xf32>
    %103 = arith.mulf %94, %69 : vector<2x32xf32>
    %104 = arith.mulf %88, %96 : vector<2x32xf32>
    %105 = arith.addf %103, %104 : vector<2x32xf32>
    %106 = math.tanh %105 : vector<2x32xf32>
    %107 = arith.mulf %102, %106 : vector<2x32xf32>
    %c0_33 = arith.constant 0 : index
    %108 = arith.index_cast %77 : i32 to index
    %c0_34 = arith.constant 0 : index
    %c0_35 = arith.constant 0 : index
    %109 = vector.load %arg3[%c0_33, %108, %c0_34, %c0_35] : memref<1x8x2x32xf32, #tpu.memory_space<vmem>>, vector<1x1x2x32xf32>
    %110 = vector.shape_cast %109 : vector<1x1x2x32xf32> to vector<2x32xf32>
    %111 = vector.shape_cast %107 : vector<2x32xf32> to vector<1x1x2x32xf32>
    tpu.vector_store %arg3[%c0_33, %108, %c0_34, %c0_35], %111 {strides = array<i32>} : memref<1x8x2x32xf32, #tpu.memory_space<vmem>>, vector<1x1x2x32xf32>,
    %c0_i32_36 = arith.constant 0 : i32
    %112 = arith.cmpi eq, %arg0, %c0_i32_36 : i32
    %c3_i32 = arith.constant 3 : i32
    %c4_i32 = arith.constant 4 : i32
    %113 = arith.select %112, %c3_i32, %c4_i32 : i32
    %c0_37 = arith.constant 0 : index
    %114 = arith.index_cast %113 : i32 to index
    %c0_38 = arith.constant 0 : index
    %c0_39 = arith.constant 0 : index
    %115 = vector.load %arg1[%c0_37, %114, %c0_38, %c0_39] : memref<1x8x2x512xf32, #tpu.memory_space<vmem>>, vector<1x1x2x512xf32>
    %116 = vector.shape_cast %115 : vector<1x1x2x512xf32> to vector<2x512xf32>
    %cst_40 = arith.constant dense<0.000000e+00> : vector<2x512xf32>
    %117 = tpu.matmul %107, %1, %cst_40 {dimension_numbers = #tpu.dot_dimension_numbers<[1], [0], [0], [1], [0, 0, 1, 1], [], []>} : vector<2x32xf32>, vector<32x512xf32>, vector<2x512xf32> -> vector<2x512xf32>
    %118 = arith.addf %116, %117 : vector<2x512xf32>
    %119 = vector.extract_strided_slice %118 {offsets = [0, 0], sizes = [2, 32], strides = [1, 1]} : vector<2x512xf32> to vector<2x32xf32>
    %120 = arith.negf %119 : vector<2x32xf32>
    %121 = math.exp %120 : vector<2x32xf32>
    %cst_41 = arith.constant 1.000000e+00 : f32
    %122 = vector.broadcast %cst_41 : f32 to vector<2x32xf32>
    %123 = arith.addf %122, %121 : vector<2x32xf32>
    %124 = arith.divf %122, %123 : vector<2x32xf32>
    %125 = vector.extract_strided_slice %118 {offsets = [0, 128], sizes = [2, 32], strides = [1, 1]} : vector<2x512xf32> to vector<2x32xf32>
    %126 = arith.negf %125 : vector<2x32xf32>
    %127 = math.exp %126 : vector<2x32xf32>
    %cst_42 = arith.constant 1.000000e+00 : f32
    %128 = vector.broadcast %cst_42 : f32 to vector<2x32xf32>
    %129 = arith.addf %128, %127 : vector<2x32xf32>
    %130 = arith.divf %128, %129 : vector<2x32xf32>
    %131 = vector.extract_strided_slice %118 {offsets = [0, 256], sizes = [2, 32], strides = [1, 1]} : vector<2x512xf32> to vector<2x32xf32>
    %132 = math.tanh %131 : vector<2x32xf32>
    %133 = vector.extract_strided_slice %118 {offsets = [0, 384], sizes = [2, 32], strides = [1, 1]} : vector<2x512xf32> to vector<2x32xf32>
    %134 = arith.negf %133 : vector<2x32xf32>
    %135 = math.exp %134 : vector<2x32xf32>
    %cst_43 = arith.constant 1.000000e+00 : f32
    %136 = vector.broadcast %cst_43 : f32 to vector<2x32xf32>
    %137 = arith.addf %136, %135 : vector<2x32xf32>
    %138 = arith.divf %136, %137 : vector<2x32xf32>
    %139 = arith.mulf %130, %105 : vector<2x32xf32>
    %140 = arith.mulf %124, %132 : vector<2x32xf32>
    %141 = arith.addf %139, %140 : vector<2x32xf32>
    %142 = math.tanh %141 : vector<2x32xf32>
    %143 = arith.mulf %138, %142 : vector<2x32xf32>
    %c0_44 = arith.constant 0 : index
    %144 = arith.index_cast %113 : i32 to index
    %c0_45 = arith.constant 0 : index
    %c0_46 = arith.constant 0 : index
    %145 = vector.load %arg3[%c0_44, %144, %c0_45, %c0_46] : memref<1x8x2x32xf32, #tpu.memory_space<vmem>>, vector<1x1x2x32xf32>
    %146 = vector.shape_cast %145 : vector<1x1x2x32xf32> to vector<2x32xf32>
    %147 = vector.shape_cast %143 : vector<2x32xf32> to vector<1x1x2x32xf32>
    tpu.vector_store %arg3[%c0_44, %144, %c0_45, %c0_46], %147 {strides = array<i32>} : memref<1x8x2x32xf32, #tpu.memory_space<vmem>>, vector<1x1x2x32xf32>,
    %c0_i32_47 = arith.constant 0 : i32
    %148 = arith.cmpi eq, %arg0, %c0_i32_47 : i32
    %c4_i32_48 = arith.constant 4 : i32
    %c3_i32_49 = arith.constant 3 : i32
    %149 = arith.select %148, %c4_i32_48, %c3_i32_49 : i32
    %c0_50 = arith.constant 0 : index
    %150 = arith.index_cast %149 : i32 to index
    %c0_51 = arith.constant 0 : index
    %c0_52 = arith.constant 0 : index
    %151 = vector.load %arg1[%c0_50, %150, %c0_51, %c0_52] : memref<1x8x2x512xf32, #tpu.memory_space<vmem>>, vector<1x1x2x512xf32>
    %152 = vector.shape_cast %151 : vector<1x1x2x512xf32> to vector<2x512xf32>
    %cst_53 = arith.constant dense<0.000000e+00> : vector<2x512xf32>
    %153 = tpu.matmul %143, %1, %cst_53 {dimension_numbers = #tpu.dot_dimension_numbers<[1], [0], [0], [1], [0, 0, 1, 1], [], []>} : vector<2x32xf32>, vector<32x512xf32>, vector<2x512xf32> -> vector<2x512xf32>
    %154 = arith.addf %152, %153 : vector<2x512xf32>
    %155 = vector.extract_strided_slice %154 {offsets = [0, 0], sizes = [2, 32], strides = [1, 1]} : vector<2x512xf32> to vector<2x32xf32>
    %156 = arith.negf %155 : vector<2x32xf32>
    %157 = math.exp %156 : vector<2x32xf32>
    %cst_54 = arith.constant 1.000000e+00 : f32
    %158 = vector.broadcast %cst_54 : f32 to vector<2x32xf32>
    %159 = arith.addf %158, %157 : vector<2x32xf32>
    %160 = arith.divf %158, %159 : vector<2x32xf32>
    %161 = vector.extract_strided_slice %154 {offsets = [0, 128], sizes = [2, 32], strides = [1, 1]} : vector<2x512xf32> to vector<2x32xf32>
    %162 = arith.negf %161 : vector<2x32xf32>
    %163 = math.exp %162 : vector<2x32xf32>
    %cst_55 = arith.constant 1.000000e+00 : f32
    %164 = vector.broadcast %cst_55 : f32 to vector<2x32xf32>
    %165 = arith.addf %164, %163 : vector<2x32xf32>
    %166 = arith.divf %164, %165 : vector<2x32xf32>
    %167 = vector.extract_strided_slice %154 {offsets = [0, 256], sizes = [2, 32], strides = [1, 1]} : vector<2x512xf32> to vector<2x32xf32>
    %168 = math.tanh %167 : vector<2x32xf32>
    %169 = vector.extract_strided_slice %154 {offsets = [0, 384], sizes = [2, 32], strides = [1, 1]} : vector<2x512xf32> to vector<2x32xf32>
    %170 = arith.negf %169 : vector<2x32xf32>
    %171 = math.exp %170 : vector<2x32xf32>
    %cst_56 = arith.constant 1.000000e+00 : f32
    %172 = vector.broadcast %cst_56 : f32 to vector<2x32xf32>
    %173 = arith.addf %172, %171 : vector<2x32xf32>
    %174 = arith.divf %172, %173 : vector<2x32xf32>
    %175 = arith.mulf %166, %141 : vector<2x32xf32>
    %176 = arith.mulf %160, %168 : vector<2x32xf32>
    %177 = arith.addf %175, %176 : vector<2x32xf32>
    %178 = math.tanh %177 : vector<2x32xf32>
    %179 = arith.mulf %174, %178 : vector<2x32xf32>
    %c0_57 = arith.constant 0 : index
    %180 = arith.index_cast %149 : i32 to index
    %c0_58 = arith.constant 0 : index
    %c0_59 = arith.constant 0 : index
    %181 = vector.load %arg3[%c0_57, %180, %c0_58, %c0_59] : memref<1x8x2x32xf32, #tpu.memory_space<vmem>>, vector<1x1x2x32xf32>
    %182 = vector.shape_cast %181 : vector<1x1x2x32xf32> to vector<2x32xf32>
    %183 = vector.shape_cast %179 : vector<2x32xf32> to vector<1x1x2x32xf32>
    tpu.vector_store %arg3[%c0_57, %180, %c0_58, %c0_59], %183 {strides = array<i32>} : memref<1x8x2x32xf32, #tpu.memory_space<vmem>>, vector<1x1x2x32xf32>,
    %c0_i32_60 = arith.constant 0 : i32
    %184 = arith.cmpi eq, %arg0, %c0_i32_60 : i32
    %c5_i32_61 = arith.constant 5 : i32
    %c2_i32_62 = arith.constant 2 : i32
    %185 = arith.select %184, %c5_i32_61, %c2_i32_62 : i32
    %c0_63 = arith.constant 0 : index
    %186 = arith.index_cast %185 : i32 to index
    %c0_64 = arith.constant 0 : index
    %c0_65 = arith.constant 0 : index
    %187 = vector.load %arg1[%c0_63, %186, %c0_64, %c0_65] : memref<1x8x2x512xf32, #tpu.memory_space<vmem>>, vector<1x1x2x512xf32>
    %188 = vector.shape_cast %187 : vector<1x1x2x512xf32> to vector<2x512xf32>
    %cst_66 = arith.constant dense<0.000000e+00> : vector<2x512xf32>
    %189 = tpu.matmul %179, %1, %cst_66 {dimension_numbers = #tpu.dot_dimension_numbers<[1], [0], [0], [1], [0, 0, 1, 1], [], []>} : vector<2x32xf32>, vector<32x512xf32>, vector<2x512xf32> -> vector<2x512xf32>
    %190 = arith.addf %188, %189 : vector<2x512xf32>
    %191 = vector.extract_strided_slice %190 {offsets = [0, 0], sizes = [2, 32], strides = [1, 1]} : vector<2x512xf32> to vector<2x32xf32>
    %192 = arith.negf %191 : vector<2x32xf32>
    %193 = math.exp %192 : vector<2x32xf32>
    %cst_67 = arith.constant 1.000000e+00 : f32
    %194 = vector.broadcast %cst_67 : f32 to vector<2x32xf32>
    %195 = arith.addf %194, %193 : vector<2x32xf32>
    %196 = arith.divf %194, %195 : vector<2x32xf32>
    %197 = vector.extract_strided_slice %190 {offsets = [0, 128], sizes = [2, 32], strides = [1, 1]} : vector<2x512xf32> to vector<2x32xf32>
    %198 = arith.negf %197 : vector<2x32xf32>
    %199 = math.exp %198 : vector<2x32xf32>
    %cst_68 = arith.constant 1.000000e+00 : f32
    %200 = vector.broadcast %cst_68 : f32 to vector<2x32xf32>
    %201 = arith.addf %200, %199 : vector<2x32xf32>
    %202 = arith.divf %200, %201 : vector<2x32xf32>
    %203 = vector.extract_strided_slice %190 {offsets = [0, 256], sizes = [2, 32], strides = [1, 1]} : vector<2x512xf32> to vector<2x32xf32>
    %204 = math.tanh %203 : vector<2x32xf32>
    %205 = vector.extract_strided_slice %190 {offsets = [0, 384], sizes = [2, 32], strides = [1, 1]} : vector<2x512xf32> to vector<2x32xf32>
    %206 = arith.negf %205 : vector<2x32xf32>
    %207 = math.exp %206 : vector<2x32xf32>
    %cst_69 = arith.constant 1.000000e+00 : f32
    %208 = vector.broadcast %cst_69 : f32 to vector<2x32xf32>
    %209 = arith.addf %208, %207 : vector<2x32xf32>
    %210 = arith.divf %208, %209 : vector<2x32xf32>
    %211 = arith.mulf %202, %177 : vector<2x32xf32>
    %212 = arith.mulf %196, %204 : vector<2x32xf32>
    %213 = arith.addf %211, %212 : vector<2x32xf32>
    %214 = math.tanh %213 : vector<2x32xf32>
    %215 = arith.mulf %210, %214 : vector<2x32xf32>
    %c0_70 = arith.constant 0 : index
    %216 = arith.index_cast %185 : i32 to index
    %c0_71 = arith.constant 0 : index
    %c0_72 = arith.constant 0 : index
    %217 = vector.load %arg3[%c0_70, %216, %c0_71, %c0_72] : memref<1x8x2x32xf32, #tpu.memory_space<vmem>>, vector<1x1x2x32xf32>
    %218 = vector.shape_cast %217 : vector<1x1x2x32xf32> to vector<2x32xf32>
    %219 = vector.shape_cast %215 : vector<2x32xf32> to vector<1x1x2x32xf32>
    tpu.vector_store %arg3[%c0_70, %216, %c0_71, %c0_72], %219 {strides = array<i32>} : memref<1x8x2x32xf32, #tpu.memory_space<vmem>>, vector<1x1x2x32xf32>,
    %c0_i32_73 = arith.constant 0 : i32
    %220 = arith.cmpi eq, %arg0, %c0_i32_73 : i32
    %c6_i32_74 = arith.constant 6 : i32
    %c1_i32_75 = arith.constant 1 : i32
    %221 = arith.select %220, %c6_i32_74, %c1_i32_75 : i32
    %c0_76 = arith.constant 0 : index
    %222 = arith.index_cast %221 : i32 to index
    %c0_77 = arith.constant 0 : index
    %c0_78 = arith.constant 0 : index
    %223 = vector.load %arg1[%c0_76, %222, %c0_77, %c0_78] : memref<1x8x2x512xf32, #tpu.memory_space<vmem>>, vector<1x1x2x512xf32>
    %224 = vector.shape_cast %223 : vector<1x1x2x512xf32> to vector<2x512xf32>
    %cst_79 = arith.constant dense<0.000000e+00> : vector<2x512xf32>
    %225 = tpu.matmul %215, %1, %cst_79 {dimension_numbers = #tpu.dot_dimension_numbers<[1], [0], [0], [1], [0, 0, 1, 1], [], []>} : vector<2x32xf32>, vector<32x512xf32>, vector<2x512xf32> -> vector<2x512xf32>
    %226 = arith.addf %224, %225 : vector<2x512xf32>
    %227 = vector.extract_strided_slice %226 {offsets = [0, 0], sizes = [2, 32], strides = [1, 1]} : vector<2x512xf32> to vector<2x32xf32>
    %228 = arith.negf %227 : vector<2x32xf32>
    %229 = math.exp %228 : vector<2x32xf32>
    %cst_80 = arith.constant 1.000000e+00 : f32
    %230 = vector.broadcast %cst_80 : f32 to vector<2x32xf32>
    %231 = arith.addf %230, %229 : vector<2x32xf32>
    %232 = arith.divf %230, %231 : vector<2x32xf32>
    %233 = vector.extract_strided_slice %226 {offsets = [0, 128], sizes = [2, 32], strides = [1, 1]} : vector<2x512xf32> to vector<2x32xf32>
    %234 = arith.negf %233 : vector<2x32xf32>
    %235 = math.exp %234 : vector<2x32xf32>
    %cst_81 = arith.constant 1.000000e+00 : f32
    %236 = vector.broadcast %cst_81 : f32 to vector<2x32xf32>
    %237 = arith.addf %236, %235 : vector<2x32xf32>
    %238 = arith.divf %236, %237 : vector<2x32xf32>
    %239 = vector.extract_strided_slice %226 {offsets = [0, 256], sizes = [2, 32], strides = [1, 1]} : vector<2x512xf32> to vector<2x32xf32>
    %240 = math.tanh %239 : vector<2x32xf32>
    %241 = vector.extract_strided_slice %226 {offsets = [0, 384], sizes = [2, 32], strides = [1, 1]} : vector<2x512xf32> to vector<2x32xf32>
    %242 = arith.negf %241 : vector<2x32xf32>
    %243 = math.exp %242 : vector<2x32xf32>
    %cst_82 = arith.constant 1.000000e+00 : f32
    %244 = vector.broadcast %cst_82 : f32 to vector<2x32xf32>
    %245 = arith.addf %244, %243 : vector<2x32xf32>
    %246 = arith.divf %244, %245 : vector<2x32xf32>
    %247 = arith.mulf %238, %213 : vector<2x32xf32>
    %248 = arith.mulf %232, %240 : vector<2x32xf32>
    %249 = arith.addf %247, %248 : vector<2x32xf32>
    %250 = math.tanh %249 : vector<2x32xf32>
    %251 = arith.mulf %246, %250 : vector<2x32xf32>
    %c0_83 = arith.constant 0 : index
    %252 = arith.index_cast %221 : i32 to index
    %c0_84 = arith.constant 0 : index
    %c0_85 = arith.constant 0 : index
    %253 = vector.load %arg3[%c0_83, %252, %c0_84, %c0_85] : memref<1x8x2x32xf32, #tpu.memory_space<vmem>>, vector<1x1x2x32xf32>
    %254 = vector.shape_cast %253 : vector<1x1x2x32xf32> to vector<2x32xf32>
    %255 = vector.shape_cast %251 : vector<2x32xf32> to vector<1x1x2x32xf32>
    tpu.vector_store %arg3[%c0_83, %252, %c0_84, %c0_85], %255 {strides = array<i32>} : memref<1x8x2x32xf32, #tpu.memory_space<vmem>>, vector<1x1x2x32xf32>,
    %c0_i32_86 = arith.constant 0 : i32
    %256 = arith.cmpi eq, %arg0, %c0_i32_86 : i32
    %c7_i32_87 = arith.constant 7 : i32
    %c0_i32_88 = arith.constant 0 : i32
    %257 = arith.select %256, %c7_i32_87, %c0_i32_88 : i32
    %c0_89 = arith.constant 0 : index
    %258 = arith.index_cast %257 : i32 to index
    %c0_90 = arith.constant 0 : index
    %c0_91 = arith.constant 0 : index
    %259 = vector.load %arg1[%c0_89, %258, %c0_90, %c0_91] : memref<1x8x2x512xf32, #tpu.memory_space<vmem>>, vector<1x1x2x512xf32>
    %260 = vector.shape_cast %259 : vector<1x1x2x512xf32> to vector<2x512xf32>
    %cst_92 = arith.constant dense<0.000000e+00> : vector<2x512xf32>
    %261 = tpu.matmul %251, %1, %cst_92 {dimension_numbers = #tpu.dot_dimension_numbers<[1], [0], [0], [1], [0, 0, 1, 1], [], []>} : vector<2x32xf32>, vector<32x512xf32>, vector<2x512xf32> -> vector<2x512xf32>
    %262 = arith.addf %260, %261 : vector<2x512xf32>
    %263 = vector.extract_strided_slice %262 {offsets = [0, 0], sizes = [2, 32], strides = [1, 1]} : vector<2x512xf32> to vector<2x32xf32>
    %264 = arith.negf %263 : vector<2x32xf32>
    %265 = math.exp %264 : vector<2x32xf32>
    %cst_93 = arith.constant 1.000000e+00 : f32
    %266 = vector.broadcast %cst_93 : f32 to vector<2x32xf32>
    %267 = arith.addf %266, %265 : vector<2x32xf32>
    %268 = arith.divf %266, %267 : vector<2x32xf32>
    %269 = vector.extract_strided_slice %262 {offsets = [0, 128], sizes = [2, 32], strides = [1, 1]} : vector<2x512xf32> to vector<2x32xf32>
    %270 = arith.negf %269 : vector<2x32xf32>
    %271 = math.exp %270 : vector<2x32xf32>
    %cst_94 = arith.constant 1.000000e+00 : f32
    %272 = vector.broadcast %cst_94 : f32 to vector<2x32xf32>
    %273 = arith.addf %272, %271 : vector<2x32xf32>
    %274 = arith.divf %272, %273 : vector<2x32xf32>
    %275 = vector.extract_strided_slice %262 {offsets = [0, 256], sizes = [2, 32], strides = [1, 1]} : vector<2x512xf32> to vector<2x32xf32>
    %276 = math.tanh %275 : vector<2x32xf32>
    %277 = vector.extract_strided_slice %262 {offsets = [0, 384], sizes = [2, 32], strides = [1, 1]} : vector<2x512xf32> to vector<2x32xf32>
    %278 = arith.negf %277 : vector<2x32xf32>
    %279 = math.exp %278 : vector<2x32xf32>
    %cst_95 = arith.constant 1.000000e+00 : f32
    %280 = vector.broadcast %cst_95 : f32 to vector<2x32xf32>
    %281 = arith.addf %280, %279 : vector<2x32xf32>
    %282 = arith.divf %280, %281 : vector<2x32xf32>
    %283 = arith.mulf %274, %249 : vector<2x32xf32>
    %284 = arith.mulf %268, %276 : vector<2x32xf32>
    %285 = arith.addf %283, %284 : vector<2x32xf32>
    %286 = math.tanh %285 : vector<2x32xf32>
    %287 = arith.mulf %282, %286 : vector<2x32xf32>
    %c0_96 = arith.constant 0 : index
    %288 = arith.index_cast %257 : i32 to index
    %c0_97 = arith.constant 0 : index
    %c0_98 = arith.constant 0 : index
    %289 = vector.load %arg3[%c0_96, %288, %c0_97, %c0_98] : memref<1x8x2x32xf32, #tpu.memory_space<vmem>>, vector<1x1x2x32xf32>
    %290 = vector.shape_cast %289 : vector<1x1x2x32xf32> to vector<2x32xf32>
    %291 = vector.shape_cast %287 : vector<2x32xf32> to vector<1x1x2x32xf32>
    tpu.vector_store %arg3[%c0_96, %288, %c0_97, %c0_98], %291 {strides = array<i32>} : memref<1x8x2x32xf32, #tpu.memory_space<vmem>>, vector<1x1x2x32xf32>,
    return
  }
  func.func @transform_0(%arg0: i32) -> (i32, i32, i32, i32) {
    %c0_i32 = arith.constant 0 : i32
    %c0_i32_0 = arith.constant 0 : i32
    %c0_i32_1 = arith.constant 0 : i32
    %c0_i32_2 = arith.constant 0 : i32
    return %arg0, %c0_i32, %c0_i32_0, %c0_i32_1 : i32, i32, i32, i32
  }
  func.func @transform_1(%arg0: i32) -> (i32, i32, i32) {
    %c0_i32 = arith.constant 0 : i32
    %c0_i32_0 = arith.constant 0 : i32
    %c0_i32_1 = arith.constant 0 : i32
    return %arg0, %c0_i32, %c0_i32_0 : i32, i32, i32
  }
  func.func @transform_2(%arg0: i32) -> (i32, i32, i32, i32) {
    %c0_i32 = arith.constant 0 : i32
    %c0_i32_0 = arith.constant 0 : i32
    %c0_i32_1 = arith.constant 0 : i32
    %c0_i32_2 = arith.constant 0 : i32
    return %arg0, %c0_i32, %c0_i32_0, %c0_i32_1 : i32, i32, i32, i32
  }
}

module attributes {stable_mosaic.version = 11 : i64} {
  func.func @lstm_final_kernel(%arg0: i32, %arg1: memref<1x8x2x512xf32, #tpu.memory_space<vmem>>, %arg2: memref<1x32x512xf32, #tpu.memory_space<vmem>>, %arg3: memref<1x2x32xf32, #tpu.memory_space<vmem>>) attributes {dimension_semantics = [#tpu.dimension_semantics<parallel>], iteration_bounds = array<i64: 2>, scalar_prefetch = 0 : i64, scratch_operands = 0 : i64, tpu.core_type = #tpu.core_type<tc>, window_params = [{transform_indices = @transform_0, window_bounds = array<i64: 1, 8, 2, 512>}, {transform_indices = @transform_1, window_bounds = array<i64: 1, 32, 512>}, {transform_indices = @transform_2, window_bounds = array<i64: 1, 2, 32>}]} {
    %c0 = arith.constant 0 : index
    %c0_0 = arith.constant 0 : index
    %c0_1 = arith.constant 0 : index
    %0 = vector.load %arg2[%c0, %c0_0, %c0_1] : memref<1x32x512xf32, #tpu.memory_space<vmem>>, vector<1x32x512xf32>
    %1 = vector.shape_cast %0 : vector<1x32x512xf32> to vector<32x512xf32>
    %cst = arith.constant 0.000000e+00 : f32
    %2 = vector.broadcast %cst : f32 to vector<2x32xf32>
    %cst_2 = arith.constant 0.000000e+00 : f32
    %3 = vector.broadcast %cst_2 : f32 to vector<2x32xf32>
    %c0_i32 = arith.constant 0 : i32
    %4 = arith.cmpi eq, %arg0, %c0_i32 : i32
    %c0_i32_3 = arith.constant 0 : i32
    %c7_i32 = arith.constant 7 : i32
    %5 = arith.select %4, %c0_i32_3, %c7_i32 : i32
    %c0_4 = arith.constant 0 : index
    %6 = arith.index_cast %5 : i32 to index
    %c0_5 = arith.constant 0 : index
    %c0_6 = arith.constant 0 : index
    %7 = vector.load %arg1[%c0_4, %6, %c0_5, %c0_6] : memref<1x8x2x512xf32, #tpu.memory_space<vmem>>, vector<1x1x2x512xf32>
    %8 = vector.shape_cast %7 : vector<1x1x2x512xf32> to vector<2x512xf32>
    %cst_7 = arith.constant dense<0.000000e+00> : vector<2x512xf32>
    %9 = tpu.matmul %2, %1, %cst_7 {dimension_numbers = #tpu.dot_dimension_numbers<[1], [0], [0], [1], [0, 0, 1, 1], [], []>} : vector<2x32xf32>, vector<32x512xf32>, vector<2x512xf32> -> vector<2x512xf32>
    %10 = arith.addf %8, %9 : vector<2x512xf32>
    %11 = vector.extract_strided_slice %10 {offsets = [0, 0], sizes = [2, 32], strides = [1, 1]} : vector<2x512xf32> to vector<2x32xf32>
    %12 = arith.negf %11 : vector<2x32xf32>
    %13 = math.exp %12 : vector<2x32xf32>
    %cst_8 = arith.constant 1.000000e+00 : f32
    %14 = vector.broadcast %cst_8 : f32 to vector<2x32xf32>
    %15 = arith.addf %14, %13 : vector<2x32xf32>
    %16 = arith.divf %14, %15 : vector<2x32xf32>
    %17 = vector.extract_strided_slice %10 {offsets = [0, 128], sizes = [2, 32], strides = [1, 1]} : vector<2x512xf32> to vector<2x32xf32>
    %18 = arith.negf %17 : vector<2x32xf32>
    %19 = math.exp %18 : vector<2x32xf32>
    %cst_9 = arith.constant 1.000000e+00 : f32
    %20 = vector.broadcast %cst_9 : f32 to vector<2x32xf32>
    %21 = arith.addf %20, %19 : vector<2x32xf32>
    %22 = arith.divf %20, %21 : vector<2x32xf32>
    %23 = vector.extract_strided_slice %10 {offsets = [0, 256], sizes = [2, 32], strides = [1, 1]} : vector<2x512xf32> to vector<2x32xf32>
    %24 = math.tanh %23 : vector<2x32xf32>
    %25 = vector.extract_strided_slice %10 {offsets = [0, 384], sizes = [2, 32], strides = [1, 1]} : vector<2x512xf32> to vector<2x32xf32>
    %26 = arith.negf %25 : vector<2x32xf32>
    %27 = math.exp %26 : vector<2x32xf32>
    %cst_10 = arith.constant 1.000000e+00 : f32
    %28 = vector.broadcast %cst_10 : f32 to vector<2x32xf32>
    %29 = arith.addf %28, %27 : vector<2x32xf32>
    %30 = arith.divf %28, %29 : vector<2x32xf32>
    %31 = arith.mulf %22, %3 : vector<2x32xf32>
    %32 = arith.mulf %16, %24 : vector<2x32xf32>
    %33 = arith.addf %31, %32 : vector<2x32xf32>
    %34 = math.tanh %33 : vector<2x32xf32>
    %35 = arith.mulf %30, %34 : vector<2x32xf32>
    %c0_i32_11 = arith.constant 0 : i32
    %36 = arith.cmpi eq, %arg0, %c0_i32_11 : i32
    %c1_i32 = arith.constant 1 : i32
    %c6_i32 = arith.constant 6 : i32
    %37 = arith.select %36, %c1_i32, %c6_i32 : i32
    %c0_12 = arith.constant 0 : index
    %38 = arith.index_cast %37 : i32 to index
    %c0_13 = arith.constant 0 : index
    %c0_14 = arith.constant 0 : index
    %39 = vector.load %arg1[%c0_12, %38, %c0_13, %c0_14] : memref<1x8x2x512xf32, #tpu.memory_space<vmem>>, vector<1x1x2x512xf32>
    %40 = vector.shape_cast %39 : vector<1x1x2x512xf32> to vector<2x512xf32>
    %cst_15 = arith.constant dense<0.000000e+00> : vector<2x512xf32>
    %41 = tpu.matmul %35, %1, %cst_15 {dimension_numbers = #tpu.dot_dimension_numbers<[1], [0], [0], [1], [0, 0, 1, 1], [], []>} : vector<2x32xf32>, vector<32x512xf32>, vector<2x512xf32> -> vector<2x512xf32>
    %42 = arith.addf %40, %41 : vector<2x512xf32>
    %43 = vector.extract_strided_slice %42 {offsets = [0, 0], sizes = [2, 32], strides = [1, 1]} : vector<2x512xf32> to vector<2x32xf32>
    %44 = arith.negf %43 : vector<2x32xf32>
    %45 = math.exp %44 : vector<2x32xf32>
    %cst_16 = arith.constant 1.000000e+00 : f32
    %46 = vector.broadcast %cst_16 : f32 to vector<2x32xf32>
    %47 = arith.addf %46, %45 : vector<2x32xf32>
    %48 = arith.divf %46, %47 : vector<2x32xf32>
    %49 = vector.extract_strided_slice %42 {offsets = [0, 128], sizes = [2, 32], strides = [1, 1]} : vector<2x512xf32> to vector<2x32xf32>
    %50 = arith.negf %49 : vector<2x32xf32>
    %51 = math.exp %50 : vector<2x32xf32>
    %cst_17 = arith.constant 1.000000e+00 : f32
    %52 = vector.broadcast %cst_17 : f32 to vector<2x32xf32>
    %53 = arith.addf %52, %51 : vector<2x32xf32>
    %54 = arith.divf %52, %53 : vector<2x32xf32>
    %55 = vector.extract_strided_slice %42 {offsets = [0, 256], sizes = [2, 32], strides = [1, 1]} : vector<2x512xf32> to vector<2x32xf32>
    %56 = math.tanh %55 : vector<2x32xf32>
    %57 = vector.extract_strided_slice %42 {offsets = [0, 384], sizes = [2, 32], strides = [1, 1]} : vector<2x512xf32> to vector<2x32xf32>
    %58 = arith.negf %57 : vector<2x32xf32>
    %59 = math.exp %58 : vector<2x32xf32>
    %cst_18 = arith.constant 1.000000e+00 : f32
    %60 = vector.broadcast %cst_18 : f32 to vector<2x32xf32>
    %61 = arith.addf %60, %59 : vector<2x32xf32>
    %62 = arith.divf %60, %61 : vector<2x32xf32>
    %63 = arith.mulf %54, %33 : vector<2x32xf32>
    %64 = arith.mulf %48, %56 : vector<2x32xf32>
    %65 = arith.addf %63, %64 : vector<2x32xf32>
    %66 = math.tanh %65 : vector<2x32xf32>
    %67 = arith.mulf %62, %66 : vector<2x32xf32>
    %c0_i32_19 = arith.constant 0 : i32
    %68 = arith.cmpi eq, %arg0, %c0_i32_19 : i32
    %c2_i32 = arith.constant 2 : i32
    %c5_i32 = arith.constant 5 : i32
    %69 = arith.select %68, %c2_i32, %c5_i32 : i32
    %c0_20 = arith.constant 0 : index
    %70 = arith.index_cast %69 : i32 to index
    %c0_21 = arith.constant 0 : index
    %c0_22 = arith.constant 0 : index
    %71 = vector.load %arg1[%c0_20, %70, %c0_21, %c0_22] : memref<1x8x2x512xf32, #tpu.memory_space<vmem>>, vector<1x1x2x512xf32>
    %72 = vector.shape_cast %71 : vector<1x1x2x512xf32> to vector<2x512xf32>
    %cst_23 = arith.constant dense<0.000000e+00> : vector<2x512xf32>
    %73 = tpu.matmul %67, %1, %cst_23 {dimension_numbers = #tpu.dot_dimension_numbers<[1], [0], [0], [1], [0, 0, 1, 1], [], []>} : vector<2x32xf32>, vector<32x512xf32>, vector<2x512xf32> -> vector<2x512xf32>
    %74 = arith.addf %72, %73 : vector<2x512xf32>
    %75 = vector.extract_strided_slice %74 {offsets = [0, 0], sizes = [2, 32], strides = [1, 1]} : vector<2x512xf32> to vector<2x32xf32>
    %76 = arith.negf %75 : vector<2x32xf32>
    %77 = math.exp %76 : vector<2x32xf32>
    %cst_24 = arith.constant 1.000000e+00 : f32
    %78 = vector.broadcast %cst_24 : f32 to vector<2x32xf32>
    %79 = arith.addf %78, %77 : vector<2x32xf32>
    %80 = arith.divf %78, %79 : vector<2x32xf32>
    %81 = vector.extract_strided_slice %74 {offsets = [0, 128], sizes = [2, 32], strides = [1, 1]} : vector<2x512xf32> to vector<2x32xf32>
    %82 = arith.negf %81 : vector<2x32xf32>
    %83 = math.exp %82 : vector<2x32xf32>
    %cst_25 = arith.constant 1.000000e+00 : f32
    %84 = vector.broadcast %cst_25 : f32 to vector<2x32xf32>
    %85 = arith.addf %84, %83 : vector<2x32xf32>
    %86 = arith.divf %84, %85 : vector<2x32xf32>
    %87 = vector.extract_strided_slice %74 {offsets = [0, 256], sizes = [2, 32], strides = [1, 1]} : vector<2x512xf32> to vector<2x32xf32>
    %88 = math.tanh %87 : vector<2x32xf32>
    %89 = vector.extract_strided_slice %74 {offsets = [0, 384], sizes = [2, 32], strides = [1, 1]} : vector<2x512xf32> to vector<2x32xf32>
    %90 = arith.negf %89 : vector<2x32xf32>
    %91 = math.exp %90 : vector<2x32xf32>
    %cst_26 = arith.constant 1.000000e+00 : f32
    %92 = vector.broadcast %cst_26 : f32 to vector<2x32xf32>
    %93 = arith.addf %92, %91 : vector<2x32xf32>
    %94 = arith.divf %92, %93 : vector<2x32xf32>
    %95 = arith.mulf %86, %65 : vector<2x32xf32>
    %96 = arith.mulf %80, %88 : vector<2x32xf32>
    %97 = arith.addf %95, %96 : vector<2x32xf32>
    %98 = math.tanh %97 : vector<2x32xf32>
    %99 = arith.mulf %94, %98 : vector<2x32xf32>
    %c0_i32_27 = arith.constant 0 : i32
    %100 = arith.cmpi eq, %arg0, %c0_i32_27 : i32
    %c3_i32 = arith.constant 3 : i32
    %c4_i32 = arith.constant 4 : i32
    %101 = arith.select %100, %c3_i32, %c4_i32 : i32
    %c0_28 = arith.constant 0 : index
    %102 = arith.index_cast %101 : i32 to index
    %c0_29 = arith.constant 0 : index
    %c0_30 = arith.constant 0 : index
    %103 = vector.load %arg1[%c0_28, %102, %c0_29, %c0_30] : memref<1x8x2x512xf32, #tpu.memory_space<vmem>>, vector<1x1x2x512xf32>
    %104 = vector.shape_cast %103 : vector<1x1x2x512xf32> to vector<2x512xf32>
    %cst_31 = arith.constant dense<0.000000e+00> : vector<2x512xf32>
    %105 = tpu.matmul %99, %1, %cst_31 {dimension_numbers = #tpu.dot_dimension_numbers<[1], [0], [0], [1], [0, 0, 1, 1], [], []>} : vector<2x32xf32>, vector<32x512xf32>, vector<2x512xf32> -> vector<2x512xf32>
    %106 = arith.addf %104, %105 : vector<2x512xf32>
    %107 = vector.extract_strided_slice %106 {offsets = [0, 0], sizes = [2, 32], strides = [1, 1]} : vector<2x512xf32> to vector<2x32xf32>
    %108 = arith.negf %107 : vector<2x32xf32>
    %109 = math.exp %108 : vector<2x32xf32>
    %cst_32 = arith.constant 1.000000e+00 : f32
    %110 = vector.broadcast %cst_32 : f32 to vector<2x32xf32>
    %111 = arith.addf %110, %109 : vector<2x32xf32>
    %112 = arith.divf %110, %111 : vector<2x32xf32>
    %113 = vector.extract_strided_slice %106 {offsets = [0, 128], sizes = [2, 32], strides = [1, 1]} : vector<2x512xf32> to vector<2x32xf32>
    %114 = arith.negf %113 : vector<2x32xf32>
    %115 = math.exp %114 : vector<2x32xf32>
    %cst_33 = arith.constant 1.000000e+00 : f32
    %116 = vector.broadcast %cst_33 : f32 to vector<2x32xf32>
    %117 = arith.addf %116, %115 : vector<2x32xf32>
    %118 = arith.divf %116, %117 : vector<2x32xf32>
    %119 = vector.extract_strided_slice %106 {offsets = [0, 256], sizes = [2, 32], strides = [1, 1]} : vector<2x512xf32> to vector<2x32xf32>
    %120 = math.tanh %119 : vector<2x32xf32>
    %121 = vector.extract_strided_slice %106 {offsets = [0, 384], sizes = [2, 32], strides = [1, 1]} : vector<2x512xf32> to vector<2x32xf32>
    %122 = arith.negf %121 : vector<2x32xf32>
    %123 = math.exp %122 : vector<2x32xf32>
    %cst_34 = arith.constant 1.000000e+00 : f32
    %124 = vector.broadcast %cst_34 : f32 to vector<2x32xf32>
    %125 = arith.addf %124, %123 : vector<2x32xf32>
    %126 = arith.divf %124, %125 : vector<2x32xf32>
    %127 = arith.mulf %118, %97 : vector<2x32xf32>
    %128 = arith.mulf %112, %120 : vector<2x32xf32>
    %129 = arith.addf %127, %128 : vector<2x32xf32>
    %130 = math.tanh %129 : vector<2x32xf32>
    %131 = arith.mulf %126, %130 : vector<2x32xf32>
    %c0_i32_35 = arith.constant 0 : i32
    %132 = arith.cmpi eq, %arg0, %c0_i32_35 : i32
    %c4_i32_36 = arith.constant 4 : i32
    %c3_i32_37 = arith.constant 3 : i32
    %133 = arith.select %132, %c4_i32_36, %c3_i32_37 : i32
    %c0_38 = arith.constant 0 : index
    %134 = arith.index_cast %133 : i32 to index
    %c0_39 = arith.constant 0 : index
    %c0_40 = arith.constant 0 : index
    %135 = vector.load %arg1[%c0_38, %134, %c0_39, %c0_40] : memref<1x8x2x512xf32, #tpu.memory_space<vmem>>, vector<1x1x2x512xf32>
    %136 = vector.shape_cast %135 : vector<1x1x2x512xf32> to vector<2x512xf32>
    %cst_41 = arith.constant dense<0.000000e+00> : vector<2x512xf32>
    %137 = tpu.matmul %131, %1, %cst_41 {dimension_numbers = #tpu.dot_dimension_numbers<[1], [0], [0], [1], [0, 0, 1, 1], [], []>} : vector<2x32xf32>, vector<32x512xf32>, vector<2x512xf32> -> vector<2x512xf32>
    %138 = arith.addf %136, %137 : vector<2x512xf32>
    %139 = vector.extract_strided_slice %138 {offsets = [0, 0], sizes = [2, 32], strides = [1, 1]} : vector<2x512xf32> to vector<2x32xf32>
    %140 = arith.negf %139 : vector<2x32xf32>
    %141 = math.exp %140 : vector<2x32xf32>
    %cst_42 = arith.constant 1.000000e+00 : f32
    %142 = vector.broadcast %cst_42 : f32 to vector<2x32xf32>
    %143 = arith.addf %142, %141 : vector<2x32xf32>
    %144 = arith.divf %142, %143 : vector<2x32xf32>
    %145 = vector.extract_strided_slice %138 {offsets = [0, 128], sizes = [2, 32], strides = [1, 1]} : vector<2x512xf32> to vector<2x32xf32>
    %146 = arith.negf %145 : vector<2x32xf32>
    %147 = math.exp %146 : vector<2x32xf32>
    %cst_43 = arith.constant 1.000000e+00 : f32
    %148 = vector.broadcast %cst_43 : f32 to vector<2x32xf32>
    %149 = arith.addf %148, %147 : vector<2x32xf32>
    %150 = arith.divf %148, %149 : vector<2x32xf32>
    %151 = vector.extract_strided_slice %138 {offsets = [0, 256], sizes = [2, 32], strides = [1, 1]} : vector<2x512xf32> to vector<2x32xf32>
    %152 = math.tanh %151 : vector<2x32xf32>
    %153 = vector.extract_strided_slice %138 {offsets = [0, 384], sizes = [2, 32], strides = [1, 1]} : vector<2x512xf32> to vector<2x32xf32>
    %154 = arith.negf %153 : vector<2x32xf32>
    %155 = math.exp %154 : vector<2x32xf32>
    %cst_44 = arith.constant 1.000000e+00 : f32
    %156 = vector.broadcast %cst_44 : f32 to vector<2x32xf32>
    %157 = arith.addf %156, %155 : vector<2x32xf32>
    %158 = arith.divf %156, %157 : vector<2x32xf32>
    %159 = arith.mulf %150, %129 : vector<2x32xf32>
    %160 = arith.mulf %144, %152 : vector<2x32xf32>
    %161 = arith.addf %159, %160 : vector<2x32xf32>
    %162 = math.tanh %161 : vector<2x32xf32>
    %163 = arith.mulf %158, %162 : vector<2x32xf32>
    %c0_i32_45 = arith.constant 0 : i32
    %164 = arith.cmpi eq, %arg0, %c0_i32_45 : i32
    %c5_i32_46 = arith.constant 5 : i32
    %c2_i32_47 = arith.constant 2 : i32
    %165 = arith.select %164, %c5_i32_46, %c2_i32_47 : i32
    %c0_48 = arith.constant 0 : index
    %166 = arith.index_cast %165 : i32 to index
    %c0_49 = arith.constant 0 : index
    %c0_50 = arith.constant 0 : index
    %167 = vector.load %arg1[%c0_48, %166, %c0_49, %c0_50] : memref<1x8x2x512xf32, #tpu.memory_space<vmem>>, vector<1x1x2x512xf32>
    %168 = vector.shape_cast %167 : vector<1x1x2x512xf32> to vector<2x512xf32>
    %cst_51 = arith.constant dense<0.000000e+00> : vector<2x512xf32>
    %169 = tpu.matmul %163, %1, %cst_51 {dimension_numbers = #tpu.dot_dimension_numbers<[1], [0], [0], [1], [0, 0, 1, 1], [], []>} : vector<2x32xf32>, vector<32x512xf32>, vector<2x512xf32> -> vector<2x512xf32>
    %170 = arith.addf %168, %169 : vector<2x512xf32>
    %171 = vector.extract_strided_slice %170 {offsets = [0, 0], sizes = [2, 32], strides = [1, 1]} : vector<2x512xf32> to vector<2x32xf32>
    %172 = arith.negf %171 : vector<2x32xf32>
    %173 = math.exp %172 : vector<2x32xf32>
    %cst_52 = arith.constant 1.000000e+00 : f32
    %174 = vector.broadcast %cst_52 : f32 to vector<2x32xf32>
    %175 = arith.addf %174, %173 : vector<2x32xf32>
    %176 = arith.divf %174, %175 : vector<2x32xf32>
    %177 = vector.extract_strided_slice %170 {offsets = [0, 128], sizes = [2, 32], strides = [1, 1]} : vector<2x512xf32> to vector<2x32xf32>
    %178 = arith.negf %177 : vector<2x32xf32>
    %179 = math.exp %178 : vector<2x32xf32>
    %cst_53 = arith.constant 1.000000e+00 : f32
    %180 = vector.broadcast %cst_53 : f32 to vector<2x32xf32>
    %181 = arith.addf %180, %179 : vector<2x32xf32>
    %182 = arith.divf %180, %181 : vector<2x32xf32>
    %183 = vector.extract_strided_slice %170 {offsets = [0, 256], sizes = [2, 32], strides = [1, 1]} : vector<2x512xf32> to vector<2x32xf32>
    %184 = math.tanh %183 : vector<2x32xf32>
    %185 = vector.extract_strided_slice %170 {offsets = [0, 384], sizes = [2, 32], strides = [1, 1]} : vector<2x512xf32> to vector<2x32xf32>
    %186 = arith.negf %185 : vector<2x32xf32>
    %187 = math.exp %186 : vector<2x32xf32>
    %cst_54 = arith.constant 1.000000e+00 : f32
    %188 = vector.broadcast %cst_54 : f32 to vector<2x32xf32>
    %189 = arith.addf %188, %187 : vector<2x32xf32>
    %190 = arith.divf %188, %189 : vector<2x32xf32>
    %191 = arith.mulf %182, %161 : vector<2x32xf32>
    %192 = arith.mulf %176, %184 : vector<2x32xf32>
    %193 = arith.addf %191, %192 : vector<2x32xf32>
    %194 = math.tanh %193 : vector<2x32xf32>
    %195 = arith.mulf %190, %194 : vector<2x32xf32>
    %c0_i32_55 = arith.constant 0 : i32
    %196 = arith.cmpi eq, %arg0, %c0_i32_55 : i32
    %c6_i32_56 = arith.constant 6 : i32
    %c1_i32_57 = arith.constant 1 : i32
    %197 = arith.select %196, %c6_i32_56, %c1_i32_57 : i32
    %c0_58 = arith.constant 0 : index
    %198 = arith.index_cast %197 : i32 to index
    %c0_59 = arith.constant 0 : index
    %c0_60 = arith.constant 0 : index
    %199 = vector.load %arg1[%c0_58, %198, %c0_59, %c0_60] : memref<1x8x2x512xf32, #tpu.memory_space<vmem>>, vector<1x1x2x512xf32>
    %200 = vector.shape_cast %199 : vector<1x1x2x512xf32> to vector<2x512xf32>
    %cst_61 = arith.constant dense<0.000000e+00> : vector<2x512xf32>
    %201 = tpu.matmul %195, %1, %cst_61 {dimension_numbers = #tpu.dot_dimension_numbers<[1], [0], [0], [1], [0, 0, 1, 1], [], []>} : vector<2x32xf32>, vector<32x512xf32>, vector<2x512xf32> -> vector<2x512xf32>
    %202 = arith.addf %200, %201 : vector<2x512xf32>
    %203 = vector.extract_strided_slice %202 {offsets = [0, 0], sizes = [2, 32], strides = [1, 1]} : vector<2x512xf32> to vector<2x32xf32>
    %204 = arith.negf %203 : vector<2x32xf32>
    %205 = math.exp %204 : vector<2x32xf32>
    %cst_62 = arith.constant 1.000000e+00 : f32
    %206 = vector.broadcast %cst_62 : f32 to vector<2x32xf32>
    %207 = arith.addf %206, %205 : vector<2x32xf32>
    %208 = arith.divf %206, %207 : vector<2x32xf32>
    %209 = vector.extract_strided_slice %202 {offsets = [0, 128], sizes = [2, 32], strides = [1, 1]} : vector<2x512xf32> to vector<2x32xf32>
    %210 = arith.negf %209 : vector<2x32xf32>
    %211 = math.exp %210 : vector<2x32xf32>
    %cst_63 = arith.constant 1.000000e+00 : f32
    %212 = vector.broadcast %cst_63 : f32 to vector<2x32xf32>
    %213 = arith.addf %212, %211 : vector<2x32xf32>
    %214 = arith.divf %212, %213 : vector<2x32xf32>
    %215 = vector.extract_strided_slice %202 {offsets = [0, 256], sizes = [2, 32], strides = [1, 1]} : vector<2x512xf32> to vector<2x32xf32>
    %216 = math.tanh %215 : vector<2x32xf32>
    %217 = vector.extract_strided_slice %202 {offsets = [0, 384], sizes = [2, 32], strides = [1, 1]} : vector<2x512xf32> to vector<2x32xf32>
    %218 = arith.negf %217 : vector<2x32xf32>
    %219 = math.exp %218 : vector<2x32xf32>
    %cst_64 = arith.constant 1.000000e+00 : f32
    %220 = vector.broadcast %cst_64 : f32 to vector<2x32xf32>
    %221 = arith.addf %220, %219 : vector<2x32xf32>
    %222 = arith.divf %220, %221 : vector<2x32xf32>
    %223 = arith.mulf %214, %193 : vector<2x32xf32>
    %224 = arith.mulf %208, %216 : vector<2x32xf32>
    %225 = arith.addf %223, %224 : vector<2x32xf32>
    %226 = math.tanh %225 : vector<2x32xf32>
    %227 = arith.mulf %222, %226 : vector<2x32xf32>
    %c0_i32_65 = arith.constant 0 : i32
    %228 = arith.cmpi eq, %arg0, %c0_i32_65 : i32
    %c7_i32_66 = arith.constant 7 : i32
    %c0_i32_67 = arith.constant 0 : i32
    %229 = arith.select %228, %c7_i32_66, %c0_i32_67 : i32
    %c0_68 = arith.constant 0 : index
    %230 = arith.index_cast %229 : i32 to index
    %c0_69 = arith.constant 0 : index
    %c0_70 = arith.constant 0 : index
    %231 = vector.load %arg1[%c0_68, %230, %c0_69, %c0_70] : memref<1x8x2x512xf32, #tpu.memory_space<vmem>>, vector<1x1x2x512xf32>
    %232 = vector.shape_cast %231 : vector<1x1x2x512xf32> to vector<2x512xf32>
    %cst_71 = arith.constant dense<0.000000e+00> : vector<2x512xf32>
    %233 = tpu.matmul %227, %1, %cst_71 {dimension_numbers = #tpu.dot_dimension_numbers<[1], [0], [0], [1], [0, 0, 1, 1], [], []>} : vector<2x32xf32>, vector<32x512xf32>, vector<2x512xf32> -> vector<2x512xf32>
    %234 = arith.addf %232, %233 : vector<2x512xf32>
    %235 = vector.extract_strided_slice %234 {offsets = [0, 0], sizes = [2, 32], strides = [1, 1]} : vector<2x512xf32> to vector<2x32xf32>
    %236 = arith.negf %235 : vector<2x32xf32>
    %237 = math.exp %236 : vector<2x32xf32>
    %cst_72 = arith.constant 1.000000e+00 : f32
    %238 = vector.broadcast %cst_72 : f32 to vector<2x32xf32>
    %239 = arith.addf %238, %237 : vector<2x32xf32>
    %240 = arith.divf %238, %239 : vector<2x32xf32>
    %241 = vector.extract_strided_slice %234 {offsets = [0, 128], sizes = [2, 32], strides = [1, 1]} : vector<2x512xf32> to vector<2x32xf32>
    %242 = arith.negf %241 : vector<2x32xf32>
    %243 = math.exp %242 : vector<2x32xf32>
    %cst_73 = arith.constant 1.000000e+00 : f32
    %244 = vector.broadcast %cst_73 : f32 to vector<2x32xf32>
    %245 = arith.addf %244, %243 : vector<2x32xf32>
    %246 = arith.divf %244, %245 : vector<2x32xf32>
    %247 = vector.extract_strided_slice %234 {offsets = [0, 256], sizes = [2, 32], strides = [1, 1]} : vector<2x512xf32> to vector<2x32xf32>
    %248 = math.tanh %247 : vector<2x32xf32>
    %249 = vector.extract_strided_slice %234 {offsets = [0, 384], sizes = [2, 32], strides = [1, 1]} : vector<2x512xf32> to vector<2x32xf32>
    %250 = arith.negf %249 : vector<2x32xf32>
    %251 = math.exp %250 : vector<2x32xf32>
    %cst_74 = arith.constant 1.000000e+00 : f32
    %252 = vector.broadcast %cst_74 : f32 to vector<2x32xf32>
    %253 = arith.addf %252, %251 : vector<2x32xf32>
    %254 = arith.divf %252, %253 : vector<2x32xf32>
    %255 = arith.mulf %246, %225 : vector<2x32xf32>
    %256 = arith.mulf %240, %248 : vector<2x32xf32>
    %257 = arith.addf %255, %256 : vector<2x32xf32>
    %258 = math.tanh %257 : vector<2x32xf32>
    %259 = arith.mulf %254, %258 : vector<2x32xf32>
    %c0_75 = arith.constant 0 : index
    %c0_76 = arith.constant 0 : index
    %c0_77 = arith.constant 0 : index
    %260 = vector.load %arg3[%c0_75, %c0_76, %c0_77] : memref<1x2x32xf32, #tpu.memory_space<vmem>>, vector<1x2x32xf32>
    %261 = vector.shape_cast %260 : vector<1x2x32xf32> to vector<2x32xf32>
    %262 = vector.shape_cast %259 : vector<2x32xf32> to vector<1x2x32xf32>
    tpu.vector_store %arg3[%c0_75, %c0_76, %c0_77], %262 {strides = array<i32>} : memref<1x2x32xf32, #tpu.memory_space<vmem>>, vector<1x2x32xf32>,
    return
  }
  func.func @transform_0(%arg0: i32) -> (i32, i32, i32, i32) {
    %c0_i32 = arith.constant 0 : i32
    %c0_i32_0 = arith.constant 0 : i32
    %c0_i32_1 = arith.constant 0 : i32
    %c0_i32_2 = arith.constant 0 : i32
    return %arg0, %c0_i32, %c0_i32_0, %c0_i32_1 : i32, i32, i32, i32
  }
  func.func @transform_1(%arg0: i32) -> (i32, i32, i32) {
    %c0_i32 = arith.constant 0 : i32
    %c0_i32_0 = arith.constant 0 : i32
    %c0_i32_1 = arith.constant 0 : i32
    return %arg0, %c0_i32, %c0_i32_0 : i32, i32, i32
  }
  func.func @transform_2(%arg0: i32) -> (i32, i32, i32) {
    %c0_i32 = arith.constant 0 : i32
    %c0_i32_0 = arith.constant 0 : i32
    %c0_i32_1 = arith.constant 0 : i32
    return %arg0, %c0_i32, %c0_i32_0 : i32, i32, i32
  }
}

</mosaic_0001>

<llo_original>
// kernel: lstm_arch_forward.2
$region0: #{lstm_arch_forward.2}
  #allocation0 [shape = 'u32[]', space=smem, size = 0x4, offset = 0x4, fixed_abs, tag = 'smem constant byte address 0x4 - core index']
  #allocation1 [shape = 'u32[72,128]{1,0:T(1,128)}', space=vmem, size = 0x9000, scoped, tag = 'internal scratch']
  %s0 = inlined_call_operand.vmem [shape: f32[2,8,2,512], index: 0, kind: input, shape index: {}]
  %s1 = inlined_call_operand.vmem [shape: f32[2,32,512], index: 1, kind: input, shape index: {}]
  %s2 = inlined_call_operand.vmem [shape: f32[2,8,2,32], index: 2, kind: output, shape index: {}]
  %s3 = sld [smem:[#allocation0]]
  $region41: #{lstm_arch_forward.2} parent=0
    _
  %s5 = ssub.s32 1, %s3
  %s6 = scalar_select 0, %s5, %s3
  loop: start=0, step=1, limit=4
  $region2: #{lstm_arch_forward.2} parent=0 // loop_pre_header
    _
  $region3: #{lstm_arch_forward.2} parent=0 // loop_header
    %s8 = sphi 0, %s12
    %p9 = scmp.ge.s32.totalorder %s8, 4
    %s18 = sphi 0, %s20
    %s21 = sphi 0, %s18
    %s22 = sphi 0, %s21
    %s38 = sphi 0, %s22
    %s44 = sphi 0, %s46
    %s47 = sphi 0, %s44
    %s48 = sphi 0, %s47
    %s64 = sphi 0, %s48
    %s70 = sphi 0, %s72
    %s73 = sphi 0, %s70
    %s74 = sphi 0, %s73
    %s90 = sphi 0, %s74
  $region4: #{lstm_arch_forward.2} parent=0 // loop_header_branch
    %11 = sbr.rel (%p9) target = $region8
  $region5: #{lstm_arch_forward.2} parent=0 // loop_body
    %s13 = ssub.s32 %s8, 1
    %s14 = ssub.s32 %s8, 2
    %s15 = sadd.s32 %s8, 1
    %s16 = ssub.s32 %s8, %s15
    %p17 = scmp.eq.s32.totalorder %s16, 0
    %s19 = sadd.s32 %s18, 1
    %s20 = scalar_select %p17, %s18, %s19
    %p23 = pneg %p17
    %p24 = scmp.eq.s32.totalorder %s8, 1
    %p25 = por %p23, %p24
    %p26 = scmp.ne.s32.totalorder %s18, %s21
    %p27 = scmp.eq.s32.totalorder %s8, 0
    %p28 = por %p26, %p27
    %p29 = scmp.ne.s32.totalorder %s18, %s21
    %p30 = scmp.eq.s32.totalorder %s13, 1
    %p31 = por %p29, %p30
    %p32 = scmp.ne.s32.totalorder %s21, %s22
    %p33 = scmp.eq.s32.totalorder %s13, 0
    %p34 = por %p32, %p33
    %p35 = scmp.ne.s32.totalorder %s21, %s22
    %p36 = scmp.eq.s32.totalorder %s14, 1
    %p37 = por %p35, %p36
    %p39 = scmp.ne.s32.totalorder %s22, %s38
    %p40 = scmp.eq.s32.totalorder %s14, 0
    %p41 = por %p39, %p40
    %s42 = ssub.s32 %s8, %s15
    %p43 = scmp.eq.s32.totalorder %s42, 0
    %s45 = sadd.s32 %s44, 1
    %s46 = scalar_select %p43, %s44, %s45
    %p49 = pneg %p43
    %p50 = scmp.eq.s32.totalorder %s8, 1
    %p51 = por %p49, %p50
    %p52 = scmp.ne.s32.totalorder %s44, %s47
    %p53 = scmp.eq.s32.totalorder %s8, 0
    %p54 = por %p52, %p53
    %p55 = scmp.ne.s32.totalorder %s44, %s47
    %p56 = scmp.eq.s32.totalorder %s13, 1
    %p57 = por %p55, %p56
    %p58 = scmp.ne.s32.totalorder %s47, %s48
    %p59 = scmp.eq.s32.totalorder %s13, 0
    %p60 = por %p58, %p59
    %p61 = scmp.ne.s32.totalorder %s47, %s48
    %p62 = scmp.eq.s32.totalorder %s14, 1
    %p63 = por %p61, %p62
    %p65 = scmp.ne.s32.totalorder %s48, %s64
    %p66 = scmp.eq.s32.totalorder %s14, 0
    %p67 = por %p65, %p66
    %s68 = ssub.s32 %s8, %s15
    %p69 = scmp.eq.s32.totalorder %s68, 0
    %s71 = sadd.s32 %s70, 1
    %s72 = scalar_select %p69, %s70, %s71
    %p75 = pneg %p69
    %p76 = scmp.eq.s32.totalorder %s8, 1
    %p77 = por %p75, %p76
    %p78 = scmp.ne.s32.totalorder %s70, %s73
    %p79 = scmp.eq.s32.totalorder %s8, 0
    %p80 = por %p78, %p79
    %p81 = scmp.ne.s32.totalorder %s70, %s73
    %p82 = scmp.eq.s32.totalorder %s13, 1
    %p83 = por %p81, %p82
    %p84 = scmp.ne.s32.totalorder %s73, %s74
    %p85 = scmp.eq.s32.totalorder %s13, 0
    %p86 = por %p84, %p85
    %p87 = scmp.ne.s32.totalorder %s73, %s74
    %p88 = scmp.eq.s32.totalorder %s14, 1
    %p89 = por %p87, %p88
    %p91 = scmp.ne.s32.totalorder %s74, %s90
    %p92 = scmp.eq.s32.totalorder %s14, 0
    %p93 = por %p91, %p92
    %p94 = scmp.le.s32.totalorder 1, %s8
    %p95 = scmp.lt.s32.totalorder %s8, 3
    %p96 = pnand %p94, %p95
    %p97 = pneg %p96
    // Predicated region
    $region9: #{lstm_arch_forward.2} parent=5 // pred_check
      _
    $region10: #{lstm_arch_forward.2} parent=5 // pred_check_branch
      %99 = sbr.rel (%p96) target = $region12
    $region11: #{lstm_arch_forward.2} parent=5 // pred_region
      %s100 = ssub.s32 %s8, 1
    $region12: #{lstm_arch_forward.2} parent=5 // pred_fallthru
      _
    %p101 = scmp.lt.s32.totalorder %s8, 2
    // Predicated region
    $region13: #{lstm_arch_forward.2} parent=5 // pred_check
      %p102 = pneg %p101
    $region14: #{lstm_arch_forward.2} parent=5 // pred_check_branch
      %104 = sbr.rel (%p102) target = $region16
    $region15: #{lstm_arch_forward.2} parent=5 // pred_region
      // Predicated region
      $region17: #{lstm_arch_forward.2} parent=15 // pred_check
        %p105 = pneg %p28
      $region18: #{lstm_arch_forward.2} parent=15 // pred_check_branch
        %107 = sbr.rel (%p105) target = $region20
      $region19: #{lstm_arch_forward.2} parent=15 // pred_region
        %p108 = scmp.lt.s32.totalorder %s8, 1
        %s109 = scalar_select %p108, %s8, 1
        %s110 = smul.addr %s109, 32
        %s111 = smul.addr %s110, 2
        %s112 = scalar_lea.vmem %s0, %s111
      $region20: #{lstm_arch_forward.2} parent=15 // pred_fallthru
        _
      // Predicated region
      $region21: #{lstm_arch_forward.2} parent=15 // pred_check
        %p113 = pneg %p54
      $region22: #{lstm_arch_forward.2} parent=15 // pred_check_branch
        %115 = sbr.rel (%p113) target = $region24
      $region23: #{lstm_arch_forward.2} parent=15 // pred_region
        %p116 = scmp.lt.s32.totalorder %s8, 1
        %s117 = scalar_select %p116, %s8, 1
        %s118 = smul.addr %s117, 16
        %s119 = smul.addr %s118, 8
        %s120 = scalar_lea.vmem %s1, %s119
      $region24: #{lstm_arch_forward.2} parent=15 // pred_fallthru
        _
    $region16: #{lstm_arch_forward.2} parent=5 // pred_fallthru
      _
    %p121 = scmp.le.s32.totalorder 1, %s8
    %p122 = scmp.lt.s32.totalorder %s8, 3
    %p123 = pnand %p121, %p122
    %p124 = pneg %p123
    // Predicated region
    $region25: #{lstm_arch_forward.2} parent=5 // pred_check
      _
    $region26: #{lstm_arch_forward.2} parent=5 // pred_check_branch
      %126 = sbr.rel (%p123) target = $region28
    $region27: #{lstm_arch_forward.2} parent=5 // pred_region
      %s127 = ssub.s32 %s8, 1
      %p128 = scmp.lt.s32.totalorder %s13, 1
      %s129 = scalar_select %p128, %s13, 1
      %s130 = smul.addr %s129, 32
      %s131 = smul.addr %s130, 2
      %s132 = scalar_lea.vmem %s0, %s131
      %p133 = pneg %p34
      %p134 = pneg %p31
      %p135 = scmp.lt.s32.totalorder %s13, 1
      %s136 = scalar_select %p135, %s13, 1
      %s137 = smul.addr %s136, 16
      %s138 = smul.addr %s137, 8
      %s139 = scalar_lea.vmem %s1, %s138
      %p140 = pneg %p60
      %p141 = pneg %p57
      %p142 = pneg %p86
      %p143 = pneg %p83
      %p144 = scmp.lt.s32.totalorder %s13, 1
      %s145 = scalar_select %p144, %s13, 1
      %s146 = smul.addr %s145, 8
      %s147 = smul.addr %s146, 2
      %s148 = scalar_lea.vmem %s2, %s147
      %p149 = scmp.lt.s32.totalorder %s13, 1
      %s150 = scalar_select %p149, %s13, 1
      %s151 = smul.addr %s150, 32
      %s152 = smul.addr %s151, 2
      %s153 = scalar_lea.vmem %s0, %s152
      %p154 = scmp.lt.s32.totalorder %s13, 1
      %s155 = scalar_select %p154, %s13, 1
      %s156 = smul.addr %s155, 16
      %s157 = smul.addr %s156, 8
      %s158 = scalar_lea.vmem %s1, %s157
      %p159 = scmp.lt.s32.totalorder %s13, 1
      %s160 = scalar_select %p159, %s13, 1
      %s161 = smul.addr %s160, 8
      %s162 = smul.addr %s161, 2
      %s163 = scalar_lea.vmem %s2, %s162
      %v164 = vld [vmem:[%s158] sm:$0xff]
      %v165 = vld [vmem:[%s158 + $0x8] sm:$0xff]
      %v166 = vld [vmem:[%s158 + $0x10] sm:$0xff]
      %v167 = vld [vmem:[%s158 + $0x18] sm:$0xff]
      %v168 = vld [vmem:[%s158 + $0x20] sm:$0xff]
      %v169 = vld [vmem:[%s158 + $0x28] sm:$0xff]
      %v170 = vld [vmem:[%s158 + $0x30] sm:$0xff]
      %v171 = vld [vmem:[%s158 + $0x38] sm:$0xff]
      %v172 = vld [vmem:[%s158 + $0x40] sm:$0xff]
      %v173 = vld [vmem:[%s158 + $0x48] sm:$0xff]
      %v174 = vld [vmem:[%s158 + $0x50] sm:$0xff]
      %v175 = vld [vmem:[%s158 + $0x58] sm:$0xff]
      %v176 = vld [vmem:[%s158 + $0x60] sm:$0xff]
      %v177 = vld [vmem:[%s158 + $0x68] sm:$0xff]
      %v178 = vld [vmem:[%s158 + $0x70] sm:$0xff]
      %v179 = vld [vmem:[%s158 + $0x78] sm:$0xff]
      %p180 = scmp.eq.s32.totalorder %s13, 0
      %s181 = scalar_select %p180, 0, 7
      %s182 = smul.u32 %s181, 4
      %s183 = smul.addr %s182, 2
      %s184 = scalar_lea.vmem %s153, %s183
      %v185 = vld [vmem:[%s184] sm:$0xff]
      %vm186 = vcmask 261120
      %v188 = vsel %vm186, 0.0, 0
      %190 = vmatpush.msra.mxu0 0.0
      %191 = vmatpush.msra.mxu0 0.0
      %192 = vmatpush.msra.mxu0 0.0
      %193 = vmatpush.msra.mxu0 0.0
      %194 = vmatpush.msra.mxu0 0.0
      %195 = vmatpush.msra.mxu0 0.0
      %196 = vmatpush.msra.mxu0 0.0
      %197 = vmatpush.msra.mxu0 0.0
      %198 = vmatpush.msra.mxu0 0.0
      %199 = vmatpush.msra.mxu0 0.0
      %200 = vmatpush.msra.mxu0 0.0
      %201 = vmatpush.msra.mxu0 0.0
      %202 = vmatpush.msra.mxu0 %v176
      %203 = vmatpush.msra.mxu0 %v172
      %204 = vmatpush.msra.mxu0 %v168
      %205 = vmatpush.msra.mxu0 %v164
      %206 = vmatmul.f32.gmra.mxu0 %v188
      %v207 = vpop.f32.mrf.mxu0
      %v208 = vadd.f32 0.0, %v207
      %209 = vdwg.mxu0
      %210 = vmatpush.msra.mxu0 0.0
      %211 = vmatpush.msra.mxu0 0.0
      %212 = vmatpush.msra.mxu0 0.0
      %213 = vmatpush.msra.mxu0 0.0
      %214 = vmatpush.msra.mxu0 0.0
      %215 = vmatpush.msra.mxu0 0.0
      %216 = vmatpush.msra.mxu0 0.0
      %217 = vmatpush.msra.mxu0 0.0
      %218 = vmatpush.msra.mxu0 0.0
      %219 = vmatpush.msra.mxu0 0.0
      %220 = vmatpush.msra.mxu0 0.0
      %221 = vmatpush.msra.mxu0 0.0
      %222 = vmatpush.msra.mxu0 %v177
      %223 = vmatpush.msra.mxu0 %v173
      %224 = vmatpush.msra.mxu0 %v169
      %225 = vmatpush.msra.mxu0 %v165
      %226 = vmatmul.f32.gmra.mxu0 %v188
      %v227 = vpop.f32.mrf.mxu0
      %v228 = vadd.f32 0.0, %v227
      %229 = vdwg.mxu0
      %230 = vmatpush.msra.mxu0 0.0
      %231 = vmatpush.msra.mxu0 0.0
      %232 = vmatpush.msra.mxu0 0.0
      %233 = vmatpush.msra.mxu0 0.0
      %234 = vmatpush.msra.mxu0 0.0
      %235 = vmatpush.msra.mxu0 0.0
      %236 = vmatpush.msra.mxu0 0.0
      %237 = vmatpush.msra.mxu0 0.0
      %238 = vmatpush.msra.mxu0 0.0
      %239 = vmatpush.msra.mxu0 0.0
      %240 = vmatpush.msra.mxu0 0.0
      %241 = vmatpush.msra.mxu0 0.0
      %242 = vmatpush.msra.mxu0 %v178
      %243 = vmatpush.msra.mxu0 %v174
      %244 = vmatpush.msra.mxu0 %v170
      %245 = vmatpush.msra.mxu0 %v166
      %246 = vmatmul.f32.gmra.mxu0 %v188
      %v247 = vpop.f32.mrf.mxu0
      %v248 = vadd.f32 0.0, %v247
      %249 = vdwg.mxu0
      %250 = vmatpush.msra.mxu0 0.0
      %251 = vmatpush.msra.mxu0 0.0
      %252 = vmatpush.msra.mxu0 0.0
      %253 = vmatpush.msra.mxu0 0.0
      %254 = vmatpush.msra.mxu0 0.0
      %255 = vmatpush.msra.mxu0 0.0
      %256 = vmatpush.msra.mxu0 0.0
      %257 = vmatpush.msra.mxu0 0.0
      %258 = vmatpush.msra.mxu0 0.0
      %259 = vmatpush.msra.mxu0 0.0
      %260 = vmatpush.msra.mxu0 0.0
      %261 = vmatpush.msra.mxu0 0.0
      %262 = vmatpush.msra.mxu0 %v179
      %263 = vmatpush.msra.mxu0 %v175
      %264 = vmatpush.msra.mxu0 %v171
      %265 = vmatpush.msra.mxu0 %v167
      %266 = vmatmul.f32.gmra.mxu0 %v188
      %v267 = vpop.f32.mrf.mxu0
      %v268 = vadd.f32 0.0, %v267
      %269 = vdwg.mxu0
      %v274 = vrot.slane %v228, 6
      %v275 = vrot.slane %v248, 4
      %v276 = vrot.slane %v268, 2
      %vm277 = vcmask 1041408
      %v278 = vsel %vm277, %v208, %v274
      %vm279 = vcmask 1045508
      %v280 = vsel %vm279, %v275, %v276
      %vm281 = vcmask 1043456
      %v282 = vsel %vm281, %v278, %v280
      %v284 = vadd.f32 %v185, %v282
      %v285 = vxor.u32 %v284, 2147483648
      %v286 = vmul.f32 %v285, 1.442695
      %v287 = vpow.pop %v286
      %v288 = vadd.f32 %v287, 1.0
      %v289 = vrcp.pop %v288
      %v290 = vmul.f32 %v288, %v289
      %v291 = vsub.f32 1.0, %v290
      %v292 = vmul.f32 %v289, %v291
      %v293 = vadd.f32 %v289, %v292
      %vm294 = vweird.f32 %v288
      %vm295 = vweird.f32 %v289
      %vm296 = vmor %vm294, %vm295
      %v297 = vsel %vm296, %v289, %v293
      %v298 = vand.u32 2147483647, %v288
      %vm299 = vcmp.eq.f32.partialorder %v298, 8.507059e+37
      %v300 = vand.u32 %v288, 2147483648
      %v301 = vor.u32 1.1754944e-38, %v300
      %v302 = vsel %vm299, %v301, %v297
      %v303 = vmul.f32 1.0, %v302
      %v305 = vrot.slane %v284, 2
      %v307 = vxor.u32 %v305, 2147483648
      %v308 = vmul.f32 %v307, 1.442695
      %v309 = vpow.pop %v308
      %v310 = vadd.f32 %v309, 1.0
      %v311 = vrcp.pop %v310
      %v312 = vmul.f32 %v310, %v311
      %v313 = vsub.f32 1.0, %v312
      %v314 = vmul.f32 %v311, %v313
      %v315 = vadd.f32 %v311, %v314
      %vm316 = vweird.f32 %v310
      %vm317 = vweird.f32 %v311
      %vm318 = vmor %vm316, %vm317
      %v319 = vsel %vm318, %v311, %v315
      %v320 = vand.u32 2147483647, %v310
      %vm321 = vcmp.eq.f32.partialorder %v320, 8.507059e+37
      %v322 = vand.u32 %v310, 2147483648
      %v323 = vor.u32 1.1754944e-38, %v322
      %v324 = vsel %vm321, %v323, %v319
      %v325 = vmul.f32 1.0, %v324
      %v326 = vrot.slane %v284, 4
      %v328 = vtanh.pop %v326
      %v329 = vrot.slane %v284, 6
      %v331 = vxor.u32 %v329, 2147483648
      %v332 = vmul.f32 %v331, 1.442695
      %v333 = vpow.pop %v332
      %v334 = vadd.f32 %v333, 1.0
      %v335 = vrcp.pop %v334
      %v336 = vmul.f32 %v334, %v335
      %v337 = vsub.f32 1.0, %v336
      %v338 = vmul.f32 %v335, %v337
      %v339 = vadd.f32 %v335, %v338
      %vm340 = vweird.f32 %v334
      %vm341 = vweird.f32 %v335
      %vm342 = vmor %vm340, %vm341
      %v343 = vsel %vm342, %v335, %v339
      %v344 = vand.u32 2147483647, %v334
      %vm345 = vcmp.eq.f32.partialorder %v344, 8.507059e+37
      %v346 = vand.u32 %v334, 2147483648
      %v347 = vor.u32 1.1754944e-38, %v346
      %v348 = vsel %vm345, %v347, %v343
      %v349 = vmul.f32 1.0, %v348
      %v350 = vmul.f32 %v325, 0.0
      %v351 = vmul.f32 %v303, %v328
      %v352 = vadd.f32 %v350, %v351
      %v353 = vtanh.pop %v352
      %v354 = vmul.f32 %v349, %v353
      %s355 = smul.u32 %s181, 2
      %s356 = scalar_lea.vmem %s163, %s355
      %vm357 = vcmask 254976
      %358 = vst.msk [vmem:[%s356] sm:$0x3] %vm357, %v354
      %s359 = scalar_select %p180, 1, 6
      %s360 = smul.u32 %s359, 4
      %s361 = smul.addr %s360, 2
      %s362 = scalar_lea.vmem %s153, %s361
      %v363 = vld [vmem:[%s362] sm:$0xff]
      %v365 = vsel %vm186, %v354, 0
      %367 = vmatpush.msra.mxu0 0.0
      %368 = vmatpush.msra.mxu0 0.0
      %369 = vmatpush.msra.mxu0 0.0
      %370 = vmatpush.msra.mxu0 0.0
      %371 = vmatpush.msra.mxu0 0.0
      %372 = vmatpush.msra.mxu0 0.0
      %373 = vmatpush.msra.mxu0 0.0
      %374 = vmatpush.msra.mxu0 0.0
      %375 = vmatpush.msra.mxu0 0.0
      %376 = vmatpush.msra.mxu0 0.0
      %377 = vmatpush.msra.mxu0 0.0
      %378 = vmatpush.msra.mxu0 0.0
      %379 = vmatpush.msra.mxu0 %v176
      %380 = vmatpush.msra.mxu0 %v172
      %381 = vmatpush.msra.mxu0 %v168
      %382 = vmatpush.msra.mxu0 %v164
      %383 = vmatmul.f32.gmra.mxu0 %v365
      %v384 = vpop.f32.mrf.mxu0
      %v385 = vadd.f32 0.0, %v384
      %386 = vdwg.mxu0
      %387 = vmatpush.msra.mxu0 0.0
      %388 = vmatpush.msra.mxu0 0.0
      %389 = vmatpush.msra.mxu0 0.0
      %390 = vmatpush.msra.mxu0 0.0
      %391 = vmatpush.msra.mxu0 0.0
      %392 = vmatpush.msra.mxu0 0.0
      %393 = vmatpush.msra.mxu0 0.0
      %394 = vmatpush.msra.mxu0 0.0
      %395 = vmatpush.msra.mxu0 0.0
      %396 = vmatpush.msra.mxu0 0.0
      %397 = vmatpush.msra.mxu0 0.0
      %398 = vmatpush.msra.mxu0 0.0
      %399 = vmatpush.msra.mxu0 %v177
      %400 = vmatpush.msra.mxu0 %v173
      %401 = vmatpush.msra.mxu0 %v169
      %402 = vmatpush.msra.mxu0 %v165
      %403 = vmatmul.f32.gmra.mxu0 %v365
      %v404 = vpop.f32.mrf.mxu0
      %v405 = vadd.f32 0.0, %v404
      %406 = vdwg.mxu0
      %407 = vmatpush.msra.mxu0 0.0
      %408 = vmatpush.msra.mxu0 0.0
      %409 = vmatpush.msra.mxu0 0.0
      %410 = vmatpush.msra.mxu0 0.0
      %411 = vmatpush.msra.mxu0 0.0
      %412 = vmatpush.msra.mxu0 0.0
      %413 = vmatpush.msra.mxu0 0.0
      %414 = vmatpush.msra.mxu0 0.0
      %415 = vmatpush.msra.mxu0 0.0
      %416 = vmatpush.msra.mxu0 0.0
      %417 = vmatpush.msra.mxu0 0.0
      %418 = vmatpush.msra.mxu0 0.0
      %419 = vmatpush.msra.mxu0 %v178
      %420 = vmatpush.msra.mxu0 %v174
      %421 = vmatpush.msra.mxu0 %v170
      %422 = vmatpush.msra.mxu0 %v166
      %423 = vmatmul.f32.gmra.mxu0 %v365
      %v424 = vpop.f32.mrf.mxu0
      %v425 = vadd.f32 0.0, %v424
      %426 = vdwg.mxu0
      %427 = vmatpush.msra.mxu0 0.0
      %428 = vmatpush.msra.mxu0 0.0
      %429 = vmatpush.msra.mxu0 0.0
      %430 = vmatpush.msra.mxu0 0.0
      %431 = vmatpush.msra.mxu0 0.0
      %432 = vmatpush.msra.mxu0 0.0
      %433 = vmatpush.msra.mxu0 0.0
      %434 = vmatpush.msra.mxu0 0.0
      %435 = vmatpush.msra.mxu0 0.0
      %436 = vmatpush.msra.mxu0 0.0
      %437 = vmatpush.msra.mxu0 0.0
      %438 = vmatpush.msra.mxu0 0.0
      %439 = vmatpush.msra.mxu0 %v179
      %440 = vmatpush.msra.mxu0 %v175
      %441 = vmatpush.msra.mxu0 %v171
      %442 = vmatpush.msra.mxu0 %v167
      %443 = vmatmul.f32.gmra.mxu0 %v365
      %v444 = vpop.f32.mrf.mxu0
      %v445 = vadd.f32 0.0, %v444
      %446 = vdwg.mxu0
      %v451 = vrot.slane %v405, 6
      %v452 = vrot.slane %v425, 4
      %v453 = vrot.slane %v445, 2
      %v454 = vsel %vm277, %v385, %v451
      %v455 = vsel %vm279, %v452, %v453
      %v456 = vsel %vm281, %v454, %v455
      %v458 = vadd.f32 %v363, %v456
      %v459 = vxor.u32 %v458, 2147483648
      %v460 = vmul.f32 %v459, 1.442695
      %v461 = vpow.pop %v460
      %v462 = vadd.f32 %v461, 1.0
      %v463 = vrcp.pop %v462
      %v464 = vmul.f32 %v462, %v463
      %v465 = vsub.f32 1.0, %v464
      %v466 = vmul.f32 %v463, %v465
      %v467 = vadd.f32 %v463, %v466
      %vm468 = vweird.f32 %v462
      %vm469 = vweird.f32 %v463
      %vm470 = vmor %vm468, %vm469
      %v471 = vsel %vm470, %v463, %v467
      %v472 = vand.u32 2147483647, %v462
      %vm473 = vcmp.eq.f32.partialorder %v472, 8.507059e+37
      %v474 = vand.u32 %v462, 2147483648
      %v475 = vor.u32 1.1754944e-38, %v474
      %v476 = vsel %vm473, %v475, %v471
      %v477 = vmul.f32 1.0, %v476
      %v479 = vrot.slane %v458, 2
      %v481 = vxor.u32 %v479, 2147483648
      %v482 = vmul.f32 %v481, 1.442695
      %v483 = vpow.pop %v482
      %v484 = vadd.f32 %v483, 1.0
      %v485 = vrcp.pop %v484
      %v486 = vmul.f32 %v484, %v485
      %v487 = vsub.f32 1.0, %v486
      %v488 = vmul.f32 %v485, %v487
      %v489 = vadd.f32 %v485, %v488
      %vm490 = vweird.f32 %v484
      %vm491 = vweird.f32 %v485
      %vm492 = vmor %vm490, %vm491
      %v493 = vsel %vm492, %v485, %v489
      %v494 = vand.u32 2147483647, %v484
      %vm495 = vcmp.eq.f32.partialorder %v494, 8.507059e+37
      %v496 = vand.u32 %v484, 2147483648
      %v497 = vor.u32 1.1754944e-38, %v496
      %v498 = vsel %vm495, %v497, %v493
      %v499 = vmul.f32 1.0, %v498
      %v500 = vrot.slane %v458, 4
      %v502 = vtanh.pop %v500
      %v503 = vrot.slane %v458, 6
      %v505 = vxor.u32 %v503, 2147483648
      %v506 = vmul.f32 %v505, 1.442695
      %v507 = vpow.pop %v506
      %v508 = vadd.f32 %v507, 1.0
      %v509 = vrcp.pop %v508
      %v510 = vmul.f32 %v508, %v509
      %v511 = vsub.f32 1.0, %v510
      %v512 = vmul.f32 %v509, %v511
      %v513 = vadd.f32 %v509, %v512
      %vm514 = vweird.f32 %v508
      %vm515 = vweird.f32 %v509
      %vm516 = vmor %vm514, %vm515
      %v517 = vsel %vm516, %v509, %v513
      %v518 = vand.u32 2147483647, %v508
      %vm519 = vcmp.eq.f32.partialorder %v518, 8.507059e+37
      %v520 = vand.u32 %v508, 2147483648
      %v521 = vor.u32 1.1754944e-38, %v520
      %v522 = vsel %vm519, %v521, %v517
      %v523 = vmul.f32 1.0, %v522
      %v524 = vmul.f32 %v499, %v352
      %v525 = vmul.f32 %v477, %v502
      %v526 = vadd.f32 %v524, %v525
      %v527 = vtanh.pop %v526
      %v528 = vmul.f32 %v523, %v527
      %s529 = smul.u32 %s359, 2
      %s530 = scalar_lea.vmem %s163, %s529
      %531 = vst.msk [vmem:[%s530] sm:$0x3] %vm357, %v528
      %s532 = scalar_select %p180, 2, 5
      %s533 = smul.u32 %s532, 4
      %s534 = smul.addr %s533, 2
      %s535 = scalar_lea.vmem %s153, %s534
      %v536 = vld [vmem:[%s535] sm:$0xff]
      %v538 = vsel %vm186, %v528, 0
      %540 = vmatpush.msra.mxu0 0.0
      %541 = vmatpush.msra.mxu0 0.0
      %542 = vmatpush.msra.mxu0 0.0
      %543 = vmatpush.msra.mxu0 0.0
      %544 = vmatpush.msra.mxu0 0.0
      %545 = vmatpush.msra.mxu0 0.0
      %546 = vmatpush.msra.mxu0 0.0
      %547 = vmatpush.msra.mxu0 0.0
      %548 = vmatpush.msra.mxu0 0.0
      %549 = vmatpush.msra.mxu0 0.0
      %550 = vmatpush.msra.mxu0 0.0
      %551 = vmatpush.msra.mxu0 0.0
      %552 = vmatpush.msra.mxu0 %v176
      %553 = vmatpush.msra.mxu0 %v172
      %554 = vmatpush.msra.mxu0 %v168
      %555 = vmatpush.msra.mxu0 %v164
      %556 = vmatmul.f32.gmra.mxu0 %v538
      %v557 = vpop.f32.mrf.mxu0
      %v558 = vadd.f32 0.0, %v557
      %559 = vdwg.mxu0
      %560 = vmatpush.msra.mxu0 0.0
      %561 = vmatpush.msra.mxu0 0.0
      %562 = vmatpush.msra.mxu0 0.0
      %563 = vmatpush.msra.mxu0 0.0
      %564 = vmatpush.msra.mxu0 0.0
      %565 = vmatpush.msra.mxu0 0.0
      %566 = vmatpush.msra.mxu0 0.0
      %567 = vmatpush.msra.mxu0 0.0
      %568 = vmatpush.msra.mxu0 0.0
      %569 = vmatpush.msra.mxu0 0.0
      %570 = vmatpush.msra.mxu0 0.0
      %571 = vmatpush.msra.mxu0 0.0
      %572 = vmatpush.msra.mxu0 %v177
      %573 = vmatpush.msra.mxu0 %v173
      %574 = vmatpush.msra.mxu0 %v169
      %575 = vmatpush.msra.mxu0 %v165
      %576 = vmatmul.f32.gmra.mxu0 %v538
      %v577 = vpop.f32.mrf.mxu0
      %v578 = vadd.f32 0.0, %v577
      %579 = vdwg.mxu0
      %580 = vmatpush.msra.mxu0 0.0
      %581 = vmatpush.msra.mxu0 0.0
      %582 = vmatpush.msra.mxu0 0.0
      %583 = vmatpush.msra.mxu0 0.0
      %584 = vmatpush.msra.mxu0 0.0
      %585 = vmatpush.msra.mxu0 0.0
      %586 = vmatpush.msra.mxu0 0.0
      %587 = vmatpush.msra.mxu0 0.0
      %588 = vmatpush.msra.mxu0 0.0
      %589 = vmatpush.msra.mxu0 0.0
      %590 = vmatpush.msra.mxu0 0.0
      %591 = vmatpush.msra.mxu0 0.0
      %592 = vmatpush.msra.mxu0 %v178
      %593 = vmatpush.msra.mxu0 %v174
      %594 = vmatpush.msra.mxu0 %v170
      %595 = vmatpush.msra.mxu0 %v166
      %596 = vmatmul.f32.gmra.mxu0 %v538
      %v597 = vpop.f32.mrf.mxu0
      %v598 = vadd.f32 0.0, %v597
      %599 = vdwg.mxu0
      %600 = vmatpush.msra.mxu0 0.0
      %601 = vmatpush.msra.mxu0 0.0
      %602 = vmatpush.msra.mxu0 0.0
      %603 = vmatpush.msra.mxu0 0.0
      %604 = vmatpush.msra.mxu0 0.0
      %605 = vmatpush.msra.mxu0 0.0
      %606 = vmatpush.msra.mxu0 0.0
      %607 = vmatpush.msra.mxu0 0.0
      %608 = vmatpush.msra.mxu0 0.0
      %609 = vmatpush.msra.mxu0 0.0
      %610 = vmatpush.msra.mxu0 0.0
      %611 = vmatpush.msra.mxu0 0.0
      %612 = vmatpush.msra.mxu0 %v179
      %613 = vmatpush.msra.mxu0 %v175
      %614 = vmatpush.msra.mxu0 %v171
      %615 = vmatpush.msra.mxu0 %v167
      %616 = vmatmul.f32.gmra.mxu0 %v538
      %v617 = vpop.f32.mrf.mxu0
      %v618 = vadd.f32 0.0, %v617
      %619 = vdwg.mxu0
      %v624 = vrot.slane %v578, 6
      %v625 = vrot.slane %v598, 4
      %v626 = vrot.slane %v618, 2
      %v627 = vsel %vm277, %v558, %v624
      %v628 = vsel %vm279, %v625, %v626
      %v629 = vsel %vm281, %v627, %v628
      %v631 = vadd.f32 %v536, %v629
      %v632 = vxor.u32 %v631, 2147483648
      %v633 = vmul.f32 %v632, 1.442695
      %v634 = vpow.pop %v633
      %v635 = vadd.f32 %v634, 1.0
      %v636 = vrcp.pop %v635
      %v637 = vmul.f32 %v635, %v636
      %v638 = vsub.f32 1.0, %v637
      %v639 = vmul.f32 %v636, %v638
      %v640 = vadd.f32 %v636, %v639
      %vm641 = vweird.f32 %v635
      %vm642 = vweird.f32 %v636
      %vm643 = vmor %vm641, %vm642
      %v644 = vsel %vm643, %v636, %v640
      %v645 = vand.u32 2147483647, %v635
      %vm646 = vcmp.eq.f32.partialorder %v645, 8.507059e+37
      %v647 = vand.u32 %v635, 2147483648
      %v648 = vor.u32 1.1754944e-38, %v647
      %v649 = vsel %vm646, %v648, %v644
      %v650 = vmul.f32 1.0, %v649
      %v652 = vrot.slane %v631, 2
      %v654 = vxor.u32 %v652, 2147483648
      %v655 = vmul.f32 %v654, 1.442695
      %v656 = vpow.pop %v655
      %v657 = vadd.f32 %v656, 1.0
      %v658 = vrcp.pop %v657
      %v659 = vmul.f32 %v657, %v658
      %v660 = vsub.f32 1.0, %v659
      %v661 = vmul.f32 %v658, %v660
      %v662 = vadd.f32 %v658, %v661
      %vm663 = vweird.f32 %v657
      %vm664 = vweird.f32 %v658
      %vm665 = vmor %vm663, %vm664
      %v666 = vsel %vm665, %v658, %v662
      %v667 = vand.u32 2147483647, %v657
      %vm668 = vcmp.eq.f32.partialorder %v667, 8.507059e+37
      %v669 = vand.u32 %v657, 2147483648
      %v670 = vor.u32 1.1754944e-38, %v669
      %v671 = vsel %vm668, %v670, %v666
      %v672 = vmul.f32 1.0, %v671
      %v673 = vrot.slane %v631, 4
      %v675 = vtanh.pop %v673
      %v676 = vrot.slane %v631, 6
      %v678 = vxor.u32 %v676, 2147483648
      %v679 = vmul.f32 %v678, 1.442695
      %v680 = vpow.pop %v679
      %v681 = vadd.f32 %v680, 1.0
      %v682 = vrcp.pop %v681
      %v683 = vmul.f32 %v681, %v682
      %v684 = vsub.f32 1.0, %v683
      %v685 = vmul.f32 %v682, %v684
      %v686 = vadd.f32 %v682, %v685
      %vm687 = vweird.f32 %v681
      %vm688 = vweird.f32 %v682
      %vm689 = vmor %vm687, %vm688
      %v690 = vsel %vm689, %v682, %v686
      %v691 = vand.u32 2147483647, %v681
      %vm692 = vcmp.eq.f32.partialorder %v691, 8.507059e+37
      %v693 = vand.u32 %v681, 2147483648
      %v694 = vor.u32 1.1754944e-38, %v693
      %v695 = vsel %vm692, %v694, %v690
      %v696 = vmul.f32 1.0, %v695
      %v697 = vmul.f32 %v672, %v526
      %v698 = vmul.f32 %v650, %v675
      %v699 = vadd.f32 %v697, %v698
      %v700 = vtanh.pop %v699
      %v701 = vmul.f32 %v696, %v700
      %s702 = smul.u32 %s532, 2
      %s703 = scalar_lea.vmem %s163, %s702
      %704 = vst.msk [vmem:[%s703] sm:$0x3] %vm357, %v701
      %s705 = scalar_select %p180, 3, 4
      %s706 = smul.u32 %s705, 4
      %s707 = smul.addr %s706, 2
      %s708 = scalar_lea.vmem %s153, %s707
      %v709 = vld [vmem:[%s708] sm:$0xff]
      %v711 = vsel %vm186, %v701, 0
      %713 = vmatpush.msra.mxu0 0.0
      %714 = vmatpush.msra.mxu0 0.0
      %715 = vmatpush.msra.mxu0 0.0
      %716 = vmatpush.msra.mxu0 0.0
      %717 = vmatpush.msra.mxu0 0.0
      %718 = vmatpush.msra.mxu0 0.0
      %719 = vmatpush.msra.mxu0 0.0
      %720 = vmatpush.msra.mxu0 0.0
      %721 = vmatpush.msra.mxu0 0.0
      %722 = vmatpush.msra.mxu0 0.0
      %723 = vmatpush.msra.mxu0 0.0
      %724 = vmatpush.msra.mxu0 0.0
      %725 = vmatpush.msra.mxu0 %v176
      %726 = vmatpush.msra.mxu0 %v172
      %727 = vmatpush.msra.mxu0 %v168
      %728 = vmatpush.msra.mxu0 %v164
      %729 = vmatmul.f32.gmra.mxu0 %v711
      %v730 = vpop.f32.mrf.mxu0
      %v731 = vadd.f32 0.0, %v730
      %732 = vdwg.mxu0
      %733 = vmatpush.msra.mxu0 0.0
      %734 = vmatpush.msra.mxu0 0.0
      %735 = vmatpush.msra.mxu0 0.0
      %736 = vmatpush.msra.mxu0 0.0
      %737 = vmatpush.msra.mxu0 0.0
      %738 = vmatpush.msra.mxu0 0.0
      %739 = vmatpush.msra.mxu0 0.0
      %740 = vmatpush.msra.mxu0 0.0
      %741 = vmatpush.msra.mxu0 0.0
      %742 = vmatpush.msra.mxu0 0.0
      %743 = vmatpush.msra.mxu0 0.0
      %744 = vmatpush.msra.mxu0 0.0
      %745 = vmatpush.msra.mxu0 %v177
      %746 = vmatpush.msra.mxu0 %v173
      %747 = vmatpush.msra.mxu0 %v169
      %748 = vmatpush.msra.mxu0 %v165
      %749 = vmatmul.f32.gmra.mxu0 %v711
      %v750 = vpop.f32.mrf.mxu0
      %v751 = vadd.f32 0.0, %v750
      %752 = vdwg.mxu0
      %753 = vmatpush.msra.mxu0 0.0
      %754 = vmatpush.msra.mxu0 0.0
      %755 = vmatpush.msra.mxu0 0.0
      %756 = vmatpush.msra.mxu0 0.0
      %757 = vmatpush.msra.mxu0 0.0
      %758 = vmatpush.msra.mxu0 0.0
      %759 = vmatpush.msra.mxu0 0.0
      %760 = vmatpush.msra.mxu0 0.0
      %761 = vmatpush.msra.mxu0 0.0
      %762 = vmatpush.msra.mxu0 0.0
      %763 = vmatpush.msra.mxu0 0.0
      %764 = vmatpush.msra.mxu0 0.0
      %765 = vmatpush.msra.mxu0 %v178
      %766 = vmatpush.msra.mxu0 %v174
      %767 = vmatpush.msra.mxu0 %v170
      %768 = vmatpush.msra.mxu0 %v166
      %769 = vmatmul.f32.gmra.mxu0 %v711
      %v770 = vpop.f32.mrf.mxu0
      %v771 = vadd.f32 0.0, %v770
      %772 = vdwg.mxu0
      %773 = vmatpush.msra.mxu0 0.0
      %774 = vmatpush.msra.mxu0 0.0
      %775 = vmatpush.msra.mxu0 0.0
      %776 = vmatpush.msra.mxu0 0.0
      %777 = vmatpush.msra.mxu0 0.0
      %778 = vmatpush.msra.mxu0 0.0
      %779 = vmatpush.msra.mxu0 0.0
      %780 = vmatpush.msra.mxu0 0.0
      %781 = vmatpush.msra.mxu0 0.0
      %782 = vmatpush.msra.mxu0 0.0
      %783 = vmatpush.msra.mxu0 0.0
      %784 = vmatpush.msra.mxu0 0.0
      %785 = vmatpush.msra.mxu0 %v179
      %786 = vmatpush.msra.mxu0 %v175
      %787 = vmatpush.msra.mxu0 %v171
      %788 = vmatpush.msra.mxu0 %v167
      %789 = vmatmul.f32.gmra.mxu0 %v711
      %v790 = vpop.f32.mrf.mxu0
      %v791 = vadd.f32 0.0, %v790
      %792 = vdwg.mxu0
      %v797 = vrot.slane %v751, 6
      %v798 = vrot.slane %v771, 4
      %v799 = vrot.slane %v791, 2
      %v800 = vsel %vm277, %v731, %v797
      %v801 = vsel %vm279, %v798, %v799
      %v802 = vsel %vm281, %v800, %v801
      %v804 = vadd.f32 %v709, %v802
      %v805 = vxor.u32 %v804, 2147483648
      %v806 = vmul.f32 %v805, 1.442695
      %v807 = vpow.pop %v806
      %v808 = vadd.f32 %v807, 1.0
      %v809 = vrcp.pop %v808
      %v810 = vmul.f32 %v808, %v809
      %v811 = vsub.f32 1.0, %v810
      %v812 = vmul.f32 %v809, %v811
      %v813 = vadd.f32 %v809, %v812
      %vm814 = vweird.f32 %v808
      %vm815 = vweird.f32 %v809
      %vm816 = vmor %vm814, %vm815
      %v817 = vsel %vm816, %v809, %v813
      %v818 = vand.u32 2147483647, %v808
      %vm819 = vcmp.eq.f32.partialorder %v818, 8.507059e+37
      %v820 = vand.u32 %v808, 2147483648
      %v821 = vor.u32 1.1754944e-38, %v820
      %v822 = vsel %vm819, %v821, %v817
      %v823 = vmul.f32 1.0, %v822
      %v825 = vrot.slane %v804, 2
      %v827 = vxor.u32 %v825, 2147483648
      %v828 = vmul.f32 %v827, 1.442695
      %v829 = vpow.pop %v828
      %v830 = vadd.f32 %v829, 1.0
      %v831 = vrcp.pop %v830
      %v832 = vmul.f32 %v830, %v831
      %v833 = vsub.f32 1.0, %v832
      %v834 = vmul.f32 %v831, %v833
      %v835 = vadd.f32 %v831, %v834
      %vm836 = vweird.f32 %v830
      %vm837 = vweird.f32 %v831
      %vm838 = vmor %vm836, %vm837
      %v839 = vsel %vm838, %v831, %v835
      %v840 = vand.u32 2147483647, %v830
      %vm841 = vcmp.eq.f32.partialorder %v840, 8.507059e+37
      %v842 = vand.u32 %v830, 2147483648
      %v843 = vor.u32 1.1754944e-38, %v842
      %v844 = vsel %vm841, %v843, %v839
      %v845 = vmul.f32 1.0, %v844
      %v846 = vrot.slane %v804, 4
      %v848 = vtanh.pop %v846
      %v849 = vrot.slane %v804, 6
      %v851 = vxor.u32 %v849, 2147483648
      %v852 = vmul.f32 %v851, 1.442695
      %v853 = vpow.pop %v852
      %v854 = vadd.f32 %v853, 1.0
      %v855 = vrcp.pop %v854
      %v856 = vmul.f32 %v854, %v855
      %v857 = vsub.f32 1.0, %v856
      %v858 = vmul.f32 %v855, %v857
      %v859 = vadd.f32 %v855, %v858
      %vm860 = vweird.f32 %v854
      %vm861 = vweird.f32 %v855
      %vm862 = vmor %vm860, %vm861
      %v863 = vsel %vm862, %v855, %v859
      %v864 = vand.u32 2147483647, %v854
      %vm865 = vcmp.eq.f32.partialorder %v864, 8.507059e+37
      %v866 = vand.u32 %v854, 2147483648
      %v867 = vor.u32 1.1754944e-38, %v866
      %v868 = vsel %vm865, %v867, %v863
      %v869 = vmul.f32 1.0, %v868
      %v870 = vmul.f32 %v845, %v699
      %v871 = vmul.f32 %v823, %v848
      %v872 = vadd.f32 %v870, %v871
      %v873 = vtanh.pop %v872
      %v874 = vmul.f32 %v869, %v873
      %s875 = smul.u32 %s705, 2
      %s876 = scalar_lea.vmem %s163, %s875
      %877 = vst.msk [vmem:[%s876] sm:$0x3] %vm357, %v874
      %s878 = scalar_select %p180, 4, 3
      %s879 = smul.u32 %s878, 4
      %s880 = smul.addr %s879, 2
      %s881 = scalar_lea.vmem %s153, %s880
      %v882 = vld [vmem:[%s881] sm:$0xff]
      %v884 = vsel %vm186, %v874, 0
      %886 = vmatpush.msra.mxu0 0.0
      %887 = vmatpush.msra.mxu0 0.0
      %888 = vmatpush.msra.mxu0 0.0
      %889 = vmatpush.msra.mxu0 0.0
      %890 = vmatpush.msra.mxu0 0.0
      %891 = vmatpush.msra.mxu0 0.0
      %892 = vmatpush.msra.mxu0 0.0
      %893 = vmatpush.msra.mxu0 0.0
      %894 = vmatpush.msra.mxu0 0.0
      %895 = vmatpush.msra.mxu0 0.0
      %896 = vmatpush.msra.mxu0 0.0
      %897 = vmatpush.msra.mxu0 0.0
      %898 = vmatpush.msra.mxu0 %v176
      %899 = vmatpush.msra.mxu0 %v172
      %900 = vmatpush.msra.mxu0 %v168
      %901 = vmatpush.msra.mxu0 %v164
      %902 = vmatmul.f32.gmra.mxu0 %v884
      %v903 = vpop.f32.mrf.mxu0
      %v904 = vadd.f32 0.0, %v903
      %905 = vdwg.mxu0
      %906 = vmatpush.msra.mxu0 0.0
      %907 = vmatpush.msra.mxu0 0.0
      %908 = vmatpush.msra.mxu0 0.0
      %909 = vmatpush.msra.mxu0 0.0
      %910 = vmatpush.msra.mxu0 0.0
      %911 = vmatpush.msra.mxu0 0.0
      %912 = vmatpush.msra.mxu0 0.0
      %913 = vmatpush.msra.mxu0 0.0
      %914 = vmatpush.msra.mxu0 0.0
      %915 = vmatpush.msra.mxu0 0.0
      %916 = vmatpush.msra.mxu0 0.0
      %917 = vmatpush.msra.mxu0 0.0
      %918 = vmatpush.msra.mxu0 %v177
      %919 = vmatpush.msra.mxu0 %v173
      %920 = vmatpush.msra.mxu0 %v169
      %921 = vmatpush.msra.mxu0 %v165
      %922 = vmatmul.f32.gmra.mxu0 %v884
      %v923 = vpop.f32.mrf.mxu0
      %v924 = vadd.f32 0.0, %v923
      %925 = vdwg.mxu0
      %926 = vmatpush.msra.mxu0 0.0
      %927 = vmatpush.msra.mxu0 0.0
      %928 = vmatpush.msra.mxu0 0.0
      %929 = vmatpush.msra.mxu0 0.0
      %930 = vmatpush.msra.mxu0 0.0
      %931 = vmatpush.msra.mxu0 0.0
      %932 = vmatpush.msra.mxu0 0.0
      %933 = vmatpush.msra.mxu0 0.0
      %934 = vmatpush.msra.mxu0 0.0
      %935 = vmatpush.msra.mxu0 0.0
      %936 = vmatpush.msra.mxu0 0.0
      %937 = vmatpush.msra.mxu0 0.0
      %938 = vmatpush.msra.mxu0 %v178
      %939 = vmatpush.msra.mxu0 %v174
      %940 = vmatpush.msra.mxu0 %v170
      %941 = vmatpush.msra.mxu0 %v166
      %942 = vmatmul.f32.gmra.mxu0 %v884
      %v943 = vpop.f32.mrf.mxu0
      %v944 = vadd.f32 0.0, %v943
      %945 = vdwg.mxu0
      %946 = vmatpush.msra.mxu0 0.0
      %947 = vmatpush.msra.mxu0 0.0
      %948 = vmatpush.msra.mxu0 0.0
      %949 = vmatpush.msra.mxu0 0.0
      %950 = vmatpush.msra.mxu0 0.0
      %951 = vmatpush.msra.mxu0 0.0
      %952 = vmatpush.msra.mxu0 0.0
      %953 = vmatpush.msra.mxu0 0.0
      %954 = vmatpush.msra.mxu0 0.0
      %955 = vmatpush.msra.mxu0 0.0
      %956 = vmatpush.msra.mxu0 0.0
      %957 = vmatpush.msra.mxu0 0.0
      %958 = vmatpush.msra.mxu0 %v179
      %959 = vmatpush.msra.mxu0 %v175
      %960 = vmatpush.msra.mxu0 %v171
      %961 = vmatpush.msra.mxu0 %v167
      %962 = vmatmul.f32.gmra.mxu0 %v884
      %v963 = vpop.f32.mrf.mxu0
      %v964 = vadd.f32 0.0, %v963
      %965 = vdwg.mxu0
      %v970 = vrot.slane %v924, 6
      %v971 = vrot.slane %v944, 4
      %v972 = vrot.slane %v964, 2
      %v973 = vsel %vm277, %v904, %v970
      %v974 = vsel %vm279, %v971, %v972
      %v975 = vsel %vm281, %v973, %v974
      %v977 = vadd.f32 %v882, %v975
      %v978 = vxor.u32 %v977, 2147483648
      %v979 = vmul.f32 %v978, 1.442695
      %v980 = vpow.pop %v979
      %v981 = vadd.f32 %v980, 1.0
      %v982 = vrcp.pop %v981
      %v983 = vmul.f32 %v981, %v982
      %v984 = vsub.f32 1.0, %v983
      %v985 = vmul.f32 %v982, %v984
      %v986 = vadd.f32 %v982, %v985
      %vm987 = vweird.f32 %v981
      %vm988 = vweird.f32 %v982
      %vm989 = vmor %vm987, %vm988
      %v990 = vsel %vm989, %v982, %v986
      %v991 = vand.u32 2147483647, %v981
      %vm992 = vcmp.eq.f32.partialorder %v991, 8.507059e+37
      %v993 = vand.u32 %v981, 2147483648
      %v994 = vor.u32 1.1754944e-38, %v993
      %v995 = vsel %vm992, %v994, %v990
      %v996 = vmul.f32 1.0, %v995
      %v998 = vrot.slane %v977, 2
      %v1000 = vxor.u32 %v998, 2147483648
      %v1001 = vmul.f32 %v1000, 1.442695
      %v1002 = vpow.pop %v1001
      %v1003 = vadd.f32 %v1002, 1.0
      %v1004 = vrcp.pop %v1003
      %v1005 = vmul.f32 %v1003, %v1004
      %v1006 = vsub.f32 1.0, %v1005
      %v1007 = vmul.f32 %v1004, %v1006
      %v1008 = vadd.f32 %v1004, %v1007
      %vm1009 = vweird.f32 %v1003
      %vm1010 = vweird.f32 %v1004
      %vm1011 = vmor %vm1009, %vm1010
      %v1012 = vsel %vm1011, %v1004, %v1008
      %v1013 = vand.u32 2147483647, %v1003
      %vm1014 = vcmp.eq.f32.partialorder %v1013, 8.507059e+37
      %v1015 = vand.u32 %v1003, 2147483648
      %v1016 = vor.u32 1.1754944e-38, %v1015
      %v1017 = vsel %vm1014, %v1016, %v1012
      %v1018 = vmul.f32 1.0, %v1017
      %v1019 = vrot.slane %v977, 4
      %v1021 = vtanh.pop %v1019
      %v1022 = vrot.slane %v977, 6
      %v1024 = vxor.u32 %v1022, 2147483648
      %v1025 = vmul.f32 %v1024, 1.442695
      %v1026 = vpow.pop %v1025
      %v1027 = vadd.f32 %v1026, 1.0
      %v1028 = vrcp.pop %v1027
      %v1029 = vmul.f32 %v1027, %v1028
      %v1030 = vsub.f32 1.0, %v1029
      %v1031 = vmul.f32 %v1028, %v1030
      %v1032 = vadd.f32 %v1028, %v1031
      %vm1033 = vweird.f32 %v1027
      %vm1034 = vweird.f32 %v1028
      %vm1035 = vmor %vm1033, %vm1034
      %v1036 = vsel %vm1035, %v1028, %v1032
      %v1037 = vand.u32 2147483647, %v1027
      %vm1038 = vcmp.eq.f32.partialorder %v1037, 8.507059e+37
      %v1039 = vand.u32 %v1027, 2147483648
      %v1040 = vor.u32 1.1754944e-38, %v1039
      %v1041 = vsel %vm1038, %v1040, %v1036
      %v1042 = vmul.f32 1.0, %v1041
      %v1043 = vmul.f32 %v1018, %v872
      %v1044 = vmul.f32 %v996, %v1021
      %v1045 = vadd.f32 %v1043, %v1044
      %v1046 = vtanh.pop %v1045
      %v1047 = vmul.f32 %v1042, %v1046
      %s1048 = smul.u32 %s878, 2
      %s1049 = scalar_lea.vmem %s163, %s1048
      %1050 = vst.msk [vmem:[%s1049] sm:$0x3] %vm357, %v1047
      %s1051 = scalar_select %p180, 5, 2
      %s1052 = smul.u32 %s1051, 4
      %s1053 = smul.addr %s1052, 2
      %s1054 = scalar_lea.vmem %s153, %s1053
      %v1055 = vld [vmem:[%s1054] sm:$0xff]
      %v1057 = vsel %vm186, %v1047, 0
      %1059 = vmatpush.msra.mxu0 0.0
      %1060 = vmatpush.msra.mxu0 0.0
      %1061 = vmatpush.msra.mxu0 0.0
      %1062 = vmatpush.msra.mxu0 0.0
      %1063 = vmatpush.msra.mxu0 0.0
      %1064 = vmatpush.msra.mxu0 0.0
      %1065 = vmatpush.msra.mxu0 0.0
      %1066 = vmatpush.msra.mxu0 0.0
      %1067 = vmatpush.msra.mxu0 0.0
      %1068 = vmatpush.msra.mxu0 0.0
      %1069 = vmatpush.msra.mxu0 0.0
      %1070 = vmatpush.msra.mxu0 0.0
      %1071 = vmatpush.msra.mxu0 %v176
      %1072 = vmatpush.msra.mxu0 %v172
      %1073 = vmatpush.msra.mxu0 %v168
      %1074 = vmatpush.msra.mxu0 %v164
      %1075 = vmatmul.f32.gmra.mxu0 %v1057
      %v1076 = vpop.f32.mrf.mxu0
      %v1077 = vadd.f32 0.0, %v1076
      %1078 = vdwg.mxu0
      %1079 = vmatpush.msra.mxu0 0.0
      %1080 = vmatpush.msra.mxu0 0.0
      %1081 = vmatpush.msra.mxu0 0.0
      %1082 = vmatpush.msra.mxu0 0.0
      %1083 = vmatpush.msra.mxu0 0.0
      %1084 = vmatpush.msra.mxu0 0.0
      %1085 = vmatpush.msra.mxu0 0.0
      %1086 = vmatpush.msra.mxu0 0.0
      %1087 = vmatpush.msra.mxu0 0.0
      %1088 = vmatpush.msra.mxu0 0.0
      %1089 = vmatpush.msra.mxu0 0.0
      %1090 = vmatpush.msra.mxu0 0.0
      %1091 = vmatpush.msra.mxu0 %v177
      %1092 = vmatpush.msra.mxu0 %v173
      %1093 = vmatpush.msra.mxu0 %v169
      %1094 = vmatpush.msra.mxu0 %v165
      %1095 = vmatmul.f32.gmra.mxu0 %v1057
      %v1096 = vpop.f32.mrf.mxu0
      %v1097 = vadd.f32 0.0, %v1096
      %1098 = vdwg.mxu0
      %1099 = vmatpush.msra.mxu0 0.0
      %1100 = vmatpush.msra.mxu0 0.0
      %1101 = vmatpush.msra.mxu0 0.0
      %1102 = vmatpush.msra.mxu0 0.0
      %1103 = vmatpush.msra.mxu0 0.0
      %1104 = vmatpush.msra.mxu0 0.0
      %1105 = vmatpush.msra.mxu0 0.0
      %1106 = vmatpush.msra.mxu0 0.0
      %1107 = vmatpush.msra.mxu0 0.0
      %1108 = vmatpush.msra.mxu0 0.0
      %1109 = vmatpush.msra.mxu0 0.0
      %1110 = vmatpush.msra.mxu0 0.0
      %1111 = vmatpush.msra.mxu0 %v178
      %1112 = vmatpush.msra.mxu0 %v174
      %1113 = vmatpush.msra.mxu0 %v170
      %1114 = vmatpush.msra.mxu0 %v166
      %1115 = vmatmul.f32.gmra.mxu0 %v1057
      %v1116 = vpop.f32.mrf.mxu0
      %v1117 = vadd.f32 0.0, %v1116
      %1118 = vdwg.mxu0
      %1119 = vmatpush.msra.mxu0 0.0
      %1120 = vmatpush.msra.mxu0 0.0
      %1121 = vmatpush.msra.mxu0 0.0
      %1122 = vmatpush.msra.mxu0 0.0
      %1123 = vmatpush.msra.mxu0 0.0
      %1124 = vmatpush.msra.mxu0 0.0
      %1125 = vmatpush.msra.mxu0 0.0
      %1126 = vmatpush.msra.mxu0 0.0
      %1127 = vmatpush.msra.mxu0 0.0
      %1128 = vmatpush.msra.mxu0 0.0
      %1129 = vmatpush.msra.mxu0 0.0
      %1130 = vmatpush.msra.mxu0 0.0
      %1131 = vmatpush.msra.mxu0 %v179
      %1132 = vmatpush.msra.mxu0 %v175
      %1133 = vmatpush.msra.mxu0 %v171
      %1134 = vmatpush.msra.mxu0 %v167
      %1135 = vmatmul.f32.gmra.mxu0 %v1057
      %v1136 = vpop.f32.mrf.mxu0
      %v1137 = vadd.f32 0.0, %v1136
      %1138 = vdwg.mxu0
      %v1143 = vrot.slane %v1097, 6
      %v1144 = vrot.slane %v1117, 4
      %v1145 = vrot.slane %v1137, 2
      %v1146 = vsel %vm277, %v1077, %v1143
      %v1147 = vsel %vm279, %v1144, %v1145
      %v1148 = vsel %vm281, %v1146, %v1147
      %v1150 = vadd.f32 %v1055, %v1148
      %v1151 = vxor.u32 %v1150, 2147483648
      %v1152 = vmul.f32 %v1151, 1.442695
      %v1153 = vpow.pop %v1152
      %v1154 = vadd.f32 %v1153, 1.0
      %v1155 = vrcp.pop %v1154
      %v1156 = vmul.f32 %v1154, %v1155
      %v1157 = vsub.f32 1.0, %v1156
      %v1158 = vmul.f32 %v1155, %v1157
      %v1159 = vadd.f32 %v1155, %v1158
      %vm1160 = vweird.f32 %v1154
      %vm1161 = vweird.f32 %v1155
      %vm1162 = vmor %vm1160, %vm1161
      %v1163 = vsel %vm1162, %v1155, %v1159
      %v1164 = vand.u32 2147483647, %v1154
      %vm1165 = vcmp.eq.f32.partialorder %v1164, 8.507059e+37
      %v1166 = vand.u32 %v1154, 2147483648
      %v1167 = vor.u32 1.1754944e-38, %v1166
      %v1168 = vsel %vm1165, %v1167, %v1163
      %v1169 = vmul.f32 1.0, %v1168
      %v1171 = vrot.slane %v1150, 2
      %v1173 = vxor.u32 %v1171, 2147483648
      %v1174 = vmul.f32 %v1173, 1.442695
      %v1175 = vpow.pop %v1174
      %v1176 = vadd.f32 %v1175, 1.0
      %v1177 = vrcp.pop %v1176
      %v1178 = vmul.f32 %v1176, %v1177
      %v1179 = vsub.f32 1.0, %v1178
      %v1180 = vmul.f32 %v1177, %v1179
      %v1181 = vadd.f32 %v1177, %v1180
      %vm1182 = vweird.f32 %v1176
      %vm1183 = vweird.f32 %v1177
      %vm1184 = vmor %vm1182, %vm1183
      %v1185 = vsel %vm1184, %v1177, %v1181
      %v1186 = vand.u32 2147483647, %v1176
      %vm1187 = vcmp.eq.f32.partialorder %v1186, 8.507059e+37
      %v1188 = vand.u32 %v1176, 2147483648
      %v1189 = vor.u32 1.1754944e-38, %v1188
      %v1190 = vsel %vm1187, %v1189, %v1185
      %v1191 = vmul.f32 1.0, %v1190
      %v1192 = vrot.slane %v1150, 4
      %v1194 = vtanh.pop %v1192
      %v1195 = vrot.slane %v1150, 6
      %v1197 = vxor.u32 %v1195, 2147483648
      %v1198 = vmul.f32 %v1197, 1.442695
      %v1199 = vpow.pop %v1198
      %v1200 = vadd.f32 %v1199, 1.0
      %v1201 = vrcp.pop %v1200
      %v1202 = vmul.f32 %v1200, %v1201
      %v1203 = vsub.f32 1.0, %v1202
      %v1204 = vmul.f32 %v1201, %v1203
      %v1205 = vadd.f32 %v1201, %v1204
      %vm1206 = vweird.f32 %v1200
      %vm1207 = vweird.f32 %v1201
      %vm1208 = vmor %vm1206, %vm1207
      %v1209 = vsel %vm1208, %v1201, %v1205
      %v1210 = vand.u32 2147483647, %v1200
      %vm1211 = vcmp.eq.f32.partialorder %v1210, 8.507059e+37
      %v1212 = vand.u32 %v1200, 2147483648
      %v1213 = vor.u32 1.1754944e-38, %v1212
      %v1214 = vsel %vm1211, %v1213, %v1209
      %v1215 = vmul.f32 1.0, %v1214
      %v1216 = vmul.f32 %v1191, %v1045
      %v1217 = vmul.f32 %v1169, %v1194
      %v1218 = vadd.f32 %v1216, %v1217
      %v1219 = vtanh.pop %v1218
      %v1220 = vmul.f32 %v1215, %v1219
      %s1221 = smul.u32 %s1051, 2
      %s1222 = scalar_lea.vmem %s163, %s1221
      %1223 = vst.msk [vmem:[%s1222] sm:$0x3] %vm357, %v1220
      %s1224 = scalar_select %p180, 6, 1
      %s1225 = smul.u32 %s1224, 4
      %s1226 = smul.addr %s1225, 2
      %s1227 = scalar_lea.vmem %s153, %s1226
      %v1228 = vld [vmem:[%s1227] sm:$0xff]
      %v1230 = vsel %vm186, %v1220, 0
      %1232 = vmatpush.msra.mxu0 0.0
      %1233 = vmatpush.msra.mxu0 0.0
      %1234 = vmatpush.msra.mxu0 0.0
      %1235 = vmatpush.msra.mxu0 0.0
      %1236 = vmatpush.msra.mxu0 0.0
      %1237 = vmatpush.msra.mxu0 0.0
      %1238 = vmatpush.msra.mxu0 0.0
      %1239 = vmatpush.msra.mxu0 0.0
      %1240 = vmatpush.msra.mxu0 0.0
      %1241 = vmatpush.msra.mxu0 0.0
      %1242 = vmatpush.msra.mxu0 0.0
      %1243 = vmatpush.msra.mxu0 0.0
      %1244 = vmatpush.msra.mxu0 %v176
      %1245 = vmatpush.msra.mxu0 %v172
      %1246 = vmatpush.msra.mxu0 %v168
      %1247 = vmatpush.msra.mxu0 %v164
      %1248 = vmatmul.f32.gmra.mxu0 %v1230
      %v1249 = vpop.f32.mrf.mxu0
      %v1250 = vadd.f32 0.0, %v1249
      %1251 = vdwg.mxu0
      %1252 = vmatpush.msra.mxu0 0.0
      %1253 = vmatpush.msra.mxu0 0.0
      %1254 = vmatpush.msra.mxu0 0.0
      %1255 = vmatpush.msra.mxu0 0.0
      %1256 = vmatpush.msra.mxu0 0.0
      %1257 = vmatpush.msra.mxu0 0.0
      %1258 = vmatpush.msra.mxu0 0.0
      %1259 = vmatpush.msra.mxu0 0.0
      %1260 = vmatpush.msra.mxu0 0.0
      %1261 = vmatpush.msra.mxu0 0.0
      %1262 = vmatpush.msra.mxu0 0.0
      %1263 = vmatpush.msra.mxu0 0.0
      %1264 = vmatpush.msra.mxu0 %v177
      %1265 = vmatpush.msra.mxu0 %v173
      %1266 = vmatpush.msra.mxu0 %v169
      %1267 = vmatpush.msra.mxu0 %v165
      %1268 = vmatmul.f32.gmra.mxu0 %v1230
      %v1269 = vpop.f32.mrf.mxu0
      %v1270 = vadd.f32 0.0, %v1269
      %1271 = vdwg.mxu0
      %1272 = vmatpush.msra.mxu0 0.0
      %1273 = vmatpush.msra.mxu0 0.0
      %1274 = vmatpush.msra.mxu0 0.0
      %1275 = vmatpush.msra.mxu0 0.0
      %1276 = vmatpush.msra.mxu0 0.0
      %1277 = vmatpush.msra.mxu0 0.0
      %1278 = vmatpush.msra.mxu0 0.0
      %1279 = vmatpush.msra.mxu0 0.0
      %1280 = vmatpush.msra.mxu0 0.0
      %1281 = vmatpush.msra.mxu0 0.0
      %1282 = vmatpush.msra.mxu0 0.0
      %1283 = vmatpush.msra.mxu0 0.0
      %1284 = vmatpush.msra.mxu0 %v178
      %1285 = vmatpush.msra.mxu0 %v174
      %1286 = vmatpush.msra.mxu0 %v170
      %1287 = vmatpush.msra.mxu0 %v166
      %1288 = vmatmul.f32.gmra.mxu0 %v1230
      %v1289 = vpop.f32.mrf.mxu0
      %v1290 = vadd.f32 0.0, %v1289
      %1291 = vdwg.mxu0
      %1292 = vmatpush.msra.mxu0 0.0
      %1293 = vmatpush.msra.mxu0 0.0
      %1294 = vmatpush.msra.mxu0 0.0
      %1295 = vmatpush.msra.mxu0 0.0
      %1296 = vmatpush.msra.mxu0 0.0
      %1297 = vmatpush.msra.mxu0 0.0
      %1298 = vmatpush.msra.mxu0 0.0
      %1299 = vmatpush.msra.mxu0 0.0
      %1300 = vmatpush.msra.mxu0 0.0
      %1301 = vmatpush.msra.mxu0 0.0
      %1302 = vmatpush.msra.mxu0 0.0
      %1303 = vmatpush.msra.mxu0 0.0
      %1304 = vmatpush.msra.mxu0 %v179
      %1305 = vmatpush.msra.mxu0 %v175
      %1306 = vmatpush.msra.mxu0 %v171
      %1307 = vmatpush.msra.mxu0 %v167
      %1308 = vmatmul.f32.gmra.mxu0 %v1230
      %v1309 = vpop.f32.mrf.mxu0
      %v1310 = vadd.f32 0.0, %v1309
      %1311 = vdwg.mxu0
      %v1316 = vrot.slane %v1270, 6
      %v1317 = vrot.slane %v1290, 4
      %v1318 = vrot.slane %v1310, 2
      %v1319 = vsel %vm277, %v1250, %v1316
      %v1320 = vsel %vm279, %v1317, %v1318
      %v1321 = vsel %vm281, %v1319, %v1320
      %v1323 = vadd.f32 %v1228, %v1321
      %v1324 = vxor.u32 %v1323, 2147483648
      %v1325 = vmul.f32 %v1324, 1.442695
      %v1326 = vpow.pop %v1325
      %v1327 = vadd.f32 %v1326, 1.0
      %v1328 = vrcp.pop %v1327
      %v1329 = vmul.f32 %v1327, %v1328
      %v1330 = vsub.f32 1.0, %v1329
      %v1331 = vmul.f32 %v1328, %v1330
      %v1332 = vadd.f32 %v1328, %v1331
      %vm1333 = vweird.f32 %v1327
      %vm1334 = vweird.f32 %v1328
      %vm1335 = vmor %vm1333, %vm1334
      %v1336 = vsel %vm1335, %v1328, %v1332
      %v1337 = vand.u32 2147483647, %v1327
      %vm1338 = vcmp.eq.f32.partialorder %v1337, 8.507059e+37
      %v1339 = vand.u32 %v1327, 2147483648
      %v1340 = vor.u32 1.1754944e-38, %v1339
      %v1341 = vsel %vm1338, %v1340, %v1336
      %v1342 = vmul.f32 1.0, %v1341
      %v1344 = vrot.slane %v1323, 2
      %v1346 = vxor.u32 %v1344, 2147483648
      %v1347 = vmul.f32 %v1346, 1.442695
      %v1348 = vpow.pop %v1347
      %v1349 = vadd.f32 %v1348, 1.0
      %v1350 = vrcp.pop %v1349
      %v1351 = vmul.f32 %v1349, %v1350
      %v1352 = vsub.f32 1.0, %v1351
      %v1353 = vmul.f32 %v1350, %v1352
      %v1354 = vadd.f32 %v1350, %v1353
      %vm1355 = vweird.f32 %v1349
      %vm1356 = vweird.f32 %v1350
      %vm1357 = vmor %vm1355, %vm1356
      %v1358 = vsel %vm1357, %v1350, %v1354
      %v1359 = vand.u32 2147483647, %v1349
      %vm1360 = vcmp.eq.f32.partialorder %v1359, 8.507059e+37
      %v1361 = vand.u32 %v1349, 2147483648
      %v1362 = vor.u32 1.1754944e-38, %v1361
      %v1363 = vsel %vm1360, %v1362, %v1358
      %v1364 = vmul.f32 1.0, %v1363
      %v1365 = vrot.slane %v1323, 4
      %v1367 = vtanh.pop %v1365
      %v1368 = vrot.slane %v1323, 6
      %v1370 = vxor.u32 %v1368, 2147483648
      %v1371 = vmul.f32 %v1370, 1.442695
      %v1372 = vpow.pop %v1371
      %v1373 = vadd.f32 %v1372, 1.0
      %v1374 = vrcp.pop %v1373
      %v1375 = vmul.f32 %v1373, %v1374
      %v1376 = vsub.f32 1.0, %v1375
      %v1377 = vmul.f32 %v1374, %v1376
      %v1378 = vadd.f32 %v1374, %v1377
      %vm1379 = vweird.f32 %v1373
      %vm1380 = vweird.f32 %v1374
      %vm1381 = vmor %vm1379, %vm1380
      %v1382 = vsel %vm1381, %v1374, %v1378
      %v1383 = vand.u32 2147483647, %v1373
      %vm1384 = vcmp.eq.f32.partialorder %v1383, 8.507059e+37
      %v1385 = vand.u32 %v1373, 2147483648
      %v1386 = vor.u32 1.1754944e-38, %v1385
      %v1387 = vsel %vm1384, %v1386, %v1382
      %v1388 = vmul.f32 1.0, %v1387
      %v1389 = vmul.f32 %v1364, %v1218
      %v1390 = vmul.f32 %v1342, %v1367
      %v1391 = vadd.f32 %v1389, %v1390
      %v1392 = vtanh.pop %v1391
      %v1393 = vmul.f32 %v1388, %v1392
      %s1394 = smul.u32 %s1224, 2
      %s1395 = scalar_lea.vmem %s163, %s1394
      %1396 = vst.msk [vmem:[%s1395] sm:$0x3] %vm357, %v1393
      %s1397 = scalar_select %p180, 7, 0
      %s1398 = smul.u32 %s1397, 4
      %s1399 = smul.addr %s1398, 2
      %s1400 = scalar_lea.vmem %s153, %s1399
      %v1401 = vld [vmem:[%s1400] sm:$0xff]
      %v1403 = vsel %vm186, %v1393, 0
      %1405 = vmatpush.msra.mxu0 0.0
      %1406 = vmatpush.msra.mxu0 0.0
      %1407 = vmatpush.msra.mxu0 0.0
      %1408 = vmatpush.msra.mxu0 0.0
      %1409 = vmatpush.msra.mxu0 0.0
      %1410 = vmatpush.msra.mxu0 0.0
      %1411 = vmatpush.msra.mxu0 0.0
      %1412 = vmatpush.msra.mxu0 0.0
      %1413 = vmatpush.msra.mxu0 0.0
      %1414 = vmatpush.msra.mxu0 0.0
      %1415 = vmatpush.msra.mxu0 0.0
      %1416 = vmatpush.msra.mxu0 0.0
      %1417 = vmatpush.msra.mxu0 %v176
      %1418 = vmatpush.msra.mxu0 %v172
      %1419 = vmatpush.msra.mxu0 %v168
      %1420 = vmatpush.msra.mxu0 %v164
      %1421 = vmatmul.f32.gmra.mxu0 %v1403
      %v1422 = vpop.f32.mrf.mxu0
      %v1423 = vadd.f32 0.0, %v1422
      %1424 = vdwg.mxu0
      %1425 = vmatpush.msra.mxu0 0.0
      %1426 = vmatpush.msra.mxu0 0.0
      %1427 = vmatpush.msra.mxu0 0.0
      %1428 = vmatpush.msra.mxu0 0.0
      %1429 = vmatpush.msra.mxu0 0.0
      %1430 = vmatpush.msra.mxu0 0.0
      %1431 = vmatpush.msra.mxu0 0.0
      %1432 = vmatpush.msra.mxu0 0.0
      %1433 = vmatpush.msra.mxu0 0.0
      %1434 = vmatpush.msra.mxu0 0.0
      %1435 = vmatpush.msra.mxu0 0.0
      %1436 = vmatpush.msra.mxu0 0.0
      %1437 = vmatpush.msra.mxu0 %v177
      %1438 = vmatpush.msra.mxu0 %v173
      %1439 = vmatpush.msra.mxu0 %v169
      %1440 = vmatpush.msra.mxu0 %v165
      %1441 = vmatmul.f32.gmra.mxu0 %v1403
      %v1442 = vpop.f32.mrf.mxu0
      %v1443 = vadd.f32 0.0, %v1442
      %1444 = vdwg.mxu0
      %1445 = vmatpush.msra.mxu0 0.0
      %1446 = vmatpush.msra.mxu0 0.0
      %1447 = vmatpush.msra.mxu0 0.0
      %1448 = vmatpush.msra.mxu0 0.0
      %1449 = vmatpush.msra.mxu0 0.0
      %1450 = vmatpush.msra.mxu0 0.0
      %1451 = vmatpush.msra.mxu0 0.0
      %1452 = vmatpush.msra.mxu0 0.0
      %1453 = vmatpush.msra.mxu0 0.0
      %1454 = vmatpush.msra.mxu0 0.0
      %1455 = vmatpush.msra.mxu0 0.0
      %1456 = vmatpush.msra.mxu0 0.0
      %1457 = vmatpush.msra.mxu0 %v178
      %1458 = vmatpush.msra.mxu0 %v174
      %1459 = vmatpush.msra.mxu0 %v170
      %1460 = vmatpush.msra.mxu0 %v166
      %1461 = vmatmul.f32.gmra.mxu0 %v1403
      %v1462 = vpop.f32.mrf.mxu0
      %v1463 = vadd.f32 0.0, %v1462
      %1464 = vdwg.mxu0
      %1465 = vmatpush.msra.mxu0 0.0
      %1466 = vmatpush.msra.mxu0 0.0
      %1467 = vmatpush.msra.mxu0 0.0
      %1468 = vmatpush.msra.mxu0 0.0
      %1469 = vmatpush.msra.mxu0 0.0
      %1470 = vmatpush.msra.mxu0 0.0
      %1471 = vmatpush.msra.mxu0 0.0
      %1472 = vmatpush.msra.mxu0 0.0
      %1473 = vmatpush.msra.mxu0 0.0
      %1474 = vmatpush.msra.mxu0 0.0
      %1475 = vmatpush.msra.mxu0 0.0
      %1476 = vmatpush.msra.mxu0 0.0
      %1477 = vmatpush.msra.mxu0 %v179
      %1478 = vmatpush.msra.mxu0 %v175
      %1479 = vmatpush.msra.mxu0 %v171
      %1480 = vmatpush.msra.mxu0 %v167
      %1481 = vmatmul.f32.gmra.mxu0 %v1403
      %v1482 = vpop.f32.mrf.mxu0
      %v1483 = vadd.f32 0.0, %v1482
      %1484 = vdwg.mxu0
      %v1489 = vrot.slane %v1443, 6
      %v1490 = vrot.slane %v1463, 4
      %v1491 = vrot.slane %v1483, 2
      %v1492 = vsel %vm277, %v1423, %v1489
      %v1493 = vsel %vm279, %v1490, %v1491
      %v1494 = vsel %vm281, %v1492, %v1493
      %v1496 = vadd.f32 %v1401, %v1494
      %v1497 = vxor.u32 %v1496, 2147483648
      %v1498 = vmul.f32 %v1497, 1.442695
      %v1499 = vpow.pop %v1498
      %v1500 = vadd.f32 %v1499, 1.0
      %v1501 = vrcp.pop %v1500
      %v1502 = vmul.f32 %v1500, %v1501
      %v1503 = vsub.f32 1.0, %v1502
      %v1504 = vmul.f32 %v1501, %v1503
      %v1505 = vadd.f32 %v1501, %v1504
      %vm1506 = vweird.f32 %v1500
      %vm1507 = vweird.f32 %v1501
      %vm1508 = vmor %vm1506, %vm1507
      %v1509 = vsel %vm1508, %v1501, %v1505
      %v1510 = vand.u32 2147483647, %v1500
      %vm1511 = vcmp.eq.f32.partialorder %v1510, 8.507059e+37
      %v1512 = vand.u32 %v1500, 2147483648
      %v1513 = vor.u32 1.1754944e-38, %v1512
      %v1514 = vsel %vm1511, %v1513, %v1509
      %v1515 = vmul.f32 1.0, %v1514
      %v1517 = vrot.slane %v1496, 2
      %v1519 = vxor.u32 %v1517, 2147483648
      %v1520 = vmul.f32 %v1519, 1.442695
      %v1521 = vpow.pop %v1520
      %v1522 = vadd.f32 %v1521, 1.0
      %v1523 = vrcp.pop %v1522
      %v1524 = vmul.f32 %v1522, %v1523
      %v1525 = vsub.f32 1.0, %v1524
      %v1526 = vmul.f32 %v1523, %v1525
      %v1527 = vadd.f32 %v1523, %v1526
      %vm1528 = vweird.f32 %v1522
      %vm1529 = vweird.f32 %v1523
      %vm1530 = vmor %vm1528, %vm1529
      %v1531 = vsel %vm1530, %v1523, %v1527
      %v1532 = vand.u32 2147483647, %v1522
      %vm1533 = vcmp.eq.f32.partialorder %v1532, 8.507059e+37
      %v1534 = vand.u32 %v1522, 2147483648
      %v1535 = vor.u32 1.1754944e-38, %v1534
      %v1536 = vsel %vm1533, %v1535, %v1531
      %v1537 = vmul.f32 1.0, %v1536
      %v1538 = vrot.slane %v1496, 4
      %v1540 = vtanh.pop %v1538
      %v1541 = vrot.slane %v1496, 6
      %v1543 = vxor.u32 %v1541, 2147483648
      %v1544 = vmul.f32 %v1543, 1.442695
      %v1545 = vpow.pop %v1544
      %v1546 = vadd.f32 %v1545, 1.0
      %v1547 = vrcp.pop %v1546
      %v1548 = vmul.f32 %v1546, %v1547
      %v1549 = vsub.f32 1.0, %v1548
      %v1550 = vmul.f32 %v1547, %v1549
      %v1551 = vadd.f32 %v1547, %v1550
      %vm1552 = vweird.f32 %v1546
      %vm1553 = vweird.f32 %v1547
      %vm1554 = vmor %vm1552, %vm1553
      %v1555 = vsel %vm1554, %v1547, %v1551
      %v1556 = vand.u32 2147483647, %v1546
      %vm1557 = vcmp.eq.f32.partialorder %v1556, 8.507059e+37
      %v1558 = vand.u32 %v1546, 2147483648
      %v1559 = vor.u32 1.1754944e-38, %v1558
      %v1560 = vsel %vm1557, %v1559, %v1555
      %v1561 = vmul.f32 1.0, %v1560
      %v1562 = vmul.f32 %v1537, %v1391
      %v1563 = vmul.f32 %v1515, %v1540
      %v1564 = vadd.f32 %v1562, %v1563
      %v1565 = vtanh.pop %v1564
      %v1566 = vmul.f32 %v1561, %v1565
      %s1567 = smul.u32 %s1397, 2
      %s1568 = scalar_lea.vmem %s163, %s1567
      %1569 = vst.msk [vmem:[%s1568] sm:$0x3] %vm357, %v1566
      %p1570 = scmp.lt.s32.totalorder %s13, 1
      %s1571 = scalar_select %p1570, %s13, 1
      %s1572 = smul.addr %s1571, 8
      %s1573 = smul.addr %s1572, 2
      %s1574 = scalar_lea.vmem %s2, %s1573
      // Predicated region
      $region29: #{lstm_arch_forward.2} parent=27 // pred_check
        %p1575 = pneg %p83
      $region30: #{lstm_arch_forward.2} parent=27 // pred_check_branch
        %1577 = sbr.rel (%p1575) target = $region32
      $region31: #{lstm_arch_forward.2} parent=27 // pred_region
        _
      $region32: #{lstm_arch_forward.2} parent=27 // pred_fallthru
        _
    $region28: #{lstm_arch_forward.2} parent=5 // pred_fallthru
      _
    %p1578 = scmp.le.s32.totalorder 2, %s8
    // Predicated region
    $region33: #{lstm_arch_forward.2} parent=5 // pred_check
      %p1579 = pneg %p1578
    $region34: #{lstm_arch_forward.2} parent=5 // pred_check_branch
      %1581 = sbr.rel (%p1579) target = $region36
    $region35: #{lstm_arch_forward.2} parent=5 // pred_region
      %s1582 = ssub.s32 %s8, 2
      // Predicated region
      $region37: #{lstm_arch_forward.2} parent=35 // pred_check
        %p1583 = pneg %p89
      $region38: #{lstm_arch_forward.2} parent=35 // pred_check_branch
        %1585 = sbr.rel (%p1583) target = $region40
      $region39: #{lstm_arch_forward.2} parent=35 // pred_region
        %p1586 = scmp.lt.s32.totalorder %s14, 1
        %s1587 = scalar_select %p1586, %s14, 1
        %s1588 = smul.addr %s1587, 8
        %s1589 = smul.addr %s1588, 2
        %s1590 = scalar_lea.vmem %s2, %s1589
      $region40: #{lstm_arch_forward.2} parent=35 // pred_fallthru
        _
    $region36: #{lstm_arch_forward.2} parent=5 // pred_fallthru
      _
  $region6: #{lstm_arch_forward.2} parent=0 // loop_footer
    %s12 = sadd.s32 1, %s8
  $region7: #{lstm_arch_forward.2} parent=0 // loop_footer_branch
    %7 = sbr.rel target = $region3
  $region8: #{lstm_arch_forward.2} parent=0 // loop_exit
    _

// kernel: lstm_arch_forward.3
$region0: #{lstm_arch_forward.3}
  #allocation0 [shape = 'u32[]', space=smem, size = 0x4, offset = 0x4, fixed_abs, tag = 'smem constant byte address 0x4 - core index']
  #allocation1 [shape = 'u32[72,128]{1,0:T(1,128)}', space=vmem, size = 0x9000, scoped, tag = 'internal scratch']
  %s0 = inlined_call_operand.vmem [shape: f32[2,8,2,512], index: 0, kind: input, shape index: {}]
  %s1 = inlined_call_operand.vmem [shape: f32[2,32,512], index: 1, kind: input, shape index: {}]
  %s2 = inlined_call_operand.vmem [shape: f32[2,2,32], index: 2, kind: output, shape index: {}]
  %s3 = sld [smem:[#allocation0]]
  $region41: #{lstm_arch_forward.3} parent=0
    _
  %s5 = ssub.s32 1, %s3
  %s6 = scalar_select 0, %s5, %s3
  loop: start=0, step=1, limit=4
  $region2: #{lstm_arch_forward.3} parent=0 // loop_pre_header
    _
  $region3: #{lstm_arch_forward.3} parent=0 // loop_header
    %s8 = sphi 0, %s12
    %p9 = scmp.ge.s32.totalorder %s8, 4
    %s18 = sphi 0, %s20
    %s21 = sphi 0, %s18
    %s22 = sphi 0, %s21
    %s38 = sphi 0, %s22
    %s44 = sphi 0, %s46
    %s47 = sphi 0, %s44
    %s48 = sphi 0, %s47
    %s64 = sphi 0, %s48
    %s70 = sphi 0, %s72
    %s73 = sphi 0, %s70
    %s74 = sphi 0, %s73
    %s90 = sphi 0, %s74
  $region4: #{lstm_arch_forward.3} parent=0 // loop_header_branch
    %11 = sbr.rel (%p9) target = $region8
  $region5: #{lstm_arch_forward.3} parent=0 // loop_body
    %s13 = ssub.s32 %s8, 1
    %s14 = ssub.s32 %s8, 2
    %s15 = sadd.s32 %s8, 1
    %s16 = ssub.s32 %s8, %s15
    %p17 = scmp.eq.s32.totalorder %s16, 0
    %s19 = sadd.s32 %s18, 1
    %s20 = scalar_select %p17, %s18, %s19
    %p23 = pneg %p17
    %p24 = scmp.eq.s32.totalorder %s8, 1
    %p25 = por %p23, %p24
    %p26 = scmp.ne.s32.totalorder %s18, %s21
    %p27 = scmp.eq.s32.totalorder %s8, 0
    %p28 = por %p26, %p27
    %p29 = scmp.ne.s32.totalorder %s18, %s21
    %p30 = scmp.eq.s32.totalorder %s13, 1
    %p31 = por %p29, %p30
    %p32 = scmp.ne.s32.totalorder %s21, %s22
    %p33 = scmp.eq.s32.totalorder %s13, 0
    %p34 = por %p32, %p33
    %p35 = scmp.ne.s32.totalorder %s21, %s22
    %p36 = scmp.eq.s32.totalorder %s14, 1
    %p37 = por %p35, %p36
    %p39 = scmp.ne.s32.totalorder %s22, %s38
    %p40 = scmp.eq.s32.totalorder %s14, 0
    %p41 = por %p39, %p40
    %s42 = ssub.s32 %s8, %s15
    %p43 = scmp.eq.s32.totalorder %s42, 0
    %s45 = sadd.s32 %s44, 1
    %s46 = scalar_select %p43, %s44, %s45
    %p49 = pneg %p43
    %p50 = scmp.eq.s32.totalorder %s8, 1
    %p51 = por %p49, %p50
    %p52 = scmp.ne.s32.totalorder %s44, %s47
    %p53 = scmp.eq.s32.totalorder %s8, 0
    %p54 = por %p52, %p53
    %p55 = scmp.ne.s32.totalorder %s44, %s47
    %p56 = scmp.eq.s32.totalorder %s13, 1
    %p57 = por %p55, %p56
    %p58 = scmp.ne.s32.totalorder %s47, %s48
    %p59 = scmp.eq.s32.totalorder %s13, 0
    %p60 = por %p58, %p59
    %p61 = scmp.ne.s32.totalorder %s47, %s48
    %p62 = scmp.eq.s32.totalorder %s14, 1
    %p63 = por %p61, %p62
    %p65 = scmp.ne.s32.totalorder %s48, %s64
    %p66 = scmp.eq.s32.totalorder %s14, 0
    %p67 = por %p65, %p66
    %s68 = ssub.s32 %s8, %s15
    %p69 = scmp.eq.s32.totalorder %s68, 0
    %s71 = sadd.s32 %s70, 1
    %s72 = scalar_select %p69, %s70, %s71
    %p75 = pneg %p69
    %p76 = scmp.eq.s32.totalorder %s8, 1
    %p77 = por %p75, %p76
    %p78 = scmp.ne.s32.totalorder %s70, %s73
    %p79 = scmp.eq.s32.totalorder %s8, 0
    %p80 = por %p78, %p79
    %p81 = scmp.ne.s32.totalorder %s70, %s73
    %p82 = scmp.eq.s32.totalorder %s13, 1
    %p83 = por %p81, %p82
    %p84 = scmp.ne.s32.totalorder %s73, %s74
    %p85 = scmp.eq.s32.totalorder %s13, 0
    %p86 = por %p84, %p85
    %p87 = scmp.ne.s32.totalorder %s73, %s74
    %p88 = scmp.eq.s32.totalorder %s14, 1
    %p89 = por %p87, %p88
    %p91 = scmp.ne.s32.totalorder %s74, %s90
    %p92 = scmp.eq.s32.totalorder %s14, 0
    %p93 = por %p91, %p92
    %p94 = scmp.le.s32.totalorder 1, %s8
    %p95 = scmp.lt.s32.totalorder %s8, 3
    %p96 = pnand %p94, %p95
    %p97 = pneg %p96
    // Predicated region
    $region9: #{lstm_arch_forward.3} parent=5 // pred_check
      _
    $region10: #{lstm_arch_forward.3} parent=5 // pred_check_branch
      %99 = sbr.rel (%p96) target = $region12
    $region11: #{lstm_arch_forward.3} parent=5 // pred_region
      %s100 = ssub.s32 %s8, 1
    $region12: #{lstm_arch_forward.3} parent=5 // pred_fallthru
      _
    %p101 = scmp.lt.s32.totalorder %s8, 2
    // Predicated region
    $region13: #{lstm_arch_forward.3} parent=5 // pred_check
      %p102 = pneg %p101
    $region14: #{lstm_arch_forward.3} parent=5 // pred_check_branch
      %104 = sbr.rel (%p102) target = $region16
    $region15: #{lstm_arch_forward.3} parent=5 // pred_region
      // Predicated region
      $region17: #{lstm_arch_forward.3} parent=15 // pred_check
        %p105 = pneg %p28
      $region18: #{lstm_arch_forward.3} parent=15 // pred_check_branch
        %107 = sbr.rel (%p105) target = $region20
      $region19: #{lstm_arch_forward.3} parent=15 // pred_region
        %p108 = scmp.lt.s32.totalorder %s8, 1
        %s109 = scalar_select %p108, %s8, 1
        %s110 = smul.addr %s109, 32
        %s111 = smul.addr %s110, 2
        %s112 = scalar_lea.vmem %s0, %s111
      $region20: #{lstm_arch_forward.3} parent=15 // pred_fallthru
        _
      // Predicated region
      $region21: #{lstm_arch_forward.3} parent=15 // pred_check
        %p113 = pneg %p54
      $region22: #{lstm_arch_forward.3} parent=15 // pred_check_branch
        %115 = sbr.rel (%p113) target = $region24
      $region23: #{lstm_arch_forward.3} parent=15 // pred_region
        %p116 = scmp.lt.s32.totalorder %s8, 1
        %s117 = scalar_select %p116, %s8, 1
        %s118 = smul.addr %s117, 16
        %s119 = smul.addr %s118, 8
        %s120 = scalar_lea.vmem %s1, %s119
      $region24: #{lstm_arch_forward.3} parent=15 // pred_fallthru
        _
    $region16: #{lstm_arch_forward.3} parent=5 // pred_fallthru
      _
    %p121 = scmp.le.s32.totalorder 1, %s8
    %p122 = scmp.lt.s32.totalorder %s8, 3
    %p123 = pnand %p121, %p122
    %p124 = pneg %p123
    // Predicated region
    $region25: #{lstm_arch_forward.3} parent=5 // pred_check
      _
    $region26: #{lstm_arch_forward.3} parent=5 // pred_check_branch
      %126 = sbr.rel (%p123) target = $region28
    $region27: #{lstm_arch_forward.3} parent=5 // pred_region
      %s127 = ssub.s32 %s8, 1
      %p128 = scmp.lt.s32.totalorder %s13, 1
      %s129 = scalar_select %p128, %s13, 1
      %s130 = smul.addr %s129, 32
      %s131 = smul.addr %s130, 2
      %s132 = scalar_lea.vmem %s0, %s131
      %p133 = pneg %p34
      %p134 = pneg %p31
      %p135 = scmp.lt.s32.totalorder %s13, 1
      %s136 = scalar_select %p135, %s13, 1
      %s137 = smul.addr %s136, 16
      %s138 = smul.addr %s137, 8
      %s139 = scalar_lea.vmem %s1, %s138
      %p140 = pneg %p60
      %p141 = pneg %p57
      %p142 = pneg %p86
      %p143 = pneg %p83
      %p144 = scmp.lt.s32.totalorder %s13, 1
      %s145 = scalar_select %p144, %s13, 1
      %s146 = smul.addr %s145, 2
      %s147 = scalar_lea.vmem %s2, %s146
      %p148 = scmp.lt.s32.totalorder %s13, 1
      %s149 = scalar_select %p148, %s13, 1
      %s150 = smul.addr %s149, 32
      %s151 = smul.addr %s150, 2
      %s152 = scalar_lea.vmem %s0, %s151
      %p153 = scmp.lt.s32.totalorder %s13, 1
      %s154 = scalar_select %p153, %s13, 1
      %s155 = smul.addr %s154, 16
      %s156 = smul.addr %s155, 8
      %s157 = scalar_lea.vmem %s1, %s156
      %p158 = scmp.lt.s32.totalorder %s13, 1
      %s159 = scalar_select %p158, %s13, 1
      %s160 = smul.addr %s159, 2
      %s161 = scalar_lea.vmem %s2, %s160
      %v162 = vld [vmem:[%s157] sm:$0xff]
      %v163 = vld [vmem:[%s157 + $0x8] sm:$0xff]
      %v164 = vld [vmem:[%s157 + $0x10] sm:$0xff]
      %v165 = vld [vmem:[%s157 + $0x18] sm:$0xff]
      %v166 = vld [vmem:[%s157 + $0x20] sm:$0xff]
      %v167 = vld [vmem:[%s157 + $0x28] sm:$0xff]
      %v168 = vld [vmem:[%s157 + $0x30] sm:$0xff]
      %v169 = vld [vmem:[%s157 + $0x38] sm:$0xff]
      %v170 = vld [vmem:[%s157 + $0x40] sm:$0xff]
      %v171 = vld [vmem:[%s157 + $0x48] sm:$0xff]
      %v172 = vld [vmem:[%s157 + $0x50] sm:$0xff]
      %v173 = vld [vmem:[%s157 + $0x58] sm:$0xff]
      %v174 = vld [vmem:[%s157 + $0x60] sm:$0xff]
      %v175 = vld [vmem:[%s157 + $0x68] sm:$0xff]
      %v176 = vld [vmem:[%s157 + $0x70] sm:$0xff]
      %v177 = vld [vmem:[%s157 + $0x78] sm:$0xff]
      %p178 = scmp.eq.s32.totalorder %s13, 0
      %s179 = scalar_select %p178, 0, 7
      %s180 = smul.u32 %s179, 4
      %s181 = smul.addr %s180, 2
      %s182 = scalar_lea.vmem %s152, %s181
      %v183 = vld [vmem:[%s182] sm:$0xff]
      %vm184 = vcmask 261120
      %v186 = vsel %vm184, 0.0, 0
      %188 = vmatpush.msra.mxu0 0.0
      %189 = vmatpush.msra.mxu0 0.0
      %190 = vmatpush.msra.mxu0 0.0
      %191 = vmatpush.msra.mxu0 0.0
      %192 = vmatpush.msra.mxu0 0.0
      %193 = vmatpush.msra.mxu0 0.0
      %194 = vmatpush.msra.mxu0 0.0
      %195 = vmatpush.msra.mxu0 0.0
      %196 = vmatpush.msra.mxu0 0.0
      %197 = vmatpush.msra.mxu0 0.0
      %198 = vmatpush.msra.mxu0 0.0
      %199 = vmatpush.msra.mxu0 0.0
      %200 = vmatpush.msra.mxu0 %v174
      %201 = vmatpush.msra.mxu0 %v170
      %202 = vmatpush.msra.mxu0 %v166
      %203 = vmatpush.msra.mxu0 %v162
      %204 = vmatmul.f32.gmra.mxu0 %v186
      %v205 = vpop.f32.mrf.mxu0
      %v206 = vadd.f32 0.0, %v205
      %207 = vdwg.mxu0
      %208 = vmatpush.msra.mxu0 0.0
      %209 = vmatpush.msra.mxu0 0.0
      %210 = vmatpush.msra.mxu0 0.0
      %211 = vmatpush.msra.mxu0 0.0
      %212 = vmatpush.msra.mxu0 0.0
      %213 = vmatpush.msra.mxu0 0.0
      %214 = vmatpush.msra.mxu0 0.0
      %215 = vmatpush.msra.mxu0 0.0
      %216 = vmatpush.msra.mxu0 0.0
      %217 = vmatpush.msra.mxu0 0.0
      %218 = vmatpush.msra.mxu0 0.0
      %219 = vmatpush.msra.mxu0 0.0
      %220 = vmatpush.msra.mxu0 %v175
      %221 = vmatpush.msra.mxu0 %v171
      %222 = vmatpush.msra.mxu0 %v167
      %223 = vmatpush.msra.mxu0 %v163
      %224 = vmatmul.f32.gmra.mxu0 %v186
      %v225 = vpop.f32.mrf.mxu0
      %v226 = vadd.f32 0.0, %v225
      %227 = vdwg.mxu0
      %228 = vmatpush.msra.mxu0 0.0
      %229 = vmatpush.msra.mxu0 0.0
      %230 = vmatpush.msra.mxu0 0.0
      %231 = vmatpush.msra.mxu0 0.0
      %232 = vmatpush.msra.mxu0 0.0
      %233 = vmatpush.msra.mxu0 0.0
      %234 = vmatpush.msra.mxu0 0.0
      %235 = vmatpush.msra.mxu0 0.0
      %236 = vmatpush.msra.mxu0 0.0
      %237 = vmatpush.msra.mxu0 0.0
      %238 = vmatpush.msra.mxu0 0.0
      %239 = vmatpush.msra.mxu0 0.0
      %240 = vmatpush.msra.mxu0 %v176
      %241 = vmatpush.msra.mxu0 %v172
      %242 = vmatpush.msra.mxu0 %v168
      %243 = vmatpush.msra.mxu0 %v164
      %244 = vmatmul.f32.gmra.mxu0 %v186
      %v245 = vpop.f32.mrf.mxu0
      %v246 = vadd.f32 0.0, %v245
      %247 = vdwg.mxu0
      %248 = vmatpush.msra.mxu0 0.0
      %249 = vmatpush.msra.mxu0 0.0
      %250 = vmatpush.msra.mxu0 0.0
      %251 = vmatpush.msra.mxu0 0.0
      %252 = vmatpush.msra.mxu0 0.0
      %253 = vmatpush.msra.mxu0 0.0
      %254 = vmatpush.msra.mxu0 0.0
      %255 = vmatpush.msra.mxu0 0.0
      %256 = vmatpush.msra.mxu0 0.0
      %257 = vmatpush.msra.mxu0 0.0
      %258 = vmatpush.msra.mxu0 0.0
      %259 = vmatpush.msra.mxu0 0.0
      %260 = vmatpush.msra.mxu0 %v177
      %261 = vmatpush.msra.mxu0 %v173
      %262 = vmatpush.msra.mxu0 %v169
      %263 = vmatpush.msra.mxu0 %v165
      %264 = vmatmul.f32.gmra.mxu0 %v186
      %v265 = vpop.f32.mrf.mxu0
      %v266 = vadd.f32 0.0, %v265
      %267 = vdwg.mxu0
      %v272 = vrot.slane %v226, 6
      %v273 = vrot.slane %v246, 4
      %v274 = vrot.slane %v266, 2
      %vm275 = vcmask 1041408
      %v276 = vsel %vm275, %v206, %v272
      %vm277 = vcmask 1045508
      %v278 = vsel %vm277, %v273, %v274
      %vm279 = vcmask 1043456
      %v280 = vsel %vm279, %v276, %v278
      %v282 = vadd.f32 %v183, %v280
      %v283 = vxor.u32 %v282, 2147483648
      %v284 = vmul.f32 %v283, 1.442695
      %v285 = vpow.pop %v284
      %v286 = vadd.f32 %v285, 1.0
      %v287 = vrcp.pop %v286
      %v288 = vmul.f32 %v286, %v287
      %v289 = vsub.f32 1.0, %v288
      %v290 = vmul.f32 %v287, %v289
      %v291 = vadd.f32 %v287, %v290
      %vm292 = vweird.f32 %v286
      %vm293 = vweird.f32 %v287
      %vm294 = vmor %vm292, %vm293
      %v295 = vsel %vm294, %v287, %v291
      %v296 = vand.u32 2147483647, %v286
      %vm297 = vcmp.eq.f32.partialorder %v296, 8.507059e+37
      %v298 = vand.u32 %v286, 2147483648
      %v299 = vor.u32 1.1754944e-38, %v298
      %v300 = vsel %vm297, %v299, %v295
      %v301 = vmul.f32 1.0, %v300
      %v303 = vrot.slane %v282, 2
      %v305 = vxor.u32 %v303, 2147483648
      %v306 = vmul.f32 %v305, 1.442695
      %v307 = vpow.pop %v306
      %v308 = vadd.f32 %v307, 1.0
      %v309 = vrcp.pop %v308
      %v310 = vmul.f32 %v308, %v309
      %v311 = vsub.f32 1.0, %v310
      %v312 = vmul.f32 %v309, %v311
      %v313 = vadd.f32 %v309, %v312
      %vm314 = vweird.f32 %v308
      %vm315 = vweird.f32 %v309
      %vm316 = vmor %vm314, %vm315
      %v317 = vsel %vm316, %v309, %v313
      %v318 = vand.u32 2147483647, %v308
      %vm319 = vcmp.eq.f32.partialorder %v318, 8.507059e+37
      %v320 = vand.u32 %v308, 2147483648
      %v321 = vor.u32 1.1754944e-38, %v320
      %v322 = vsel %vm319, %v321, %v317
      %v323 = vmul.f32 1.0, %v322
      %v324 = vrot.slane %v282, 4
      %v326 = vtanh.pop %v324
      %v327 = vrot.slane %v282, 6
      %v329 = vxor.u32 %v327, 2147483648
      %v330 = vmul.f32 %v329, 1.442695
      %v331 = vpow.pop %v330
      %v332 = vadd.f32 %v331, 1.0
      %v333 = vrcp.pop %v332
      %v334 = vmul.f32 %v332, %v333
      %v335 = vsub.f32 1.0, %v334
      %v336 = vmul.f32 %v333, %v335
      %v337 = vadd.f32 %v333, %v336
      %vm338 = vweird.f32 %v332
      %vm339 = vweird.f32 %v333
      %vm340 = vmor %vm338, %vm339
      %v341 = vsel %vm340, %v333, %v337
      %v342 = vand.u32 2147483647, %v332
      %vm343 = vcmp.eq.f32.partialorder %v342, 8.507059e+37
      %v344 = vand.u32 %v332, 2147483648
      %v345 = vor.u32 1.1754944e-38, %v344
      %v346 = vsel %vm343, %v345, %v341
      %v347 = vmul.f32 1.0, %v346
      %v348 = vmul.f32 %v323, 0.0
      %v349 = vmul.f32 %v301, %v326
      %v350 = vadd.f32 %v348, %v349
      %v351 = vtanh.pop %v350
      %v352 = vmul.f32 %v347, %v351
      %s353 = scalar_select %p178, 1, 6
      %s354 = smul.u32 %s353, 4
      %s355 = smul.addr %s354, 2
      %s356 = scalar_lea.vmem %s152, %s355
      %v357 = vld [vmem:[%s356] sm:$0xff]
      %v359 = vsel %vm184, %v352, 0
      %361 = vmatpush.msra.mxu0 0.0
      %362 = vmatpush.msra.mxu0 0.0
      %363 = vmatpush.msra.mxu0 0.0
      %364 = vmatpush.msra.mxu0 0.0
      %365 = vmatpush.msra.mxu0 0.0
      %366 = vmatpush.msra.mxu0 0.0
      %367 = vmatpush.msra.mxu0 0.0
      %368 = vmatpush.msra.mxu0 0.0
      %369 = vmatpush.msra.mxu0 0.0
      %370 = vmatpush.msra.mxu0 0.0
      %371 = vmatpush.msra.mxu0 0.0
      %372 = vmatpush.msra.mxu0 0.0
      %373 = vmatpush.msra.mxu0 %v174
      %374 = vmatpush.msra.mxu0 %v170
      %375 = vmatpush.msra.mxu0 %v166
      %376 = vmatpush.msra.mxu0 %v162
      %377 = vmatmul.f32.gmra.mxu0 %v359
      %v378 = vpop.f32.mrf.mxu0
      %v379 = vadd.f32 0.0, %v378
      %380 = vdwg.mxu0
      %381 = vmatpush.msra.mxu0 0.0
      %382 = vmatpush.msra.mxu0 0.0
      %383 = vmatpush.msra.mxu0 0.0
      %384 = vmatpush.msra.mxu0 0.0
      %385 = vmatpush.msra.mxu0 0.0
      %386 = vmatpush.msra.mxu0 0.0
      %387 = vmatpush.msra.mxu0 0.0
      %388 = vmatpush.msra.mxu0 0.0
      %389 = vmatpush.msra.mxu0 0.0
      %390 = vmatpush.msra.mxu0 0.0
      %391 = vmatpush.msra.mxu0 0.0
      %392 = vmatpush.msra.mxu0 0.0
      %393 = vmatpush.msra.mxu0 %v175
      %394 = vmatpush.msra.mxu0 %v171
      %395 = vmatpush.msra.mxu0 %v167
      %396 = vmatpush.msra.mxu0 %v163
      %397 = vmatmul.f32.gmra.mxu0 %v359
      %v398 = vpop.f32.mrf.mxu0
      %v399 = vadd.f32 0.0, %v398
      %400 = vdwg.mxu0
      %401 = vmatpush.msra.mxu0 0.0
      %402 = vmatpush.msra.mxu0 0.0
      %403 = vmatpush.msra.mxu0 0.0
      %404 = vmatpush.msra.mxu0 0.0
      %405 = vmatpush.msra.mxu0 0.0
      %406 = vmatpush.msra.mxu0 0.0
      %407 = vmatpush.msra.mxu0 0.0
      %408 = vmatpush.msra.mxu0 0.0
      %409 = vmatpush.msra.mxu0 0.0
      %410 = vmatpush.msra.mxu0 0.0
      %411 = vmatpush.msra.mxu0 0.0
      %412 = vmatpush.msra.mxu0 0.0
      %413 = vmatpush.msra.mxu0 %v176
      %414 = vmatpush.msra.mxu0 %v172
      %415 = vmatpush.msra.mxu0 %v168
      %416 = vmatpush.msra.mxu0 %v164
      %417 = vmatmul.f32.gmra.mxu0 %v359
      %v418 = vpop.f32.mrf.mxu0
      %v419 = vadd.f32 0.0, %v418
      %420 = vdwg.mxu0
      %421 = vmatpush.msra.mxu0 0.0
      %422 = vmatpush.msra.mxu0 0.0
      %423 = vmatpush.msra.mxu0 0.0
      %424 = vmatpush.msra.mxu0 0.0
      %425 = vmatpush.msra.mxu0 0.0
      %426 = vmatpush.msra.mxu0 0.0
      %427 = vmatpush.msra.mxu0 0.0
      %428 = vmatpush.msra.mxu0 0.0
      %429 = vmatpush.msra.mxu0 0.0
      %430 = vmatpush.msra.mxu0 0.0
      %431 = vmatpush.msra.mxu0 0.0
      %432 = vmatpush.msra.mxu0 0.0
      %433 = vmatpush.msra.mxu0 %v177
      %434 = vmatpush.msra.mxu0 %v173
      %435 = vmatpush.msra.mxu0 %v169
      %436 = vmatpush.msra.mxu0 %v165
      %437 = vmatmul.f32.gmra.mxu0 %v359
      %v438 = vpop.f32.mrf.mxu0
      %v439 = vadd.f32 0.0, %v438
      %440 = vdwg.mxu0
      %v445 = vrot.slane %v399, 6
      %v446 = vrot.slane %v419, 4
      %v447 = vrot.slane %v439, 2
      %v448 = vsel %vm275, %v379, %v445
      %v449 = vsel %vm277, %v446, %v447
      %v450 = vsel %vm279, %v448, %v449
      %v452 = vadd.f32 %v357, %v450
      %v453 = vxor.u32 %v452, 2147483648
      %v454 = vmul.f32 %v453, 1.442695
      %v455 = vpow.pop %v454
      %v456 = vadd.f32 %v455, 1.0
      %v457 = vrcp.pop %v456
      %v458 = vmul.f32 %v456, %v457
      %v459 = vsub.f32 1.0, %v458
      %v460 = vmul.f32 %v457, %v459
      %v461 = vadd.f32 %v457, %v460
      %vm462 = vweird.f32 %v456
      %vm463 = vweird.f32 %v457
      %vm464 = vmor %vm462, %vm463
      %v465 = vsel %vm464, %v457, %v461
      %v466 = vand.u32 2147483647, %v456
      %vm467 = vcmp.eq.f32.partialorder %v466, 8.507059e+37
      %v468 = vand.u32 %v456, 2147483648
      %v469 = vor.u32 1.1754944e-38, %v468
      %v470 = vsel %vm467, %v469, %v465
      %v471 = vmul.f32 1.0, %v470
      %v473 = vrot.slane %v452, 2
      %v475 = vxor.u32 %v473, 2147483648
      %v476 = vmul.f32 %v475, 1.442695
      %v477 = vpow.pop %v476
      %v478 = vadd.f32 %v477, 1.0
      %v479 = vrcp.pop %v478
      %v480 = vmul.f32 %v478, %v479
      %v481 = vsub.f32 1.0, %v480
      %v482 = vmul.f32 %v479, %v481
      %v483 = vadd.f32 %v479, %v482
      %vm484 = vweird.f32 %v478
      %vm485 = vweird.f32 %v479
      %vm486 = vmor %vm484, %vm485
      %v487 = vsel %vm486, %v479, %v483
      %v488 = vand.u32 2147483647, %v478
      %vm489 = vcmp.eq.f32.partialorder %v488, 8.507059e+37
      %v490 = vand.u32 %v478, 2147483648
      %v491 = vor.u32 1.1754944e-38, %v490
      %v492 = vsel %vm489, %v491, %v487
      %v493 = vmul.f32 1.0, %v492
      %v494 = vrot.slane %v452, 4
      %v496 = vtanh.pop %v494
      %v497 = vrot.slane %v452, 6
      %v499 = vxor.u32 %v497, 2147483648
      %v500 = vmul.f32 %v499, 1.442695
      %v501 = vpow.pop %v500
      %v502 = vadd.f32 %v501, 1.0
      %v503 = vrcp.pop %v502
      %v504 = vmul.f32 %v502, %v503
      %v505 = vsub.f32 1.0, %v504
      %v506 = vmul.f32 %v503, %v505
      %v507 = vadd.f32 %v503, %v506
      %vm508 = vweird.f32 %v502
      %vm509 = vweird.f32 %v503
      %vm510 = vmor %vm508, %vm509
      %v511 = vsel %vm510, %v503, %v507
      %v512 = vand.u32 2147483647, %v502
      %vm513 = vcmp.eq.f32.partialorder %v512, 8.507059e+37
      %v514 = vand.u32 %v502, 2147483648
      %v515 = vor.u32 1.1754944e-38, %v514
      %v516 = vsel %vm513, %v515, %v511
      %v517 = vmul.f32 1.0, %v516
      %v518 = vmul.f32 %v493, %v350
      %v519 = vmul.f32 %v471, %v496
      %v520 = vadd.f32 %v518, %v519
      %v521 = vtanh.pop %v520
      %v522 = vmul.f32 %v517, %v521
      %s523 = scalar_select %p178, 2, 5
      %s524 = smul.u32 %s523, 4
      %s525 = smul.addr %s524, 2
      %s526 = scalar_lea.vmem %s152, %s525
      %v527 = vld [vmem:[%s526] sm:$0xff]
      %v529 = vsel %vm184, %v522, 0
      %531 = vmatpush.msra.mxu0 0.0
      %532 = vmatpush.msra.mxu0 0.0
      %533 = vmatpush.msra.mxu0 0.0
      %534 = vmatpush.msra.mxu0 0.0
      %535 = vmatpush.msra.mxu0 0.0
      %536 = vmatpush.msra.mxu0 0.0
      %537 = vmatpush.msra.mxu0 0.0
      %538 = vmatpush.msra.mxu0 0.0
      %539 = vmatpush.msra.mxu0 0.0
      %540 = vmatpush.msra.mxu0 0.0
      %541 = vmatpush.msra.mxu0 0.0
      %542 = vmatpush.msra.mxu0 0.0
      %543 = vmatpush.msra.mxu0 %v174
      %544 = vmatpush.msra.mxu0 %v170
      %545 = vmatpush.msra.mxu0 %v166
      %546 = vmatpush.msra.mxu0 %v162
      %547 = vmatmul.f32.gmra.mxu0 %v529
      %v548 = vpop.f32.mrf.mxu0
      %v549 = vadd.f32 0.0, %v548
      %550 = vdwg.mxu0
      %551 = vmatpush.msra.mxu0 0.0
      %552 = vmatpush.msra.mxu0 0.0
      %553 = vmatpush.msra.mxu0 0.0
      %554 = vmatpush.msra.mxu0 0.0
      %555 = vmatpush.msra.mxu0 0.0
      %556 = vmatpush.msra.mxu0 0.0
      %557 = vmatpush.msra.mxu0 0.0
      %558 = vmatpush.msra.mxu0 0.0
      %559 = vmatpush.msra.mxu0 0.0
      %560 = vmatpush.msra.mxu0 0.0
      %561 = vmatpush.msra.mxu0 0.0
      %562 = vmatpush.msra.mxu0 0.0
      %563 = vmatpush.msra.mxu0 %v175
      %564 = vmatpush.msra.mxu0 %v171
      %565 = vmatpush.msra.mxu0 %v167
      %566 = vmatpush.msra.mxu0 %v163
      %567 = vmatmul.f32.gmra.mxu0 %v529
      %v568 = vpop.f32.mrf.mxu0
      %v569 = vadd.f32 0.0, %v568
      %570 = vdwg.mxu0
      %571 = vmatpush.msra.mxu0 0.0
      %572 = vmatpush.msra.mxu0 0.0
      %573 = vmatpush.msra.mxu0 0.0
      %574 = vmatpush.msra.mxu0 0.0
      %575 = vmatpush.msra.mxu0 0.0
      %576 = vmatpush.msra.mxu0 0.0
      %577 = vmatpush.msra.mxu0 0.0
      %578 = vmatpush.msra.mxu0 0.0
      %579 = vmatpush.msra.mxu0 0.0
      %580 = vmatpush.msra.mxu0 0.0
      %581 = vmatpush.msra.mxu0 0.0
      %582 = vmatpush.msra.mxu0 0.0
      %583 = vmatpush.msra.mxu0 %v176
      %584 = vmatpush.msra.mxu0 %v172
      %585 = vmatpush.msra.mxu0 %v168
      %586 = vmatpush.msra.mxu0 %v164
      %587 = vmatmul.f32.gmra.mxu0 %v529
      %v588 = vpop.f32.mrf.mxu0
      %v589 = vadd.f32 0.0, %v588
      %590 = vdwg.mxu0
      %591 = vmatpush.msra.mxu0 0.0
      %592 = vmatpush.msra.mxu0 0.0
      %593 = vmatpush.msra.mxu0 0.0
      %594 = vmatpush.msra.mxu0 0.0
      %595 = vmatpush.msra.mxu0 0.0
      %596 = vmatpush.msra.mxu0 0.0
      %597 = vmatpush.msra.mxu0 0.0
      %598 = vmatpush.msra.mxu0 0.0
      %599 = vmatpush.msra.mxu0 0.0
      %600 = vmatpush.msra.mxu0 0.0
      %601 = vmatpush.msra.mxu0 0.0
      %602 = vmatpush.msra.mxu0 0.0
      %603 = vmatpush.msra.mxu0 %v177
      %604 = vmatpush.msra.mxu0 %v173
      %605 = vmatpush.msra.mxu0 %v169
      %606 = vmatpush.msra.mxu0 %v165
      %607 = vmatmul.f32.gmra.mxu0 %v529
      %v608 = vpop.f32.mrf.mxu0
      %v609 = vadd.f32 0.0, %v608
      %610 = vdwg.mxu0
      %v615 = vrot.slane %v569, 6
      %v616 = vrot.slane %v589, 4
      %v617 = vrot.slane %v609, 2
      %v618 = vsel %vm275, %v549, %v615
      %v619 = vsel %vm277, %v616, %v617
      %v620 = vsel %vm279, %v618, %v619
      %v622 = vadd.f32 %v527, %v620
      %v623 = vxor.u32 %v622, 2147483648
      %v624 = vmul.f32 %v623, 1.442695
      %v625 = vpow.pop %v624
      %v626 = vadd.f32 %v625, 1.0
      %v627 = vrcp.pop %v626
      %v628 = vmul.f32 %v626, %v627
      %v629 = vsub.f32 1.0, %v628
      %v630 = vmul.f32 %v627, %v629
      %v631 = vadd.f32 %v627, %v630
      %vm632 = vweird.f32 %v626
      %vm633 = vweird.f32 %v627
      %vm634 = vmor %vm632, %vm633
      %v635 = vsel %vm634, %v627, %v631
      %v636 = vand.u32 2147483647, %v626
      %vm637 = vcmp.eq.f32.partialorder %v636, 8.507059e+37
      %v638 = vand.u32 %v626, 2147483648
      %v639 = vor.u32 1.1754944e-38, %v638
      %v640 = vsel %vm637, %v639, %v635
      %v641 = vmul.f32 1.0, %v640
      %v643 = vrot.slane %v622, 2
      %v645 = vxor.u32 %v643, 2147483648
      %v646 = vmul.f32 %v645, 1.442695
      %v647 = vpow.pop %v646
      %v648 = vadd.f32 %v647, 1.0
      %v649 = vrcp.pop %v648
      %v650 = vmul.f32 %v648, %v649
      %v651 = vsub.f32 1.0, %v650
      %v652 = vmul.f32 %v649, %v651
      %v653 = vadd.f32 %v649, %v652
      %vm654 = vweird.f32 %v648
      %vm655 = vweird.f32 %v649
      %vm656 = vmor %vm654, %vm655
      %v657 = vsel %vm656, %v649, %v653
      %v658 = vand.u32 2147483647, %v648
      %vm659 = vcmp.eq.f32.partialorder %v658, 8.507059e+37
      %v660 = vand.u32 %v648, 2147483648
      %v661 = vor.u32 1.1754944e-38, %v660
      %v662 = vsel %vm659, %v661, %v657
      %v663 = vmul.f32 1.0, %v662
      %v664 = vrot.slane %v622, 4
      %v666 = vtanh.pop %v664
      %v667 = vrot.slane %v622, 6
      %v669 = vxor.u32 %v667, 2147483648
      %v670 = vmul.f32 %v669, 1.442695
      %v671 = vpow.pop %v670
      %v672 = vadd.f32 %v671, 1.0
      %v673 = vrcp.pop %v672
      %v674 = vmul.f32 %v672, %v673
      %v675 = vsub.f32 1.0, %v674
      %v676 = vmul.f32 %v673, %v675
      %v677 = vadd.f32 %v673, %v676
      %vm678 = vweird.f32 %v672
      %vm679 = vweird.f32 %v673
      %vm680 = vmor %vm678, %vm679
      %v681 = vsel %vm680, %v673, %v677
      %v682 = vand.u32 2147483647, %v672
      %vm683 = vcmp.eq.f32.partialorder %v682, 8.507059e+37
      %v684 = vand.u32 %v672, 2147483648
      %v685 = vor.u32 1.1754944e-38, %v684
      %v686 = vsel %vm683, %v685, %v681
      %v687 = vmul.f32 1.0, %v686
      %v688 = vmul.f32 %v663, %v520
      %v689 = vmul.f32 %v641, %v666
      %v690 = vadd.f32 %v688, %v689
      %v691 = vtanh.pop %v690
      %v692 = vmul.f32 %v687, %v691
      %s693 = scalar_select %p178, 3, 4
      %s694 = smul.u32 %s693, 4
      %s695 = smul.addr %s694, 2
      %s696 = scalar_lea.vmem %s152, %s695
      %v697 = vld [vmem:[%s696] sm:$0xff]
      %v699 = vsel %vm184, %v692, 0
      %701 = vmatpush.msra.mxu0 0.0
      %702 = vmatpush.msra.mxu0 0.0
      %703 = vmatpush.msra.mxu0 0.0
      %704 = vmatpush.msra.mxu0 0.0
      %705 = vmatpush.msra.mxu0 0.0
      %706 = vmatpush.msra.mxu0 0.0
      %707 = vmatpush.msra.mxu0 0.0
      %708 = vmatpush.msra.mxu0 0.0
      %709 = vmatpush.msra.mxu0 0.0
      %710 = vmatpush.msra.mxu0 0.0
      %711 = vmatpush.msra.mxu0 0.0
      %712 = vmatpush.msra.mxu0 0.0
      %713 = vmatpush.msra.mxu0 %v174
      %714 = vmatpush.msra.mxu0 %v170
      %715 = vmatpush.msra.mxu0 %v166
      %716 = vmatpush.msra.mxu0 %v162
      %717 = vmatmul.f32.gmra.mxu0 %v699
      %v718 = vpop.f32.mrf.mxu0
      %v719 = vadd.f32 0.0, %v718
      %720 = vdwg.mxu0
      %721 = vmatpush.msra.mxu0 0.0
      %722 = vmatpush.msra.mxu0 0.0
      %723 = vmatpush.msra.mxu0 0.0
      %724 = vmatpush.msra.mxu0 0.0
      %725 = vmatpush.msra.mxu0 0.0
      %726 = vmatpush.msra.mxu0 0.0
      %727 = vmatpush.msra.mxu0 0.0
      %728 = vmatpush.msra.mxu0 0.0
      %729 = vmatpush.msra.mxu0 0.0
      %730 = vmatpush.msra.mxu0 0.0
      %731 = vmatpush.msra.mxu0 0.0
      %732 = vmatpush.msra.mxu0 0.0
      %733 = vmatpush.msra.mxu0 %v175
      %734 = vmatpush.msra.mxu0 %v171
      %735 = vmatpush.msra.mxu0 %v167
      %736 = vmatpush.msra.mxu0 %v163
      %737 = vmatmul.f32.gmra.mxu0 %v699
      %v738 = vpop.f32.mrf.mxu0
      %v739 = vadd.f32 0.0, %v738
      %740 = vdwg.mxu0
      %741 = vmatpush.msra.mxu0 0.0
      %742 = vmatpush.msra.mxu0 0.0
      %743 = vmatpush.msra.mxu0 0.0
      %744 = vmatpush.msra.mxu0 0.0
      %745 = vmatpush.msra.mxu0 0.0
      %746 = vmatpush.msra.mxu0 0.0
      %747 = vmatpush.msra.mxu0 0.0
      %748 = vmatpush.msra.mxu0 0.0
      %749 = vmatpush.msra.mxu0 0.0
      %750 = vmatpush.msra.mxu0 0.0
      %751 = vmatpush.msra.mxu0 0.0
      %752 = vmatpush.msra.mxu0 0.0
      %753 = vmatpush.msra.mxu0 %v176
      %754 = vmatpush.msra.mxu0 %v172
      %755 = vmatpush.msra.mxu0 %v168
      %756 = vmatpush.msra.mxu0 %v164
      %757 = vmatmul.f32.gmra.mxu0 %v699
      %v758 = vpop.f32.mrf.mxu0
      %v759 = vadd.f32 0.0, %v758
      %760 = vdwg.mxu0
      %761 = vmatpush.msra.mxu0 0.0
      %762 = vmatpush.msra.mxu0 0.0
      %763 = vmatpush.msra.mxu0 0.0
      %764 = vmatpush.msra.mxu0 0.0
      %765 = vmatpush.msra.mxu0 0.0
      %766 = vmatpush.msra.mxu0 0.0
      %767 = vmatpush.msra.mxu0 0.0
      %768 = vmatpush.msra.mxu0 0.0
      %769 = vmatpush.msra.mxu0 0.0
      %770 = vmatpush.msra.mxu0 0.0
      %771 = vmatpush.msra.mxu0 0.0
      %772 = vmatpush.msra.mxu0 0.0
      %773 = vmatpush.msra.mxu0 %v177
      %774 = vmatpush.msra.mxu0 %v173
      %775 = vmatpush.msra.mxu0 %v169
      %776 = vmatpush.msra.mxu0 %v165
      %777 = vmatmul.f32.gmra.mxu0 %v699
      %v778 = vpop.f32.mrf.mxu0
      %v779 = vadd.f32 0.0, %v778
      %780 = vdwg.mxu0
      %v785 = vrot.slane %v739, 6
      %v786 = vrot.slane %v759, 4
      %v787 = vrot.slane %v779, 2
      %v788 = vsel %vm275, %v719, %v785
      %v789 = vsel %vm277, %v786, %v787
      %v790 = vsel %vm279, %v788, %v789
      %v792 = vadd.f32 %v697, %v790
      %v793 = vxor.u32 %v792, 2147483648
      %v794 = vmul.f32 %v793, 1.442695
      %v795 = vpow.pop %v794
      %v796 = vadd.f32 %v795, 1.0
      %v797 = vrcp.pop %v796
      %v798 = vmul.f32 %v796, %v797
      %v799 = vsub.f32 1.0, %v798
      %v800 = vmul.f32 %v797, %v799
      %v801 = vadd.f32 %v797, %v800
      %vm802 = vweird.f32 %v796
      %vm803 = vweird.f32 %v797
      %vm804 = vmor %vm802, %vm803
      %v805 = vsel %vm804, %v797, %v801
      %v806 = vand.u32 2147483647, %v796
      %vm807 = vcmp.eq.f32.partialorder %v806, 8.507059e+37
      %v808 = vand.u32 %v796, 2147483648
      %v809 = vor.u32 1.1754944e-38, %v808
      %v810 = vsel %vm807, %v809, %v805
      %v811 = vmul.f32 1.0, %v810
      %v813 = vrot.slane %v792, 2
      %v815 = vxor.u32 %v813, 2147483648
      %v816 = vmul.f32 %v815, 1.442695
      %v817 = vpow.pop %v816
      %v818 = vadd.f32 %v817, 1.0
      %v819 = vrcp.pop %v818
      %v820 = vmul.f32 %v818, %v819
      %v821 = vsub.f32 1.0, %v820
      %v822 = vmul.f32 %v819, %v821
      %v823 = vadd.f32 %v819, %v822
      %vm824 = vweird.f32 %v818
      %vm825 = vweird.f32 %v819
      %vm826 = vmor %vm824, %vm825
      %v827 = vsel %vm826, %v819, %v823
      %v828 = vand.u32 2147483647, %v818
      %vm829 = vcmp.eq.f32.partialorder %v828, 8.507059e+37
      %v830 = vand.u32 %v818, 2147483648
      %v831 = vor.u32 1.1754944e-38, %v830
      %v832 = vsel %vm829, %v831, %v827
      %v833 = vmul.f32 1.0, %v832
      %v834 = vrot.slane %v792, 4
      %v836 = vtanh.pop %v834
      %v837 = vrot.slane %v792, 6
      %v839 = vxor.u32 %v837, 2147483648
      %v840 = vmul.f32 %v839, 1.442695
      %v841 = vpow.pop %v840
      %v842 = vadd.f32 %v841, 1.0
      %v843 = vrcp.pop %v842
      %v844 = vmul.f32 %v842, %v843
      %v845 = vsub.f32 1.0, %v844
      %v846 = vmul.f32 %v843, %v845
      %v847 = vadd.f32 %v843, %v846
      %vm848 = vweird.f32 %v842
      %vm849 = vweird.f32 %v843
      %vm850 = vmor %vm848, %vm849
      %v851 = vsel %vm850, %v843, %v847
      %v852 = vand.u32 2147483647, %v842
      %vm853 = vcmp.eq.f32.partialorder %v852, 8.507059e+37
      %v854 = vand.u32 %v842, 2147483648
      %v855 = vor.u32 1.1754944e-38, %v854
      %v856 = vsel %vm853, %v855, %v851
      %v857 = vmul.f32 1.0, %v856
      %v858 = vmul.f32 %v833, %v690
      %v859 = vmul.f32 %v811, %v836
      %v860 = vadd.f32 %v858, %v859
      %v861 = vtanh.pop %v860
      %v862 = vmul.f32 %v857, %v861
      %s863 = scalar_select %p178, 4, 3
      %s864 = smul.u32 %s863, 4
      %s865 = smul.addr %s864, 2
      %s866 = scalar_lea.vmem %s152, %s865
      %v867 = vld [vmem:[%s866] sm:$0xff]
      %v869 = vsel %vm184, %v862, 0
      %871 = vmatpush.msra.mxu0 0.0
      %872 = vmatpush.msra.mxu0 0.0
      %873 = vmatpush.msra.mxu0 0.0
      %874 = vmatpush.msra.mxu0 0.0
      %875 = vmatpush.msra.mxu0 0.0
      %876 = vmatpush.msra.mxu0 0.0
      %877 = vmatpush.msra.mxu0 0.0
      %878 = vmatpush.msra.mxu0 0.0
      %879 = vmatpush.msra.mxu0 0.0
      %880 = vmatpush.msra.mxu0 0.0
      %881 = vmatpush.msra.mxu0 0.0
      %882 = vmatpush.msra.mxu0 0.0
      %883 = vmatpush.msra.mxu0 %v174
      %884 = vmatpush.msra.mxu0 %v170
      %885 = vmatpush.msra.mxu0 %v166
      %886 = vmatpush.msra.mxu0 %v162
      %887 = vmatmul.f32.gmra.mxu0 %v869
      %v888 = vpop.f32.mrf.mxu0
      %v889 = vadd.f32 0.0, %v888
      %890 = vdwg.mxu0
      %891 = vmatpush.msra.mxu0 0.0
      %892 = vmatpush.msra.mxu0 0.0
      %893 = vmatpush.msra.mxu0 0.0
      %894 = vmatpush.msra.mxu0 0.0
      %895 = vmatpush.msra.mxu0 0.0
      %896 = vmatpush.msra.mxu0 0.0
      %897 = vmatpush.msra.mxu0 0.0
      %898 = vmatpush.msra.mxu0 0.0
      %899 = vmatpush.msra.mxu0 0.0
      %900 = vmatpush.msra.mxu0 0.0
      %901 = vmatpush.msra.mxu0 0.0
      %902 = vmatpush.msra.mxu0 0.0
      %903 = vmatpush.msra.mxu0 %v175
      %904 = vmatpush.msra.mxu0 %v171
      %905 = vmatpush.msra.mxu0 %v167
      %906 = vmatpush.msra.mxu0 %v163
      %907 = vmatmul.f32.gmra.mxu0 %v869
      %v908 = vpop.f32.mrf.mxu0
      %v909 = vadd.f32 0.0, %v908
      %910 = vdwg.mxu0
      %911 = vmatpush.msra.mxu0 0.0
      %912 = vmatpush.msra.mxu0 0.0
      %913 = vmatpush.msra.mxu0 0.0
      %914 = vmatpush.msra.mxu0 0.0
      %915 = vmatpush.msra.mxu0 0.0
      %916 = vmatpush.msra.mxu0 0.0
      %917 = vmatpush.msra.mxu0 0.0
      %918 = vmatpush.msra.mxu0 0.0
      %919 = vmatpush.msra.mxu0 0.0
      %920 = vmatpush.msra.mxu0 0.0
      %921 = vmatpush.msra.mxu0 0.0
      %922 = vmatpush.msra.mxu0 0.0
      %923 = vmatpush.msra.mxu0 %v176
      %924 = vmatpush.msra.mxu0 %v172
      %925 = vmatpush.msra.mxu0 %v168
      %926 = vmatpush.msra.mxu0 %v164
      %927 = vmatmul.f32.gmra.mxu0 %v869
      %v928 = vpop.f32.mrf.mxu0
      %v929 = vadd.f32 0.0, %v928
      %930 = vdwg.mxu0
      %931 = vmatpush.msra.mxu0 0.0
      %932 = vmatpush.msra.mxu0 0.0
      %933 = vmatpush.msra.mxu0 0.0
      %934 = vmatpush.msra.mxu0 0.0
      %935 = vmatpush.msra.mxu0 0.0
      %936 = vmatpush.msra.mxu0 0.0
      %937 = vmatpush.msra.mxu0 0.0
      %938 = vmatpush.msra.mxu0 0.0
      %939 = vmatpush.msra.mxu0 0.0
      %940 = vmatpush.msra.mxu0 0.0
      %941 = vmatpush.msra.mxu0 0.0
      %942 = vmatpush.msra.mxu0 0.0
      %943 = vmatpush.msra.mxu0 %v177
      %944 = vmatpush.msra.mxu0 %v173
      %945 = vmatpush.msra.mxu0 %v169
      %946 = vmatpush.msra.mxu0 %v165
      %947 = vmatmul.f32.gmra.mxu0 %v869
      %v948 = vpop.f32.mrf.mxu0
      %v949 = vadd.f32 0.0, %v948
      %950 = vdwg.mxu0
      %v955 = vrot.slane %v909, 6
      %v956 = vrot.slane %v929, 4
      %v957 = vrot.slane %v949, 2
      %v958 = vsel %vm275, %v889, %v955
      %v959 = vsel %vm277, %v956, %v957
      %v960 = vsel %vm279, %v958, %v959
      %v962 = vadd.f32 %v867, %v960
      %v963 = vxor.u32 %v962, 2147483648
      %v964 = vmul.f32 %v963, 1.442695
      %v965 = vpow.pop %v964
      %v966 = vadd.f32 %v965, 1.0
      %v967 = vrcp.pop %v966
      %v968 = vmul.f32 %v966, %v967
      %v969 = vsub.f32 1.0, %v968
      %v970 = vmul.f32 %v967, %v969
      %v971 = vadd.f32 %v967, %v970
      %vm972 = vweird.f32 %v966
      %vm973 = vweird.f32 %v967
      %vm974 = vmor %vm972, %vm973
      %v975 = vsel %vm974, %v967, %v971
      %v976 = vand.u32 2147483647, %v966
      %vm977 = vcmp.eq.f32.partialorder %v976, 8.507059e+37
      %v978 = vand.u32 %v966, 2147483648
      %v979 = vor.u32 1.1754944e-38, %v978
      %v980 = vsel %vm977, %v979, %v975
      %v981 = vmul.f32 1.0, %v980
      %v983 = vrot.slane %v962, 2
      %v985 = vxor.u32 %v983, 2147483648
      %v986 = vmul.f32 %v985, 1.442695
      %v987 = vpow.pop %v986
      %v988 = vadd.f32 %v987, 1.0
      %v989 = vrcp.pop %v988
      %v990 = vmul.f32 %v988, %v989
      %v991 = vsub.f32 1.0, %v990
      %v992 = vmul.f32 %v989, %v991
      %v993 = vadd.f32 %v989, %v992
      %vm994 = vweird.f32 %v988
      %vm995 = vweird.f32 %v989
      %vm996 = vmor %vm994, %vm995
      %v997 = vsel %vm996, %v989, %v993
      %v998 = vand.u32 2147483647, %v988
      %vm999 = vcmp.eq.f32.partialorder %v998, 8.507059e+37
      %v1000 = vand.u32 %v988, 2147483648
      %v1001 = vor.u32 1.1754944e-38, %v1000
      %v1002 = vsel %vm999, %v1001, %v997
      %v1003 = vmul.f32 1.0, %v1002
      %v1004 = vrot.slane %v962, 4
      %v1006 = vtanh.pop %v1004
      %v1007 = vrot.slane %v962, 6
      %v1009 = vxor.u32 %v1007, 2147483648
      %v1010 = vmul.f32 %v1009, 1.442695
      %v1011 = vpow.pop %v1010
      %v1012 = vadd.f32 %v1011, 1.0
      %v1013 = vrcp.pop %v1012
      %v1014 = vmul.f32 %v1012, %v1013
      %v1015 = vsub.f32 1.0, %v1014
      %v1016 = vmul.f32 %v1013, %v1015
      %v1017 = vadd.f32 %v1013, %v1016
      %vm1018 = vweird.f32 %v1012
      %vm1019 = vweird.f32 %v1013
      %vm1020 = vmor %vm1018, %vm1019
      %v1021 = vsel %vm1020, %v1013, %v1017
      %v1022 = vand.u32 2147483647, %v1012
      %vm1023 = vcmp.eq.f32.partialorder %v1022, 8.507059e+37
      %v1024 = vand.u32 %v1012, 2147483648
      %v1025 = vor.u32 1.1754944e-38, %v1024
      %v1026 = vsel %vm1023, %v1025, %v1021
      %v1027 = vmul.f32 1.0, %v1026
      %v1028 = vmul.f32 %v1003, %v860
      %v1029 = vmul.f32 %v981, %v1006
      %v1030 = vadd.f32 %v1028, %v1029
      %v1031 = vtanh.pop %v1030
      %v1032 = vmul.f32 %v1027, %v1031
      %s1033 = scalar_select %p178, 5, 2
      %s1034 = smul.u32 %s1033, 4
      %s1035 = smul.addr %s1034, 2
      %s1036 = scalar_lea.vmem %s152, %s1035
      %v1037 = vld [vmem:[%s1036] sm:$0xff]
      %v1039 = vsel %vm184, %v1032, 0
      %1041 = vmatpush.msra.mxu0 0.0
      %1042 = vmatpush.msra.mxu0 0.0
      %1043 = vmatpush.msra.mxu0 0.0
      %1044 = vmatpush.msra.mxu0 0.0
      %1045 = vmatpush.msra.mxu0 0.0
      %1046 = vmatpush.msra.mxu0 0.0
      %1047 = vmatpush.msra.mxu0 0.0
      %1048 = vmatpush.msra.mxu0 0.0
      %1049 = vmatpush.msra.mxu0 0.0
      %1050 = vmatpush.msra.mxu0 0.0
      %1051 = vmatpush.msra.mxu0 0.0
      %1052 = vmatpush.msra.mxu0 0.0
      %1053 = vmatpush.msra.mxu0 %v174
      %1054 = vmatpush.msra.mxu0 %v170
      %1055 = vmatpush.msra.mxu0 %v166
      %1056 = vmatpush.msra.mxu0 %v162
      %1057 = vmatmul.f32.gmra.mxu0 %v1039
      %v1058 = vpop.f32.mrf.mxu0
      %v1059 = vadd.f32 0.0, %v1058
      %1060 = vdwg.mxu0
      %1061 = vmatpush.msra.mxu0 0.0
      %1062 = vmatpush.msra.mxu0 0.0
      %1063 = vmatpush.msra.mxu0 0.0
      %1064 = vmatpush.msra.mxu0 0.0
      %1065 = vmatpush.msra.mxu0 0.0
      %1066 = vmatpush.msra.mxu0 0.0
      %1067 = vmatpush.msra.mxu0 0.0
      %1068 = vmatpush.msra.mxu0 0.0
      %1069 = vmatpush.msra.mxu0 0.0
      %1070 = vmatpush.msra.mxu0 0.0
      %1071 = vmatpush.msra.mxu0 0.0
      %1072 = vmatpush.msra.mxu0 0.0
      %1073 = vmatpush.msra.mxu0 %v175
      %1074 = vmatpush.msra.mxu0 %v171
      %1075 = vmatpush.msra.mxu0 %v167
      %1076 = vmatpush.msra.mxu0 %v163
      %1077 = vmatmul.f32.gmra.mxu0 %v1039
      %v1078 = vpop.f32.mrf.mxu0
      %v1079 = vadd.f32 0.0, %v1078
      %1080 = vdwg.mxu0
      %1081 = vmatpush.msra.mxu0 0.0
      %1082 = vmatpush.msra.mxu0 0.0
      %1083 = vmatpush.msra.mxu0 0.0
      %1084 = vmatpush.msra.mxu0 0.0
      %1085 = vmatpush.msra.mxu0 0.0
      %1086 = vmatpush.msra.mxu0 0.0
      %1087 = vmatpush.msra.mxu0 0.0
      %1088 = vmatpush.msra.mxu0 0.0
      %1089 = vmatpush.msra.mxu0 0.0
      %1090 = vmatpush.msra.mxu0 0.0
      %1091 = vmatpush.msra.mxu0 0.0
      %1092 = vmatpush.msra.mxu0 0.0
      %1093 = vmatpush.msra.mxu0 %v176
      %1094 = vmatpush.msra.mxu0 %v172
      %1095 = vmatpush.msra.mxu0 %v168
      %1096 = vmatpush.msra.mxu0 %v164
      %1097 = vmatmul.f32.gmra.mxu0 %v1039
      %v1098 = vpop.f32.mrf.mxu0
      %v1099 = vadd.f32 0.0, %v1098
      %1100 = vdwg.mxu0
      %1101 = vmatpush.msra.mxu0 0.0
      %1102 = vmatpush.msra.mxu0 0.0
      %1103 = vmatpush.msra.mxu0 0.0
      %1104 = vmatpush.msra.mxu0 0.0
      %1105 = vmatpush.msra.mxu0 0.0
      %1106 = vmatpush.msra.mxu0 0.0
      %1107 = vmatpush.msra.mxu0 0.0
      %1108 = vmatpush.msra.mxu0 0.0
      %1109 = vmatpush.msra.mxu0 0.0
      %1110 = vmatpush.msra.mxu0 0.0
      %1111 = vmatpush.msra.mxu0 0.0
      %1112 = vmatpush.msra.mxu0 0.0
      %1113 = vmatpush.msra.mxu0 %v177
      %1114 = vmatpush.msra.mxu0 %v173
      %1115 = vmatpush.msra.mxu0 %v169
      %1116 = vmatpush.msra.mxu0 %v165
      %1117 = vmatmul.f32.gmra.mxu0 %v1039
      %v1118 = vpop.f32.mrf.mxu0
      %v1119 = vadd.f32 0.0, %v1118
      %1120 = vdwg.mxu0
      %v1125 = vrot.slane %v1079, 6
      %v1126 = vrot.slane %v1099, 4
      %v1127 = vrot.slane %v1119, 2
      %v1128 = vsel %vm275, %v1059, %v1125
      %v1129 = vsel %vm277, %v1126, %v1127
      %v1130 = vsel %vm279, %v1128, %v1129
      %v1132 = vadd.f32 %v1037, %v1130
      %v1133 = vxor.u32 %v1132, 2147483648
      %v1134 = vmul.f32 %v1133, 1.442695
      %v1135 = vpow.pop %v1134
      %v1136 = vadd.f32 %v1135, 1.0
      %v1137 = vrcp.pop %v1136
      %v1138 = vmul.f32 %v1136, %v1137
      %v1139 = vsub.f32 1.0, %v1138
      %v1140 = vmul.f32 %v1137, %v1139
      %v1141 = vadd.f32 %v1137, %v1140
      %vm1142 = vweird.f32 %v1136
      %vm1143 = vweird.f32 %v1137
      %vm1144 = vmor %vm1142, %vm1143
      %v1145 = vsel %vm1144, %v1137, %v1141
      %v1146 = vand.u32 2147483647, %v1136
      %vm1147 = vcmp.eq.f32.partialorder %v1146, 8.507059e+37
      %v1148 = vand.u32 %v1136, 2147483648
      %v1149 = vor.u32 1.1754944e-38, %v1148
      %v1150 = vsel %vm1147, %v1149, %v1145
      %v1151 = vmul.f32 1.0, %v1150
      %v1153 = vrot.slane %v1132, 2
      %v1155 = vxor.u32 %v1153, 2147483648
      %v1156 = vmul.f32 %v1155, 1.442695
      %v1157 = vpow.pop %v1156
      %v1158 = vadd.f32 %v1157, 1.0
      %v1159 = vrcp.pop %v1158
      %v1160 = vmul.f32 %v1158, %v1159
      %v1161 = vsub.f32 1.0, %v1160
      %v1162 = vmul.f32 %v1159, %v1161
      %v1163 = vadd.f32 %v1159, %v1162
      %vm1164 = vweird.f32 %v1158
      %vm1165 = vweird.f32 %v1159
      %vm1166 = vmor %vm1164, %vm1165
      %v1167 = vsel %vm1166, %v1159, %v1163
      %v1168 = vand.u32 2147483647, %v1158
      %vm1169 = vcmp.eq.f32.partialorder %v1168, 8.507059e+37
      %v1170 = vand.u32 %v1158, 2147483648
      %v1171 = vor.u32 1.1754944e-38, %v1170
      %v1172 = vsel %vm1169, %v1171, %v1167
      %v1173 = vmul.f32 1.0, %v1172
      %v1174 = vrot.slane %v1132, 4
      %v1176 = vtanh.pop %v1174
      %v1177 = vrot.slane %v1132, 6
      %v1179 = vxor.u32 %v1177, 2147483648
      %v1180 = vmul.f32 %v1179, 1.442695
      %v1181 = vpow.pop %v1180
      %v1182 = vadd.f32 %v1181, 1.0
      %v1183 = vrcp.pop %v1182
      %v1184 = vmul.f32 %v1182, %v1183
      %v1185 = vsub.f32 1.0, %v1184
      %v1186 = vmul.f32 %v1183, %v1185
      %v1187 = vadd.f32 %v1183, %v1186
      %vm1188 = vweird.f32 %v1182
      %vm1189 = vweird.f32 %v1183
      %vm1190 = vmor %vm1188, %vm1189
      %v1191 = vsel %vm1190, %v1183, %v1187
      %v1192 = vand.u32 2147483647, %v1182
      %vm1193 = vcmp.eq.f32.partialorder %v1192, 8.507059e+37
      %v1194 = vand.u32 %v1182, 2147483648
      %v1195 = vor.u32 1.1754944e-38, %v1194
      %v1196 = vsel %vm1193, %v1195, %v1191
      %v1197 = vmul.f32 1.0, %v1196
      %v1198 = vmul.f32 %v1173, %v1030
      %v1199 = vmul.f32 %v1151, %v1176
      %v1200 = vadd.f32 %v1198, %v1199
      %v1201 = vtanh.pop %v1200
      %v1202 = vmul.f32 %v1197, %v1201
      %s1203 = scalar_select %p178, 6, 1
      %s1204 = smul.u32 %s1203, 4
      %s1205 = smul.addr %s1204, 2
      %s1206 = scalar_lea.vmem %s152, %s1205
      %v1207 = vld [vmem:[%s1206] sm:$0xff]
      %v1209 = vsel %vm184, %v1202, 0
      %1211 = vmatpush.msra.mxu0 0.0
      %1212 = vmatpush.msra.mxu0 0.0
      %1213 = vmatpush.msra.mxu0 0.0
      %1214 = vmatpush.msra.mxu0 0.0
      %1215 = vmatpush.msra.mxu0 0.0
      %1216 = vmatpush.msra.mxu0 0.0
      %1217 = vmatpush.msra.mxu0 0.0
      %1218 = vmatpush.msra.mxu0 0.0
      %1219 = vmatpush.msra.mxu0 0.0
      %1220 = vmatpush.msra.mxu0 0.0
      %1221 = vmatpush.msra.mxu0 0.0
      %1222 = vmatpush.msra.mxu0 0.0
      %1223 = vmatpush.msra.mxu0 %v174
      %1224 = vmatpush.msra.mxu0 %v170
      %1225 = vmatpush.msra.mxu0 %v166
      %1226 = vmatpush.msra.mxu0 %v162
      %1227 = vmatmul.f32.gmra.mxu0 %v1209
      %v1228 = vpop.f32.mrf.mxu0
      %v1229 = vadd.f32 0.0, %v1228
      %1230 = vdwg.mxu0
      %1231 = vmatpush.msra.mxu0 0.0
      %1232 = vmatpush.msra.mxu0 0.0
      %1233 = vmatpush.msra.mxu0 0.0
      %1234 = vmatpush.msra.mxu0 0.0
      %1235 = vmatpush.msra.mxu0 0.0
      %1236 = vmatpush.msra.mxu0 0.0
      %1237 = vmatpush.msra.mxu0 0.0
      %1238 = vmatpush.msra.mxu0 0.0
      %1239 = vmatpush.msra.mxu0 0.0
      %1240 = vmatpush.msra.mxu0 0.0
      %1241 = vmatpush.msra.mxu0 0.0
      %1242 = vmatpush.msra.mxu0 0.0
      %1243 = vmatpush.msra.mxu0 %v175
      %1244 = vmatpush.msra.mxu0 %v171
      %1245 = vmatpush.msra.mxu0 %v167
      %1246 = vmatpush.msra.mxu0 %v163
      %1247 = vmatmul.f32.gmra.mxu0 %v1209
      %v1248 = vpop.f32.mrf.mxu0
      %v1249 = vadd.f32 0.0, %v1248
      %1250 = vdwg.mxu0
      %1251 = vmatpush.msra.mxu0 0.0
      %1252 = vmatpush.msra.mxu0 0.0
      %1253 = vmatpush.msra.mxu0 0.0
      %1254 = vmatpush.msra.mxu0 0.0
      %1255 = vmatpush.msra.mxu0 0.0
      %1256 = vmatpush.msra.mxu0 0.0
      %1257 = vmatpush.msra.mxu0 0.0
      %1258 = vmatpush.msra.mxu0 0.0
      %1259 = vmatpush.msra.mxu0 0.0
      %1260 = vmatpush.msra.mxu0 0.0
      %1261 = vmatpush.msra.mxu0 0.0
      %1262 = vmatpush.msra.mxu0 0.0
      %1263 = vmatpush.msra.mxu0 %v176
      %1264 = vmatpush.msra.mxu0 %v172
      %1265 = vmatpush.msra.mxu0 %v168
      %1266 = vmatpush.msra.mxu0 %v164
      %1267 = vmatmul.f32.gmra.mxu0 %v1209
      %v1268 = vpop.f32.mrf.mxu0
      %v1269 = vadd.f32 0.0, %v1268
      %1270 = vdwg.mxu0
      %1271 = vmatpush.msra.mxu0 0.0
      %1272 = vmatpush.msra.mxu0 0.0
      %1273 = vmatpush.msra.mxu0 0.0
      %1274 = vmatpush.msra.mxu0 0.0
      %1275 = vmatpush.msra.mxu0 0.0
      %1276 = vmatpush.msra.mxu0 0.0
      %1277 = vmatpush.msra.mxu0 0.0
      %1278 = vmatpush.msra.mxu0 0.0
      %1279 = vmatpush.msra.mxu0 0.0
      %1280 = vmatpush.msra.mxu0 0.0
      %1281 = vmatpush.msra.mxu0 0.0
      %1282 = vmatpush.msra.mxu0 0.0
      %1283 = vmatpush.msra.mxu0 %v177
      %1284 = vmatpush.msra.mxu0 %v173
      %1285 = vmatpush.msra.mxu0 %v169
      %1286 = vmatpush.msra.mxu0 %v165
      %1287 = vmatmul.f32.gmra.mxu0 %v1209
      %v1288 = vpop.f32.mrf.mxu0
      %v1289 = vadd.f32 0.0, %v1288
      %1290 = vdwg.mxu0
      %v1295 = vrot.slane %v1249, 6
      %v1296 = vrot.slane %v1269, 4
      %v1297 = vrot.slane %v1289, 2
      %v1298 = vsel %vm275, %v1229, %v1295
      %v1299 = vsel %vm277, %v1296, %v1297
      %v1300 = vsel %vm279, %v1298, %v1299
      %v1302 = vadd.f32 %v1207, %v1300
      %v1303 = vxor.u32 %v1302, 2147483648
      %v1304 = vmul.f32 %v1303, 1.442695
      %v1305 = vpow.pop %v1304
      %v1306 = vadd.f32 %v1305, 1.0
      %v1307 = vrcp.pop %v1306
      %v1308 = vmul.f32 %v1306, %v1307
      %v1309 = vsub.f32 1.0, %v1308
      %v1310 = vmul.f32 %v1307, %v1309
      %v1311 = vadd.f32 %v1307, %v1310
      %vm1312 = vweird.f32 %v1306
      %vm1313 = vweird.f32 %v1307
      %vm1314 = vmor %vm1312, %vm1313
      %v1315 = vsel %vm1314, %v1307, %v1311
      %v1316 = vand.u32 2147483647, %v1306
      %vm1317 = vcmp.eq.f32.partialorder %v1316, 8.507059e+37
      %v1318 = vand.u32 %v1306, 2147483648
      %v1319 = vor.u32 1.1754944e-38, %v1318
      %v1320 = vsel %vm1317, %v1319, %v1315
      %v1321 = vmul.f32 1.0, %v1320
      %v1323 = vrot.slane %v1302, 2
      %v1325 = vxor.u32 %v1323, 2147483648
      %v1326 = vmul.f32 %v1325, 1.442695
      %v1327 = vpow.pop %v1326
      %v1328 = vadd.f32 %v1327, 1.0
      %v1329 = vrcp.pop %v1328
      %v1330 = vmul.f32 %v1328, %v1329
      %v1331 = vsub.f32 1.0, %v1330
      %v1332 = vmul.f32 %v1329, %v1331
      %v1333 = vadd.f32 %v1329, %v1332
      %vm1334 = vweird.f32 %v1328
      %vm1335 = vweird.f32 %v1329
      %vm1336 = vmor %vm1334, %vm1335
      %v1337 = vsel %vm1336, %v1329, %v1333
      %v1338 = vand.u32 2147483647, %v1328
      %vm1339 = vcmp.eq.f32.partialorder %v1338, 8.507059e+37
      %v1340 = vand.u32 %v1328, 2147483648
      %v1341 = vor.u32 1.1754944e-38, %v1340
      %v1342 = vsel %vm1339, %v1341, %v1337
      %v1343 = vmul.f32 1.0, %v1342
      %v1344 = vrot.slane %v1302, 4
      %v1346 = vtanh.pop %v1344
      %v1347 = vrot.slane %v1302, 6
      %v1349 = vxor.u32 %v1347, 2147483648
      %v1350 = vmul.f32 %v1349, 1.442695
      %v1351 = vpow.pop %v1350
      %v1352 = vadd.f32 %v1351, 1.0
      %v1353 = vrcp.pop %v1352
      %v1354 = vmul.f32 %v1352, %v1353
      %v1355 = vsub.f32 1.0, %v1354
      %v1356 = vmul.f32 %v1353, %v1355
      %v1357 = vadd.f32 %v1353, %v1356
      %vm1358 = vweird.f32 %v1352
      %vm1359 = vweird.f32 %v1353
      %vm1360 = vmor %vm1358, %vm1359
      %v1361 = vsel %vm1360, %v1353, %v1357
      %v1362 = vand.u32 2147483647, %v1352
      %vm1363 = vcmp.eq.f32.partialorder %v1362, 8.507059e+37
      %v1364 = vand.u32 %v1352, 2147483648
      %v1365 = vor.u32 1.1754944e-38, %v1364
      %v1366 = vsel %vm1363, %v1365, %v1361
      %v1367 = vmul.f32 1.0, %v1366
      %v1368 = vmul.f32 %v1343, %v1200
      %v1369 = vmul.f32 %v1321, %v1346
      %v1370 = vadd.f32 %v1368, %v1369
      %v1371 = vtanh.pop %v1370
      %v1372 = vmul.f32 %v1367, %v1371
      %s1373 = scalar_select %p178, 7, 0
      %s1374 = smul.u32 %s1373, 4
      %s1375 = smul.addr %s1374, 2
      %s1376 = scalar_lea.vmem %s152, %s1375
      %v1377 = vld [vmem:[%s1376] sm:$0xff]
      %v1379 = vsel %vm184, %v1372, 0
      %1381 = vmatpush.msra.mxu0 0.0
      %1382 = vmatpush.msra.mxu0 0.0
      %1383 = vmatpush.msra.mxu0 0.0
      %1384 = vmatpush.msra.mxu0 0.0
      %1385 = vmatpush.msra.mxu0 0.0
      %1386 = vmatpush.msra.mxu0 0.0
      %1387 = vmatpush.msra.mxu0 0.0
      %1388 = vmatpush.msra.mxu0 0.0
      %1389 = vmatpush.msra.mxu0 0.0
      %1390 = vmatpush.msra.mxu0 0.0
      %1391 = vmatpush.msra.mxu0 0.0
      %1392 = vmatpush.msra.mxu0 0.0
      %1393 = vmatpush.msra.mxu0 %v174
      %1394 = vmatpush.msra.mxu0 %v170
      %1395 = vmatpush.msra.mxu0 %v166
      %1396 = vmatpush.msra.mxu0 %v162
      %1397 = vmatmul.f32.gmra.mxu0 %v1379
      %v1398 = vpop.f32.mrf.mxu0
      %v1399 = vadd.f32 0.0, %v1398
      %1400 = vdwg.mxu0
      %1401 = vmatpush.msra.mxu0 0.0
      %1402 = vmatpush.msra.mxu0 0.0
      %1403 = vmatpush.msra.mxu0 0.0
      %1404 = vmatpush.msra.mxu0 0.0
      %1405 = vmatpush.msra.mxu0 0.0
      %1406 = vmatpush.msra.mxu0 0.0
      %1407 = vmatpush.msra.mxu0 0.0
      %1408 = vmatpush.msra.mxu0 0.0
      %1409 = vmatpush.msra.mxu0 0.0
      %1410 = vmatpush.msra.mxu0 0.0
      %1411 = vmatpush.msra.mxu0 0.0
      %1412 = vmatpush.msra.mxu0 0.0
      %1413 = vmatpush.msra.mxu0 %v175
      %1414 = vmatpush.msra.mxu0 %v171
      %1415 = vmatpush.msra.mxu0 %v167
      %1416 = vmatpush.msra.mxu0 %v163
      %1417 = vmatmul.f32.gmra.mxu0 %v1379
      %v1418 = vpop.f32.mrf.mxu0
      %v1419 = vadd.f32 0.0, %v1418
      %1420 = vdwg.mxu0
      %1421 = vmatpush.msra.mxu0 0.0
      %1422 = vmatpush.msra.mxu0 0.0
      %1423 = vmatpush.msra.mxu0 0.0
      %1424 = vmatpush.msra.mxu0 0.0
      %1425 = vmatpush.msra.mxu0 0.0
      %1426 = vmatpush.msra.mxu0 0.0
      %1427 = vmatpush.msra.mxu0 0.0
      %1428 = vmatpush.msra.mxu0 0.0
      %1429 = vmatpush.msra.mxu0 0.0
      %1430 = vmatpush.msra.mxu0 0.0
      %1431 = vmatpush.msra.mxu0 0.0
      %1432 = vmatpush.msra.mxu0 0.0
      %1433 = vmatpush.msra.mxu0 %v176
      %1434 = vmatpush.msra.mxu0 %v172
      %1435 = vmatpush.msra.mxu0 %v168
      %1436 = vmatpush.msra.mxu0 %v164
      %1437 = vmatmul.f32.gmra.mxu0 %v1379
      %v1438 = vpop.f32.mrf.mxu0
      %v1439 = vadd.f32 0.0, %v1438
      %1440 = vdwg.mxu0
      %1441 = vmatpush.msra.mxu0 0.0
      %1442 = vmatpush.msra.mxu0 0.0
      %1443 = vmatpush.msra.mxu0 0.0
      %1444 = vmatpush.msra.mxu0 0.0
      %1445 = vmatpush.msra.mxu0 0.0
      %1446 = vmatpush.msra.mxu0 0.0
      %1447 = vmatpush.msra.mxu0 0.0
      %1448 = vmatpush.msra.mxu0 0.0
      %1449 = vmatpush.msra.mxu0 0.0
      %1450 = vmatpush.msra.mxu0 0.0
      %1451 = vmatpush.msra.mxu0 0.0
      %1452 = vmatpush.msra.mxu0 0.0
      %1453 = vmatpush.msra.mxu0 %v177
      %1454 = vmatpush.msra.mxu0 %v173
      %1455 = vmatpush.msra.mxu0 %v169
      %1456 = vmatpush.msra.mxu0 %v165
      %1457 = vmatmul.f32.gmra.mxu0 %v1379
      %v1458 = vpop.f32.mrf.mxu0
      %v1459 = vadd.f32 0.0, %v1458
      %1460 = vdwg.mxu0
      %v1465 = vrot.slane %v1419, 6
      %v1466 = vrot.slane %v1439, 4
      %v1467 = vrot.slane %v1459, 2
      %v1468 = vsel %vm275, %v1399, %v1465
      %v1469 = vsel %vm277, %v1466, %v1467
      %v1470 = vsel %vm279, %v1468, %v1469
      %v1472 = vadd.f32 %v1377, %v1470
      %v1473 = vxor.u32 %v1472, 2147483648
      %v1474 = vmul.f32 %v1473, 1.442695
      %v1475 = vpow.pop %v1474
      %v1476 = vadd.f32 %v1475, 1.0
      %v1477 = vrcp.pop %v1476
      %v1478 = vmul.f32 %v1476, %v1477
      %v1479 = vsub.f32 1.0, %v1478
      %v1480 = vmul.f32 %v1477, %v1479
      %v1481 = vadd.f32 %v1477, %v1480
      %vm1482 = vweird.f32 %v1476
      %vm1483 = vweird.f32 %v1477
      %vm1484 = vmor %vm1482, %vm1483
      %v1485 = vsel %vm1484, %v1477, %v1481
      %v1486 = vand.u32 2147483647, %v1476
      %vm1487 = vcmp.eq.f32.partialorder %v1486, 8.507059e+37
      %v1488 = vand.u32 %v1476, 2147483648
      %v1489 = vor.u32 1.1754944e-38, %v1488
      %v1490 = vsel %vm1487, %v1489, %v1485
      %v1491 = vmul.f32 1.0, %v1490
      %v1493 = vrot.slane %v1472, 2
      %v1495 = vxor.u32 %v1493, 2147483648
      %v1496 = vmul.f32 %v1495, 1.442695
      %v1497 = vpow.pop %v1496
      %v1498 = vadd.f32 %v1497, 1.0
      %v1499 = vrcp.pop %v1498
      %v1500 = vmul.f32 %v1498, %v1499
      %v1501 = vsub.f32 1.0, %v1500
      %v1502 = vmul.f32 %v1499, %v1501
      %v1503 = vadd.f32 %v1499, %v1502
      %vm1504 = vweird.f32 %v1498
      %vm1505 = vweird.f32 %v1499
      %vm1506 = vmor %vm1504, %vm1505
      %v1507 = vsel %vm1506, %v1499, %v1503
      %v1508 = vand.u32 2147483647, %v1498
      %vm1509 = vcmp.eq.f32.partialorder %v1508, 8.507059e+37
      %v1510 = vand.u32 %v1498, 2147483648
      %v1511 = vor.u32 1.1754944e-38, %v1510
      %v1512 = vsel %vm1509, %v1511, %v1507
      %v1513 = vmul.f32 1.0, %v1512
      %v1514 = vrot.slane %v1472, 4
      %v1516 = vtanh.pop %v1514
      %v1517 = vrot.slane %v1472, 6
      %v1519 = vxor.u32 %v1517, 2147483648
      %v1520 = vmul.f32 %v1519, 1.442695
      %v1521 = vpow.pop %v1520
      %v1522 = vadd.f32 %v1521, 1.0
      %v1523 = vrcp.pop %v1522
      %v1524 = vmul.f32 %v1522, %v1523
      %v1525 = vsub.f32 1.0, %v1524
      %v1526 = vmul.f32 %v1523, %v1525
      %v1527 = vadd.f32 %v1523, %v1526
      %vm1528 = vweird.f32 %v1522
      %vm1529 = vweird.f32 %v1523
      %vm1530 = vmor %vm1528, %vm1529
      %v1531 = vsel %vm1530, %v1523, %v1527
      %v1532 = vand.u32 2147483647, %v1522
      %vm1533 = vcmp.eq.f32.partialorder %v1532, 8.507059e+37
      %v1534 = vand.u32 %v1522, 2147483648
      %v1535 = vor.u32 1.1754944e-38, %v1534
      %v1536 = vsel %vm1533, %v1535, %v1531
      %v1537 = vmul.f32 1.0, %v1536
      %v1538 = vmul.f32 %v1513, %v1370
      %v1539 = vmul.f32 %v1491, %v1516
      %v1540 = vadd.f32 %v1538, %v1539
      %v1541 = vtanh.pop %v1540
      %v1542 = vmul.f32 %v1537, %v1541
      %vm1543 = vcmask 254976
      %1544 = vst.msk [vmem:[%s161] sm:$0x3] %vm1543, %v1542
      %p1545 = scmp.lt.s32.totalorder %s13, 1
      %s1546 = scalar_select %p1545, %s13, 1
      %s1547 = smul.addr %s1546, 2
      %s1548 = scalar_lea.vmem %s2, %s1547
      // Predicated region
      $region29: #{lstm_arch_forward.3} parent=27 // pred_check
        %p1549 = pneg %p83
      $region30: #{lstm_arch_forward.3} parent=27 // pred_check_branch
        %1551 = sbr.rel (%p1549) target = $region32
      $region31: #{lstm_arch_forward.3} parent=27 // pred_region
        _
      $region32: #{lstm_arch_forward.3} parent=27 // pred_fallthru
        _
    $region28: #{lstm_arch_forward.3} parent=5 // pred_fallthru
      _
    %p1552 = scmp.le.s32.totalorder 2, %s8
    // Predicated region
    $region33: #{lstm_arch_forward.3} parent=5 // pred_check
      %p1553 = pneg %p1552
    $region34: #{lstm_arch_forward.3} parent=5 // pred_check_branch
      %1555 = sbr.rel (%p1553) target = $region36
    $region35: #{lstm_arch_forward.3} parent=5 // pred_region
      %s1556 = ssub.s32 %s8, 2
      // Predicated region
      $region37: #{lstm_arch_forward.3} parent=35 // pred_check
        %p1557 = pneg %p89
      $region38: #{lstm_arch_forward.3} parent=35 // pred_check_branch
        %1559 = sbr.rel (%p1557) target = $region40
      $region39: #{lstm_arch_forward.3} parent=35 // pred_region
        %p1560 = scmp.lt.s32.totalorder %s14, 1
        %s1561 = scalar_select %p1560, %s14, 1
        %s1562 = smul.addr %s1561, 2
        %s1563 = scalar_lea.vmem %s2, %s1562
      $region40: #{lstm_arch_forward.3} parent=35 // pred_fallthru
        _
    $region36: #{lstm_arch_forward.3} parent=5 // pred_fallthru
      _
  $region6: #{lstm_arch_forward.3} parent=0 // loop_footer
    %s12 = sadd.s32 1, %s8
  $region7: #{lstm_arch_forward.3} parent=0 // loop_footer_branch
    %7 = sbr.rel target = $region3
  $region8: #{lstm_arch_forward.3} parent=0 // loop_exit
    _

</llo_original>
